<compile_context>
chip_gen: v7x
topology: tpu7x:2x2x1
jax: 0.10.0
libtpu: 0.0.40
codegen_flags: <defaults>
</compile_context>

<pallas_src>
import functools

import numpy as np
import jax
import jax.numpy as jnp
from jax import lax
from jax.experimental import pallas as pl


# ----------------------------------------------------------------------------
# Launch 1: conv1 (image + all query shots) as a single matmul + bias + ReLU
# ----------------------------------------------------------------------------
def _matmul_bias_relu_kernel(x_ref, w_ref, b_ref, o_ref):
    y = jnp.dot(x_ref[...], w_ref[...], preferred_element_type=jnp.float32)
    o_ref[...] = jnp.maximum(y + b_ref[...], 0.0).astype(o_ref.dtype)


def pallas_matmul_bias_relu(x, w, b, out_dtype=jnp.bfloat16):
    """Whole-array single-block matmul+bias+ReLU (bf16 operands, f32 MXU acc).

    bf16 output so the consumer (conv2 im2col) never sees an f32 HBM round
    trip.  No grid: every operand is far below the scoped-VMEM limit on all
    TPU generations at these toy shapes.
    """
    M = x.shape[0]
    N = w.shape[1]
    return pl.pallas_call(
        _matmul_bias_relu_kernel,
        out_shape=jax.ShapeDtypeStruct((M, N), out_dtype),
    )(x, w, b)


# ----------------------------------------------------------------------------
# Launch 2: conv2 + shot mean + match_net + ROI pool + Box_Head + Box_Outs
# ----------------------------------------------------------------------------
def _fused_tail_kernel(cols2_ref, w2_ref, b2_ref, mq_ref, pool_ref, troi_ref,
                       fc1w_ref, fc1b_ref, fc2w_ref, fc2b_ref,
                       headw_ref, headb_ref,
                       blob_ref, qc_ref, cls_ref, bbox_ref):
    """Everything after conv1, fully fused; intermediates stay in VMEM/vregs."""
    bf16 = cols2_ref.dtype

    # conv2 over pre-im2col'd columns (image rows first, then query-shot rows)
    y = jnp.dot(cols2_ref[...], w2_ref[...], preferred_element_type=jnp.float32)
    y = jnp.maximum(y + b2_ref[...], 0.0)                       # (Mimg+Mq, C)

    n_img = blob_ref.shape[0]                                   # B*Hi*Wi
    per_shot = qc_ref.shape[0]                                  # B*Hq*Wq
    shots = (y.shape[0] - n_img) // per_shot
    cdim = w2_ref.shape[1]

    img = y[:n_img]                                             # image features
    blob_ref[...] = img

    # shot-average pooling of the query features (pooling(feats,'avg',dim=0))
    qc = y[n_img:n_img + per_shot]
    for s in range(1, shots):                                   # static, unrolled
        qc = qc + y[n_img + s * per_shot:n_img + (s + 1) * per_shot]
    qc = qc * (1.0 / shots)                                     # (B*Hq*Wq, C)
    qc_ref[...] = qc

    # match_net: per-batch global average pool of the query -> channel weight
    qpool = jnp.dot(mq_ref[...], qc, preferred_element_type=jnp.float32)  # (B,C)

    # correlation (img * qpool) -> full-image ROI avg-pool -> flatten -> fc1,
    # folded: h1[b] = sum_p ((P_p @ img)[b] * qpool[b]) @ fc1_w[p*C:(p+1)*C]
    # so the (R, res*res*C) box_feat matrix and corr map never materialise.
    img_bf = img.astype(bf16)
    n_cells = pool_ref.shape[0]
    h1 = jnp.zeros((qpool.shape[0], fc1w_ref.shape[1]), jnp.float32)
    for p in range(n_cells):                                    # static, unrolled
        cell = jnp.dot(pool_ref[p], img_bf,
                       preferred_element_type=jnp.float32)      # (B, C)
        cell = (cell * qpool).astype(bf16)
        h1 = h1 + jnp.dot(cell, fc1w_ref[p * cdim:(p + 1) * cdim, :],
                          preferred_element_type=jnp.float32)
    h1 = jnp.maximum(h1 + fc1b_ref[...], 0.0)                   # (B, 64)

    # Box_Head fc2 + Box_Outs (cls || bbox as one combined matmul)
    h2 = jnp.dot(h1.astype(bf16), fc2w_ref[...],
                 preferred_element_type=jnp.float32)
    h2 = jnp.maximum(h2 + fc2b_ref[...], 0.0)
    out = jnp.dot(h2.astype(bf16), headw_ref[...],
                  preferred_element_type=jnp.float32)
    out = out + headb_ref[...]                                  # (B, ncls+4*ncls)

    n_cls = cls_ref.shape[1]
    logits = out[:, :n_cls]
    m = jnp.max(logits, axis=-1, keepdims=True)
    e = jnp.exp(logits - m)
    probs = e / jnp.sum(e, axis=-1, keepdims=True)              # exact softmax
    bbox = out[:, n_cls:]

    # replicate per-batch results onto the fixed full-image ROIs (rois[:,0]=r%B)
    cls_ref[...] = jnp.dot(troi_ref[...], probs,
                           preferred_element_type=jnp.float32)
    bbox_ref[...] = jnp.dot(troi_ref[...], bbox,
                            preferred_element_type=jnp.float32)


def pallas_fused_tail(cols2, prep, mq, pool3, t_rois, *,
                      n_img_rows, qc_rows, n_cls):
    C = prep["conv2_wm"].shape[1]
    n_rois = t_rois.shape[0]
    n_out = prep["head_w"].shape[1]
    return pl.pallas_call(
        _fused_tail_kernel,
        out_shape=(
            jax.ShapeDtypeStruct((n_img_rows, C), jnp.float32),       # blob_conv
            jax.ShapeDtypeStruct((qc_rows, C), jnp.float32),          # query_conv
            jax.ShapeDtypeStruct((n_rois, n_cls), jnp.float32),       # cls_score
            jax.ShapeDtypeStruct((n_rois, n_out - n_cls), jnp.float32),  # bbox
        ),
    )(cols2, prep["conv2_wm"], prep["conv2_b"], mq, pool3, t_rois,
      prep["fc1_w"], prep["fc1_b"], prep["fc2_w"], prep["fc2_b"],
      prep["head_w"], prep["head_b"])


# ----------------------------------------------------------------------------
# XLA glue: im2col + compile-time constant matrices
# ----------------------------------------------------------------------------
def _im2col_3x3(x_nhwc, stride):
    """3x3 pad=1 im2col (XLA glue).  Output (N, OH, OW, 9*C), taps (kh, kw, c).

    TODO(synk): at real backbone sizes replace this 9x materialisation with
    shifted pl.ds reads inside the Pallas kernel.
    """
    N, H, W, C = x_nhwc.shape
    xp = jnp.pad(x_nhwc, ((0, 0), (1, 1), (1, 1), (0, 0)))
    cols = []
    for dh in range(3):
        for dw in range(3):
            cols.append(xp[:, dh:dh + H:stride, dw:dw + W:stride, :])
    return jnp.concatenate(cols, axis=-1)


def _build_query_pool_matrix(batch, q_hw):
    """(B, B*q_hw): row b averages the q_hw query rows of batch item b."""
    m = np.zeros((batch, batch * q_hw), np.float32)
    for b in range(batch):
        m[b, b * q_hw:(b + 1) * q_hw] = 1.0 / q_hw
    return m


def _build_roi_pool_matrix(batch, hf, wf, res):
    """(res*res, B, B*hf*wf): row (p, b) averages ROI-pool cell p of batch b
    from the (b, h, w)-flattened feature rows (full-image adaptive avg pool)."""
    kh, kw = hf // res, wf // res
    m = np.zeros((res * res, batch, batch * hf * wf), np.float32)
    inv = 1.0 / (kh * kw)
    for ph in range(res):
        for pw in range(res):
            for b in range(batch):
                for dh in range(kh):
                    for dw in range(kw):
                        col = b * hf * wf + (ph * kh + dh) * wf + (pw * kw + dw)
                        m[ph * res + pw, b, col] = inv
    return m


def _build_roi_select_matrix(n_rois, batch):
    """(R, B): selector replicating per-batch head outputs onto ROI rows."""
    m = np.zeros((n_rois, batch), np.float32)
    m[np.arange(n_rois), np.arange(n_rois) % batch] = 1.0
    return m


# ----------------------------------------------------------------------------
# Parameter preparation (bf16 cast + layout packing done ONCE, not per forward)
# ----------------------------------------------------------------------------
def prepare_params(params):
    bf16 = jnp.bfloat16
    f32 = jnp.float32
    return {
        "conv1_wm": params["conv1_w"].reshape(-1, params["conv1_w"].shape[-1]).astype(bf16),
        "conv1_b": params["conv1_b"].reshape(1, -1).astype(f32),
        "conv2_wm": params["conv2_w"].reshape(-1, params["conv2_w"].shape[-1]).astype(bf16),
        "conv2_b": params["conv2_b"].reshape(1, -1).astype(f32),
        "fc1_w": params["fc1_w"].astype(bf16),
        "fc1_b": params["fc1_b"].reshape(1, -1).astype(f32),
        "fc2_w": params["fc2_w"].astype(bf16),
        "fc2_b": params["fc2_b"].reshape(1, -1).astype(f32),
        # cls and bbox heads fused into a single (hidden, ncls + 4*ncls) matmul
        "head_w": jnp.concatenate([params["cls_w"], params["bbox_w"]], axis=1).astype(bf16),
        "head_b": jnp.concatenate([params["cls_b"], params["bbox_b"]]).reshape(1, -1).astype(f32),
    }


# ----------------------------------------------------------------------------
# Generalized_RCNN forward (inference mode) — two Pallas launches total
# ----------------------------------------------------------------------------
def generalized_rcnn_forward(prep, data, query, im_info, num_classes=2):
    del im_info  # only used by the (omitted) RPN proposal generator
    return_dict = {}
    B = data.shape[0]
    S = len(query)
    bf16 = jnp.bfloat16

    # NCHW -> NHWC so channels land on TPU lanes
    x_img = jnp.transpose(data, (0, 2, 3, 1)).astype(jnp.float32)
    x_qry = jnp.transpose(jnp.concatenate(query, axis=0), (0, 2, 3, 1)).astype(jnp.float32)

    # ---- launch 1: conv1 for image + query shots (shared weights, one matmul)
    cin = x_img.shape[-1]
    cols1 = jnp.concatenate(
        [_im2col_3x3(x_img, 2).reshape(-1, 9 * cin),
         _im2col_3x3(x_qry, 2).reshape(-1, 9 * cin)], axis=0).astype(bf16)
    feat1 = pallas_matmul_bias_relu(cols1, prep["conv1_wm"], prep["conv1_b"])

    c1 = prep["conv1_wm"].shape[1]
    h1i, w1i = x_img.shape[1] // 2, x_img.shape[2] // 2
    h1q, w1q = x_qry.shape[1] // 2, x_qry.shape[2] // 2
    n_img1 = B * h1i * w1i
    f1_img = feat1[:n_img1].reshape(B, h1i, w1i, c1)
    f1_qry = feat1[n_img1:].reshape(S * B, h1q, w1q, c1)

    # im2col for conv2 (bf16 throughout; no intermediate f32 cast)
    cols2 = jnp.concatenate(
        [_im2col_3x3(f1_img, 2).reshape(-1, 9 * c1),
         _im2col_3x3(f1_qry, 2).reshape(-1, 9 * c1)], axis=0)

    C = prep["conv2_wm"].shape[1]
    hi, wi = h1i // 2, w1i // 2          # image feature map (8 x 8)
    hq, wq = h1q // 2, w1q // 2          # query feature map (4 x 4)

    # fixed full-image ROIs (stand-in for RPN proposal generation)
    n_rois, resolution = 8, 4
    b_col = jnp.arange(n_rois, dtype=jnp.float32) % float(B)
    zeros = jnp.zeros((n_rois,), jnp.float32)
    rois = jnp.stack([b_col, zeros, zeros,
                      jnp.full((n_rois,), float(data.shape[3]) - 1.0, jnp.float32),
                      jnp.full((n_rois,), float(data.shape[2]) - 1.0, jnp.float32)],
                     axis=1)                                     # (R, 5)

    # compile-time constant matmul operands (trace-time literals)
    mq = jnp.asarray(_build_query_pool_matrix(B, hq * wq), jnp.float32)
    pool3 = jnp.asarray(_build_roi_pool_matrix(B, hi, wi, resolution), bf16)
    t_rois = jnp.asarray(_build_roi_select_matrix(n_rois, B), jnp.float32)

    # ---- launch 2: conv2 + shot mean + match_net + ROI pool + box head/outs
    blob_flat, qc_flat, cls_score, bbox_pred = pallas_fused_tail(
        cols2, prep, mq, pool3, t_rois,
        n_img_rows=B * hi * wi, qc_rows=B * hq * wq, n_cls=num_classes)

    blob_conv = blob_flat.reshape(B, hi, wi, C)
    query_conv = qc_flat.reshape(B, hq, wq, C)

    return_dict["blob_conv"] = jnp.transpose(blob_conv, (0, 3, 1, 2))   # NCHW
    return_dict["query_conv"] = jnp.transpose(query_conv, (0, 3, 1, 2))
    return_dict["rois"] = rois
    return_dict["cls_score"] = cls_score
    return_dict["bbox_pred"] = bbox_pred
    return return_dict


# ----------------------------------------------------------------------------
# Pure-JAX reference (f32) for correctness checking
# ----------------------------------------------------------------------------
def reference_forward(params, data, query):
    def conv(x, w, b, stride):
        y = lax.conv_general_dilated(x, w, (stride, stride), ((1, 1), (1, 1)),
                                     dimension_numbers=("NCHW", "HWIO", "NCHW"))
        return jax.nn.relu(y + b[None, :, None, None])

    def body(x):
        x = conv(x, params["conv1_w"], params["conv1_b"], 2)
        return conv(x, params["conv2_w"], params["conv2_b"], 2)

    blob = body(data)                                            # (B, 32, 8, 8)
    qf = jnp.stack([body(q) for q in query]).mean(axis=0)        # (B, 32, 4, 4)
    qpool = qf.mean(axis=(2, 3), keepdims=True)                  # (B, 32, 1, 1)
    corr = blob * qpool
    B = data.shape[0]
    b_idx = np.arange(8) % B
    crops = corr[b_idx]                                          # (8, 32, 8, 8)
    pooled = crops.reshape(8, crops.shape[1], 4, 2, 4, 2).mean(axis=(3, 5))
    box_feat = pooled.transpose(0, 2, 3, 1).reshape(8, -1)       # NHWC flatten
    h = jax.nn.relu(box_feat @ params["fc1_w"] + params["fc1_b"])
    h = jax.nn.relu(h @ params["fc2_w"] + params["fc2_b"])
    cls = jax.nn.softmax(h @ params["cls_w"] + params["cls_b"], axis=-1)
    bbox = h @ params["bbox_w"] + params["bbox_b"]
    return blob, qf, cls, bbox


# ----------------------------------------------------------------------------
# Deterministic parameter init
# ----------------------------------------------------------------------------
def init_params(key):
    dims = {
        "conv1_w": (3, 3, 3, 16), "conv1_b": (16,),
        "conv2_w": (3, 3, 16, 32), "conv2_b": (32,),
        "fc1_w": (32 * 4 * 4, 64), "fc1_b": (64,),
        "fc2_w": (64, 64), "fc2_b": (64,),
        "cls_w": (64, 2), "cls_b": (2,),                 # 2 classes (fg/bg)
        "bbox_w": (64, 8), "bbox_b": (8,),               # 4 * 2 classes
    }
    params = {}
    keys = jax.random.split(key, len(dims))
    for k, (name, shape) in zip(keys, sorted(dims.items())):
        params[name] = 0.1 * jax.random.normal(k, shape, jnp.float32)
    return params


if __name__ == "__main__":
    key = jax.random.PRNGKey(0)
    k_p, k_d, k_q0, k_q1 = jax.random.split(key, 4)
    params = init_params(k_p)
    prep = prepare_params(params)   # bf16 weight packing done once

    # data: (B=2, C=3, H=32, W=32); query: 2 shots of (B=2, C=3, 16, 16)
    data = jax.random.normal(k_d, (2, 3, 32, 32), jnp.float32)
    query = [jax.random.normal(k_q0, (2, 3, 16, 16), jnp.float32),
             jax.random.normal(k_q1, (2, 3, 16, 16), jnp.float32)]
    im_info = jnp.array([[32.0, 32.0, 1.0], [32.0, 32.0, 1.0]], jnp.float32)

    rcnn_forward = jax.jit(generalized_rcnn_forward, static_argnames=("num_classes",))
    out = rcnn_forward(prep, data, query, im_info, num_classes=2)
    jax.block_until_ready(out)

    assert out["blob_conv"].shape == (2, 32, 8, 8)
    assert out["query_conv"].shape == (2, 32, 4, 4)
    assert out["rois"].shape == (8, 5)
    assert out["cls_score"].shape == (8, 2)
    assert out["bbox_pred"].shape == (8, 8)

    ref_blob, ref_query, ref_cls, ref_bbox = reference_forward(params, data, query)
    np.testing.assert_allclose(out["blob_conv"], ref_blob, rtol=5e-2, atol=2e-2)
    np.testing.assert_allclose(out["query_conv"], ref_query, rtol=5e-2, atol=2e-2)
    np.testing.assert_allclose(out["cls_score"], ref_cls, rtol=5e-2, atol=2e-2)
    np.testing.assert_allclose(out["bbox_pred"], ref_bbox, rtol=5e-2, atol=2e-2)

    print("KERNEL_OK")
</pallas_src>

<mosaic_0001>
module attributes {stable_mosaic.version = 11 : i64} {
  func.func @_matmul_bias_relu_kernel(%arg0: memref<768x27xbf16, #tpu.memory_space<vmem>>, %arg1: memref<27x16xbf16, #tpu.memory_space<vmem>>, %arg2: memref<1x16xf32, #tpu.memory_space<vmem>>, %arg3: memref<768x16xbf16, #tpu.memory_space<vmem>>) attributes {dimension_semantics = [], scalar_prefetch = 0 : i64, scratch_operands = 0 : i64, tpu.core_type = #tpu.core_type<tc>} {
    %c0 = arith.constant 0 : index
    %c0_0 = arith.constant 0 : index
    %0 = vector.load %arg0[%c0, %c0_0] : memref<768x27xbf16, #tpu.memory_space<vmem>>, vector<768x27xbf16>
    %c0_1 = arith.constant 0 : index
    %c0_2 = arith.constant 0 : index
    %1 = vector.load %arg1[%c0_1, %c0_2] : memref<27x16xbf16, #tpu.memory_space<vmem>>, vector<27x16xbf16>
    %cst = arith.constant dense<0.000000e+00> : vector<768x16xf32>
    %2 = tpu.matmul %0, %1, %cst {dimension_numbers = #tpu.dot_dimension_numbers<[1], [0], [0], [1], [0, 0, 1, 1], [], []>} : vector<768x27xbf16>, vector<27x16xbf16>, vector<768x16xf32> -> vector<768x16xf32>
    %c0_3 = arith.constant 0 : index
    %c0_4 = arith.constant 0 : index
    %3 = vector.load %arg2[%c0_3, %c0_4] : memref<1x16xf32, #tpu.memory_space<vmem>>, vector<1x16xf32>
    %4 = vector.broadcast %3 : vector<1x16xf32> to vector<768x16xf32>
    %5 = arith.addf %2, %4 : vector<768x16xf32>
    %cst_5 = arith.constant 0.000000e+00 : f32
    %6 = vector.broadcast %cst_5 : f32 to vector<768x16xf32>
    %7 = arith.maximumf %5, %6 : vector<768x16xf32>
    %8 = arith.truncf %7 : vector<768x16xf32> to vector<768x16xbf16>
    %c0_6 = arith.constant 0 : index
    %c0_7 = arith.constant 0 : index
    %9 = vector.load %arg3[%c0_6, %c0_7] : memref<768x16xbf16, #tpu.memory_space<vmem>>, vector<768x16xbf16>
    tpu.vector_store %arg3[%c0_6, %c0_7], %8 {strides = array<i32>} : memref<768x16xbf16, #tpu.memory_space<vmem>>, vector<768x16xbf16>,
    return
  }
}

module attributes {stable_mosaic.version = 11 : i64} {
  func.func @_fused_tail_kernel(%arg0: memref<192x144xbf16, #tpu.memory_space<vmem>>, %arg1: memref<144x32xbf16, #tpu.memory_space<vmem>>, %arg2: memref<1x32xf32, #tpu.memory_space<vmem>>, %arg3: memref<2x32xf32, #tpu.memory_space<vmem>>, %arg4: memref<16x2x128xbf16, #tpu.memory_space<vmem>>, %arg5: memref<8x2xf32, #tpu.memory_space<vmem>>, %arg6: memref<512x64xbf16, #tpu.memory_space<vmem>>, %arg7: memref<1x64xf32, #tpu.memory_space<vmem>>, %arg8: memref<64x64xbf16, #tpu.memory_space<vmem>>, %arg9: memref<1x64xf32, #tpu.memory_space<vmem>>, %arg10: memref<64x10xbf16, #tpu.memory_space<vmem>>, %arg11: memref<1x10xf32, #tpu.memory_space<vmem>>, %arg12: memref<128x32xf32, #tpu.memory_space<vmem>>, %arg13: memref<32x32xf32, #tpu.memory_space<vmem>>, %arg14: memref<8x2xf32, #tpu.memory_space<vmem>>, %arg15: memref<8x8xf32, #tpu.memory_space<vmem>>) attributes {dimension_semantics = [], scalar_prefetch = 0 : i64, scratch_operands = 0 : i64, tpu.core_type = #tpu.core_type<tc>} {
    %c0 = arith.constant 0 : index
    %c0_0 = arith.constant 0 : index
    %0 = vector.load %arg0[%c0, %c0_0] : memref<192x144xbf16, #tpu.memory_space<vmem>>, vector<192x144xbf16>
    %c0_1 = arith.constant 0 : index
    %c0_2 = arith.constant 0 : index
    %1 = vector.load %arg1[%c0_1, %c0_2] : memref<144x32xbf16, #tpu.memory_space<vmem>>, vector<144x32xbf16>
    %cst = arith.constant dense<0.000000e+00> : vector<192x32xf32>
    %2 = tpu.matmul %0, %1, %cst {dimension_numbers = #tpu.dot_dimension_numbers<[1], [0], [0], [1], [0, 0, 1, 1], [], []>} : vector<192x144xbf16>, vector<144x32xbf16>, vector<192x32xf32> -> vector<192x32xf32>
    %c0_3 = arith.constant 0 : index
    %c0_4 = arith.constant 0 : index
    %3 = vector.load %arg2[%c0_3, %c0_4] : memref<1x32xf32, #tpu.memory_space<vmem>>, vector<1x32xf32>
    %4 = vector.broadcast %3 : vector<1x32xf32> to vector<192x32xf32>
    %5 = arith.addf %2, %4 : vector<192x32xf32>
    %cst_5 = arith.constant 0.000000e+00 : f32
    %6 = vector.broadcast %cst_5 : f32 to vector<192x32xf32>
    %7 = arith.maximumf %5, %6 : vector<192x32xf32>
    %8 = vector.extract_strided_slice %7 {offsets = [0, 0], sizes = [128, 32], strides = [1, 1]} : vector<192x32xf32> to vector<128x32xf32>
    %c0_6 = arith.constant 0 : index
    %c0_7 = arith.constant 0 : index
    %9 = vector.load %arg12[%c0_6, %c0_7] : memref<128x32xf32, #tpu.memory_space<vmem>>, vector<128x32xf32>
    tpu.vector_store %arg12[%c0_6, %c0_7], %8 {strides = array<i32>} : memref<128x32xf32, #tpu.memory_space<vmem>>, vector<128x32xf32>,
    %10 = vector.extract_strided_slice %7 {offsets = [128, 0], sizes = [32, 32], strides = [1, 1]} : vector<192x32xf32> to vector<32x32xf32>
    %11 = vector.extract_strided_slice %7 {offsets = [160, 0], sizes = [32, 32], strides = [1, 1]} : vector<192x32xf32> to vector<32x32xf32>
    %12 = arith.addf %10, %11 : vector<32x32xf32>
    %cst_8 = arith.constant 5.000000e-01 : f32
    %13 = vector.broadcast %cst_8 : f32 to vector<32x32xf32>
    %14 = arith.mulf %12, %13 : vector<32x32xf32>
    %c0_9 = arith.constant 0 : index
    %c0_10 = arith.constant 0 : index
    %15 = vector.load %arg13[%c0_9, %c0_10] : memref<32x32xf32, #tpu.memory_space<vmem>>, vector<32x32xf32>
    tpu.vector_store %arg13[%c0_9, %c0_10], %14 {strides = array<i32>} : memref<32x32xf32, #tpu.memory_space<vmem>>, vector<32x32xf32>,
    %c0_11 = arith.constant 0 : index
    %c0_12 = arith.constant 0 : index
    %16 = vector.load %arg3[%c0_11, %c0_12] : memref<2x32xf32, #tpu.memory_space<vmem>>, vector<2x32xf32>
    %cst_13 = arith.constant dense<0.000000e+00> : vector<2x32xf32>
    %17 = tpu.matmul %16, %14, %cst_13 {dimension_numbers = #tpu.dot_dimension_numbers<[1], [0], [0], [1], [0, 0, 1, 1], [], []>} : vector<2x32xf32>, vector<32x32xf32>, vector<2x32xf32> -> vector<2x32xf32>
    %18 = arith.truncf %8 : vector<128x32xf32> to vector<128x32xbf16>
    %cst_14 = arith.constant 0.000000e+00 : f32
    %19 = vector.broadcast %cst_14 : f32 to vector<2x64xf32>
    %c0_15 = arith.constant 0 : index
    %c0_16 = arith.constant 0 : index
    %c0_17 = arith.constant 0 : index
    %20 = vector.load %arg4[%c0_15, %c0_16, %c0_17] : memref<16x2x128xbf16, #tpu.memory_space<vmem>>, vector<1x2x128xbf16>
    %21 = vector.shape_cast %20 : vector<1x2x128xbf16> to vector<2x128xbf16>
    %cst_18 = arith.constant dense<0.000000e+00> : vector<2x32xf32>
    %22 = tpu.matmul %21, %18, %cst_18 {dimension_numbers = #tpu.dot_dimension_numbers<[1], [0], [0], [1], [0, 0, 1, 1], [], []>} : vector<2x128xbf16>, vector<128x32xbf16>, vector<2x32xf32> -> vector<2x32xf32>
    %23 = arith.mulf %22, %17 : vector<2x32xf32>
    %24 = arith.truncf %23 : vector<2x32xf32> to vector<2x32xbf16>
    %c0_19 = arith.constant 0 : index
    %c0_20 = arith.constant 0 : index
    %25 = vector.load %arg6[%c0_19, %c0_20] : memref<512x64xbf16, #tpu.memory_space<vmem>>, vector<32x64xbf16>
    %cst_21 = arith.constant dense<0.000000e+00> : vector<2x64xf32>
    %26 = tpu.matmul %24, %25, %cst_21 {dimension_numbers = #tpu.dot_dimension_numbers<[1], [0], [0], [1], [0, 0, 1, 1], [], []>} : vector<2x32xbf16>, vector<32x64xbf16>, vector<2x64xf32> -> vector<2x64xf32>
    %27 = arith.addf %19, %26 : vector<2x64xf32>
    %c1 = arith.constant 1 : index
    %c0_22 = arith.constant 0 : index
    %c0_23 = arith.constant 0 : index
    %28 = vector.load %arg4[%c1, %c0_22, %c0_23] : memref<16x2x128xbf16, #tpu.memory_space<vmem>>, vector<1x2x128xbf16>
    %29 = vector.shape_cast %28 : vector<1x2x128xbf16> to vector<2x128xbf16>
    %cst_24 = arith.constant dense<0.000000e+00> : vector<2x32xf32>
    %30 = tpu.matmul %29, %18, %cst_24 {dimension_numbers = #tpu.dot_dimension_numbers<[1], [0], [0], [1], [0, 0, 1, 1], [], []>} : vector<2x128xbf16>, vector<128x32xbf16>, vector<2x32xf32> -> vector<2x32xf32>
    %31 = arith.mulf %30, %17 : vector<2x32xf32>
    %32 = arith.truncf %31 : vector<2x32xf32> to vector<2x32xbf16>
    %c32 = arith.constant 32 : index
    %c0_25 = arith.constant 0 : index
    %33 = vector.load %arg6[%c32, %c0_25] : memref<512x64xbf16, #tpu.memory_space<vmem>>, vector<32x64xbf16>
    %cst_26 = arith.constant dense<0.000000e+00> : vector<2x64xf32>
    %34 = tpu.matmul %32, %33, %cst_26 {dimension_numbers = #tpu.dot_dimension_numbers<[1], [0], [0], [1], [0, 0, 1, 1], [], []>} : vector<2x32xbf16>, vector<32x64xbf16>, vector<2x64xf32> -> vector<2x64xf32>
    %35 = arith.addf %27, %34 : vector<2x64xf32>
    %c2 = arith.constant 2 : index
    %c0_27 = arith.constant 0 : index
    %c0_28 = arith.constant 0 : index
    %36 = vector.load %arg4[%c2, %c0_27, %c0_28] : memref<16x2x128xbf16, #tpu.memory_space<vmem>>, vector<1x2x128xbf16>
    %37 = vector.shape_cast %36 : vector<1x2x128xbf16> to vector<2x128xbf16>
    %cst_29 = arith.constant dense<0.000000e+00> : vector<2x32xf32>
    %38 = tpu.matmul %37, %18, %cst_29 {dimension_numbers = #tpu.dot_dimension_numbers<[1], [0], [0], [1], [0, 0, 1, 1], [], []>} : vector<2x128xbf16>, vector<128x32xbf16>, vector<2x32xf32> -> vector<2x32xf32>
    %39 = arith.mulf %38, %17 : vector<2x32xf32>
    %40 = arith.truncf %39 : vector<2x32xf32> to vector<2x32xbf16>
    %c64 = arith.constant 64 : index
    %c0_30 = arith.constant 0 : index
    %41 = vector.load %arg6[%c64, %c0_30] : memref<512x64xbf16, #tpu.memory_space<vmem>>, vector<32x64xbf16>
    %cst_31 = arith.constant dense<0.000000e+00> : vector<2x64xf32>
    %42 = tpu.matmul %40, %41, %cst_31 {dimension_numbers = #tpu.dot_dimension_numbers<[1], [0], [0], [1], [0, 0, 1, 1], [], []>} : vector<2x32xbf16>, vector<32x64xbf16>, vector<2x64xf32> -> vector<2x64xf32>
    %43 = arith.addf %35, %42 : vector<2x64xf32>
    %c3 = arith.constant 3 : index
    %c0_32 = arith.constant 0 : index
    %c0_33 = arith.constant 0 : index
    %44 = vector.load %arg4[%c3, %c0_32, %c0_33] : memref<16x2x128xbf16, #tpu.memory_space<vmem>>, vector<1x2x128xbf16>
    %45 = vector.shape_cast %44 : vector<1x2x128xbf16> to vector<2x128xbf16>
    %cst_34 = arith.constant dense<0.000000e+00> : vector<2x32xf32>
    %46 = tpu.matmul %45, %18, %cst_34 {dimension_numbers = #tpu.dot_dimension_numbers<[1], [0], [0], [1], [0, 0, 1, 1], [], []>} : vector<2x128xbf16>, vector<128x32xbf16>, vector<2x32xf32> -> vector<2x32xf32>
    %47 = arith.mulf %46, %17 : vector<2x32xf32>
    %48 = arith.truncf %47 : vector<2x32xf32> to vector<2x32xbf16>
    %c96 = arith.constant 96 : index
    %c0_35 = arith.constant 0 : index
    %49 = vector.load %arg6[%c96, %c0_35] : memref<512x64xbf16, #tpu.memory_space<vmem>>, vector<32x64xbf16>
    %cst_36 = arith.constant dense<0.000000e+00> : vector<2x64xf32>
    %50 = tpu.matmul %48, %49, %cst_36 {dimension_numbers = #tpu.dot_dimension_numbers<[1], [0], [0], [1], [0, 0, 1, 1], [], []>} : vector<2x32xbf16>, vector<32x64xbf16>, vector<2x64xf32> -> vector<2x64xf32>
    %51 = arith.addf %43, %50 : vector<2x64xf32>
    %c4 = arith.constant 4 : index
    %c0_37 = arith.constant 0 : index
    %c0_38 = arith.constant 0 : index
    %52 = vector.load %arg4[%c4, %c0_37, %c0_38] : memref<16x2x128xbf16, #tpu.memory_space<vmem>>, vector<1x2x128xbf16>
    %53 = vector.shape_cast %52 : vector<1x2x128xbf16> to vector<2x128xbf16>
    %cst_39 = arith.constant dense<0.000000e+00> : vector<2x32xf32>
    %54 = tpu.matmul %53, %18, %cst_39 {dimension_numbers = #tpu.dot_dimension_numbers<[1], [0], [0], [1], [0, 0, 1, 1], [], []>} : vector<2x128xbf16>, vector<128x32xbf16>, vector<2x32xf32> -> vector<2x32xf32>
    %55 = arith.mulf %54, %17 : vector<2x32xf32>
    %56 = arith.truncf %55 : vector<2x32xf32> to vector<2x32xbf16>
    %c128 = arith.constant 128 : index
    %c0_40 = arith.constant 0 : index
    %57 = vector.load %arg6[%c128, %c0_40] : memref<512x64xbf16, #tpu.memory_space<vmem>>, vector<32x64xbf16>
    %cst_41 = arith.constant dense<0.000000e+00> : vector<2x64xf32>
    %58 = tpu.matmul %56, %57, %cst_41 {dimension_numbers = #tpu.dot_dimension_numbers<[1], [0], [0], [1], [0, 0, 1, 1], [], []>} : vector<2x32xbf16>, vector<32x64xbf16>, vector<2x64xf32> -> vector<2x64xf32>
    %59 = arith.addf %51, %58 : vector<2x64xf32>
    %c5 = arith.constant 5 : index
    %c0_42 = arith.constant 0 : index
    %c0_43 = arith.constant 0 : index
    %60 = vector.load %arg4[%c5, %c0_42, %c0_43] : memref<16x2x128xbf16, #tpu.memory_space<vmem>>, vector<1x2x128xbf16>
    %61 = vector.shape_cast %60 : vector<1x2x128xbf16> to vector<2x128xbf16>
    %cst_44 = arith.constant dense<0.000000e+00> : vector<2x32xf32>
    %62 = tpu.matmul %61, %18, %cst_44 {dimension_numbers = #tpu.dot_dimension_numbers<[1], [0], [0], [1], [0, 0, 1, 1], [], []>} : vector<2x128xbf16>, vector<128x32xbf16>, vector<2x32xf32> -> vector<2x32xf32>
    %63 = arith.mulf %62, %17 : vector<2x32xf32>
    %64 = arith.truncf %63 : vector<2x32xf32> to vector<2x32xbf16>
    %c160 = arith.constant 160 : index
    %c0_45 = arith.constant 0 : index
    %65 = vector.load %arg6[%c160, %c0_45] : memref<512x64xbf16, #tpu.memory_space<vmem>>, vector<32x64xbf16>
    %cst_46 = arith.constant dense<0.000000e+00> : vector<2x64xf32>
    %66 = tpu.matmul %64, %65, %cst_46 {dimension_numbers = #tpu.dot_dimension_numbers<[1], [0], [0], [1], [0, 0, 1, 1], [], []>} : vector<2x32xbf16>, vector<32x64xbf16>, vector<2x64xf32> -> vector<2x64xf32>
    %67 = arith.addf %59, %66 : vector<2x64xf32>
    %c6 = arith.constant 6 : index
    %c0_47 = arith.constant 0 : index
    %c0_48 = arith.constant 0 : index
    %68 = vector.load %arg4[%c6, %c0_47, %c0_48] : memref<16x2x128xbf16, #tpu.memory_space<vmem>>, vector<1x2x128xbf16>
    %69 = vector.shape_cast %68 : vector<1x2x128xbf16> to vector<2x128xbf16>
    %cst_49 = arith.constant dense<0.000000e+00> : vector<2x32xf32>
    %70 = tpu.matmul %69, %18, %cst_49 {dimension_numbers = #tpu.dot_dimension_numbers<[1], [0], [0], [1], [0, 0, 1, 1], [], []>} : vector<2x128xbf16>, vector<128x32xbf16>, vector<2x32xf32> -> vector<2x32xf32>
    %71 = arith.mulf %70, %17 : vector<2x32xf32>
    %72 = arith.truncf %71 : vector<2x32xf32> to vector<2x32xbf16>
    %c192 = arith.constant 192 : index
    %c0_50 = arith.constant 0 : index
    %73 = vector.load %arg6[%c192, %c0_50] : memref<512x64xbf16, #tpu.memory_space<vmem>>, vector<32x64xbf16>
    %cst_51 = arith.constant dense<0.000000e+00> : vector<2x64xf32>
    %74 = tpu.matmul %72, %73, %cst_51 {dimension_numbers = #tpu.dot_dimension_numbers<[1], [0], [0], [1], [0, 0, 1, 1], [], []>} : vector<2x32xbf16>, vector<32x64xbf16>, vector<2x64xf32> -> vector<2x64xf32>
    %75 = arith.addf %67, %74 : vector<2x64xf32>
    %c7 = arith.constant 7 : index
    %c0_52 = arith.constant 0 : index
    %c0_53 = arith.constant 0 : index
    %76 = vector.load %arg4[%c7, %c0_52, %c0_53] : memref<16x2x128xbf16, #tpu.memory_space<vmem>>, vector<1x2x128xbf16>
    %77 = vector.shape_cast %76 : vector<1x2x128xbf16> to vector<2x128xbf16>
    %cst_54 = arith.constant dense<0.000000e+00> : vector<2x32xf32>
    %78 = tpu.matmul %77, %18, %cst_54 {dimension_numbers = #tpu.dot_dimension_numbers<[1], [0], [0], [1], [0, 0, 1, 1], [], []>} : vector<2x128xbf16>, vector<128x32xbf16>, vector<2x32xf32> -> vector<2x32xf32>
    %79 = arith.mulf %78, %17 : vector<2x32xf32>
    %80 = arith.truncf %79 : vector<2x32xf32> to vector<2x32xbf16>
    %c224 = arith.constant 224 : index
    %c0_55 = arith.constant 0 : index
    %81 = vector.load %arg6[%c224, %c0_55] : memref<512x64xbf16, #tpu.memory_space<vmem>>, vector<32x64xbf16>
    %cst_56 = arith.constant dense<0.000000e+00> : vector<2x64xf32>
    %82 = tpu.matmul %80, %81, %cst_56 {dimension_numbers = #tpu.dot_dimension_numbers<[1], [0], [0], [1], [0, 0, 1, 1], [], []>} : vector<2x32xbf16>, vector<32x64xbf16>, vector<2x64xf32> -> vector<2x64xf32>
    %83 = arith.addf %75, %82 : vector<2x64xf32>
    %c8 = arith.constant 8 : index
    %c0_57 = arith.constant 0 : index
    %c0_58 = arith.constant 0 : index
    %84 = vector.load %arg4[%c8, %c0_57, %c0_58] : memref<16x2x128xbf16, #tpu.memory_space<vmem>>, vector<1x2x128xbf16>
    %85 = vector.shape_cast %84 : vector<1x2x128xbf16> to vector<2x128xbf16>
    %cst_59 = arith.constant dense<0.000000e+00> : vector<2x32xf32>
    %86 = tpu.matmul %85, %18, %cst_59 {dimension_numbers = #tpu.dot_dimension_numbers<[1], [0], [0], [1], [0, 0, 1, 1], [], []>} : vector<2x128xbf16>, vector<128x32xbf16>, vector<2x32xf32> -> vector<2x32xf32>
    %87 = arith.mulf %86, %17 : vector<2x32xf32>
    %88 = arith.truncf %87 : vector<2x32xf32> to vector<2x32xbf16>
    %c256 = arith.constant 256 : index
    %c0_60 = arith.constant 0 : index
    %89 = vector.load %arg6[%c256, %c0_60] : memref<512x64xbf16, #tpu.memory_space<vmem>>, vector<32x64xbf16>
    %cst_61 = arith.constant dense<0.000000e+00> : vector<2x64xf32>
    %90 = tpu.matmul %88, %89, %cst_61 {dimension_numbers = #tpu.dot_dimension_numbers<[1], [0], [0], [1], [0, 0, 1, 1], [], []>} : vector<2x32xbf16>, vector<32x64xbf16>, vector<2x64xf32> -> vector<2x64xf32>
    %91 = arith.addf %83, %90 : vector<2x64xf32>
    %c9 = arith.constant 9 : index
    %c0_62 = arith.constant 0 : index
    %c0_63 = arith.constant 0 : index
    %92 = vector.load %arg4[%c9, %c0_62, %c0_63] : memref<16x2x128xbf16, #tpu.memory_space<vmem>>, vector<1x2x128xbf16>
    %93 = vector.shape_cast %92 : vector<1x2x128xbf16> to vector<2x128xbf16>
    %cst_64 = arith.constant dense<0.000000e+00> : vector<2x32xf32>
    %94 = tpu.matmul %93, %18, %cst_64 {dimension_numbers = #tpu.dot_dimension_numbers<[1], [0], [0], [1], [0, 0, 1, 1], [], []>} : vector<2x128xbf16>, vector<128x32xbf16>, vector<2x32xf32> -> vector<2x32xf32>
    %95 = arith.mulf %94, %17 : vector<2x32xf32>
    %96 = arith.truncf %95 : vector<2x32xf32> to vector<2x32xbf16>
    %c288 = arith.constant 288 : index
    %c0_65 = arith.constant 0 : index
    %97 = vector.load %arg6[%c288, %c0_65] : memref<512x64xbf16, #tpu.memory_space<vmem>>, vector<32x64xbf16>
    %cst_66 = arith.constant dense<0.000000e+00> : vector<2x64xf32>
    %98 = tpu.matmul %96, %97, %cst_66 {dimension_numbers = #tpu.dot_dimension_numbers<[1], [0], [0], [1], [0, 0, 1, 1], [], []>} : vector<2x32xbf16>, vector<32x64xbf16>, vector<2x64xf32> -> vector<2x64xf32>
    %99 = arith.addf %91, %98 : vector<2x64xf32>
    %c10 = arith.constant 10 : index
    %c0_67 = arith.constant 0 : index
    %c0_68 = arith.constant 0 : index
    %100 = vector.load %arg4[%c10, %c0_67, %c0_68] : memref<16x2x128xbf16, #tpu.memory_space<vmem>>, vector<1x2x128xbf16>
    %101 = vector.shape_cast %100 : vector<1x2x128xbf16> to vector<2x128xbf16>
    %cst_69 = arith.constant dense<0.000000e+00> : vector<2x32xf32>
    %102 = tpu.matmul %101, %18, %cst_69 {dimension_numbers = #tpu.dot_dimension_numbers<[1], [0], [0], [1], [0, 0, 1, 1], [], []>} : vector<2x128xbf16>, vector<128x32xbf16>, vector<2x32xf32> -> vector<2x32xf32>
    %103 = arith.mulf %102, %17 : vector<2x32xf32>
    %104 = arith.truncf %103 : vector<2x32xf32> to vector<2x32xbf16>
    %c320 = arith.constant 320 : index
    %c0_70 = arith.constant 0 : index
    %105 = vector.load %arg6[%c320, %c0_70] : memref<512x64xbf16, #tpu.memory_space<vmem>>, vector<32x64xbf16>
    %cst_71 = arith.constant dense<0.000000e+00> : vector<2x64xf32>
    %106 = tpu.matmul %104, %105, %cst_71 {dimension_numbers = #tpu.dot_dimension_numbers<[1], [0], [0], [1], [0, 0, 1, 1], [], []>} : vector<2x32xbf16>, vector<32x64xbf16>, vector<2x64xf32> -> vector<2x64xf32>
    %107 = arith.addf %99, %106 : vector<2x64xf32>
    %c11 = arith.constant 11 : index
    %c0_72 = arith.constant 0 : index
    %c0_73 = arith.constant 0 : index
    %108 = vector.load %arg4[%c11, %c0_72, %c0_73] : memref<16x2x128xbf16, #tpu.memory_space<vmem>>, vector<1x2x128xbf16>
    %109 = vector.shape_cast %108 : vector<1x2x128xbf16> to vector<2x128xbf16>
    %cst_74 = arith.constant dense<0.000000e+00> : vector<2x32xf32>
    %110 = tpu.matmul %109, %18, %cst_74 {dimension_numbers = #tpu.dot_dimension_numbers<[1], [0], [0], [1], [0, 0, 1, 1], [], []>} : vector<2x128xbf16>, vector<128x32xbf16>, vector<2x32xf32> -> vector<2x32xf32>
    %111 = arith.mulf %110, %17 : vector<2x32xf32>
    %112 = arith.truncf %111 : vector<2x32xf32> to vector<2x32xbf16>
    %c352 = arith.constant 352 : index
    %c0_75 = arith.constant 0 : index
    %113 = vector.load %arg6[%c352, %c0_75] : memref<512x64xbf16, #tpu.memory_space<vmem>>, vector<32x64xbf16>
    %cst_76 = arith.constant dense<0.000000e+00> : vector<2x64xf32>
    %114 = tpu.matmul %112, %113, %cst_76 {dimension_numbers = #tpu.dot_dimension_numbers<[1], [0], [0], [1], [0, 0, 1, 1], [], []>} : vector<2x32xbf16>, vector<32x64xbf16>, vector<2x64xf32> -> vector<2x64xf32>
    %115 = arith.addf %107, %114 : vector<2x64xf32>
    %c12 = arith.constant 12 : index
    %c0_77 = arith.constant 0 : index
    %c0_78 = arith.constant 0 : index
    %116 = vector.load %arg4[%c12, %c0_77, %c0_78] : memref<16x2x128xbf16, #tpu.memory_space<vmem>>, vector<1x2x128xbf16>
    %117 = vector.shape_cast %116 : vector<1x2x128xbf16> to vector<2x128xbf16>
    %cst_79 = arith.constant dense<0.000000e+00> : vector<2x32xf32>
    %118 = tpu.matmul %117, %18, %cst_79 {dimension_numbers = #tpu.dot_dimension_numbers<[1], [0], [0], [1], [0, 0, 1, 1], [], []>} : vector<2x128xbf16>, vector<128x32xbf16>, vector<2x32xf32> -> vector<2x32xf32>
    %119 = arith.mulf %118, %17 : vector<2x32xf32>
    %120 = arith.truncf %119 : vector<2x32xf32> to vector<2x32xbf16>
    %c384 = arith.constant 384 : index
    %c0_80 = arith.constant 0 : index
    %121 = vector.load %arg6[%c384, %c0_80] : memref<512x64xbf16, #tpu.memory_space<vmem>>, vector<32x64xbf16>
    %cst_81 = arith.constant dense<0.000000e+00> : vector<2x64xf32>
    %122 = tpu.matmul %120, %121, %cst_81 {dimension_numbers = #tpu.dot_dimension_numbers<[1], [0], [0], [1], [0, 0, 1, 1], [], []>} : vector<2x32xbf16>, vector<32x64xbf16>, vector<2x64xf32> -> vector<2x64xf32>
    %123 = arith.addf %115, %122 : vector<2x64xf32>
    %c13 = arith.constant 13 : index
    %c0_82 = arith.constant 0 : index
    %c0_83 = arith.constant 0 : index
    %124 = vector.load %arg4[%c13, %c0_82, %c0_83] : memref<16x2x128xbf16, #tpu.memory_space<vmem>>, vector<1x2x128xbf16>
    %125 = vector.shape_cast %124 : vector<1x2x128xbf16> to vector<2x128xbf16>
    %cst_84 = arith.constant dense<0.000000e+00> : vector<2x32xf32>
    %126 = tpu.matmul %125, %18, %cst_84 {dimension_numbers = #tpu.dot_dimension_numbers<[1], [0], [0], [1], [0, 0, 1, 1], [], []>} : vector<2x128xbf16>, vector<128x32xbf16>, vector<2x32xf32> -> vector<2x32xf32>
    %127 = arith.mulf %126, %17 : vector<2x32xf32>
    %128 = arith.truncf %127 : vector<2x32xf32> to vector<2x32xbf16>
    %c416 = arith.constant 416 : index
    %c0_85 = arith.constant 0 : index
    %129 = vector.load %arg6[%c416, %c0_85] : memref<512x64xbf16, #tpu.memory_space<vmem>>, vector<32x64xbf16>
    %cst_86 = arith.constant dense<0.000000e+00> : vector<2x64xf32>
    %130 = tpu.matmul %128, %129, %cst_86 {dimension_numbers = #tpu.dot_dimension_numbers<[1], [0], [0], [1], [0, 0, 1, 1], [], []>} : vector<2x32xbf16>, vector<32x64xbf16>, vector<2x64xf32> -> vector<2x64xf32>
    %131 = arith.addf %123, %130 : vector<2x64xf32>
    %c14 = arith.constant 14 : index
    %c0_87 = arith.constant 0 : index
    %c0_88 = arith.constant 0 : index
    %132 = vector.load %arg4[%c14, %c0_87, %c0_88] : memref<16x2x128xbf16, #tpu.memory_space<vmem>>, vector<1x2x128xbf16>
    %133 = vector.shape_cast %132 : vector<1x2x128xbf16> to vector<2x128xbf16>
    %cst_89 = arith.constant dense<0.000000e+00> : vector<2x32xf32>
    %134 = tpu.matmul %133, %18, %cst_89 {dimension_numbers = #tpu.dot_dimension_numbers<[1], [0], [0], [1], [0, 0, 1, 1], [], []>} : vector<2x128xbf16>, vector<128x32xbf16>, vector<2x32xf32> -> vector<2x32xf32>
    %135 = arith.mulf %134, %17 : vector<2x32xf32>
    %136 = arith.truncf %135 : vector<2x32xf32> to vector<2x32xbf16>
    %c448 = arith.constant 448 : index
    %c0_90 = arith.constant 0 : index
    %137 = vector.load %arg6[%c448, %c0_90] : memref<512x64xbf16, #tpu.memory_space<vmem>>, vector<32x64xbf16>
    %cst_91 = arith.constant dense<0.000000e+00> : vector<2x64xf32>
    %138 = tpu.matmul %136, %137, %cst_91 {dimension_numbers = #tpu.dot_dimension_numbers<[1], [0], [0], [1], [0, 0, 1, 1], [], []>} : vector<2x32xbf16>, vector<32x64xbf16>, vector<2x64xf32> -> vector<2x64xf32>
    %139 = arith.addf %131, %138 : vector<2x64xf32>
    %c15 = arith.constant 15 : index
    %c0_92 = arith.constant 0 : index
    %c0_93 = arith.constant 0 : index
    %140 = vector.load %arg4[%c15, %c0_92, %c0_93] : memref<16x2x128xbf16, #tpu.memory_space<vmem>>, vector<1x2x128xbf16>
    %141 = vector.shape_cast %140 : vector<1x2x128xbf16> to vector<2x128xbf16>
    %cst_94 = arith.constant dense<0.000000e+00> : vector<2x32xf32>
    %142 = tpu.matmul %141, %18, %cst_94 {dimension_numbers = #tpu.dot_dimension_numbers<[1], [0], [0], [1], [0, 0, 1, 1], [], []>} : vector<2x128xbf16>, vector<128x32xbf16>, vector<2x32xf32> -> vector<2x32xf32>
    %143 = arith.mulf %142, %17 : vector<2x32xf32>
    %144 = arith.truncf %143 : vector<2x32xf32> to vector<2x32xbf16>
    %c480 = arith.constant 480 : index
    %c0_95 = arith.constant 0 : index
    %145 = vector.load %arg6[%c480, %c0_95] : memref<512x64xbf16, #tpu.memory_space<vmem>>, vector<32x64xbf16>
    %cst_96 = arith.constant dense<0.000000e+00> : vector<2x64xf32>
    %146 = tpu.matmul %144, %145, %cst_96 {dimension_numbers = #tpu.dot_dimension_numbers<[1], [0], [0], [1], [0, 0, 1, 1], [], []>} : vector<2x32xbf16>, vector<32x64xbf16>, vector<2x64xf32> -> vector<2x64xf32>
    %147 = arith.addf %139, %146 : vector<2x64xf32>
    %c0_97 = arith.constant 0 : index
    %c0_98 = arith.constant 0 : index
    %148 = vector.load %arg7[%c0_97, %c0_98] : memref<1x64xf32, #tpu.memory_space<vmem>>, vector<1x64xf32>
    %149 = vector.broadcast %148 : vector<1x64xf32> to vector<2x64xf32>
    %150 = arith.addf %147, %149 : vector<2x64xf32>
    %cst_99 = arith.constant 0.000000e+00 : f32
    %151 = vector.broadcast %cst_99 : f32 to vector<2x64xf32>
    %152 = arith.maximumf %150, %151 : vector<2x64xf32>
    %153 = arith.truncf %152 : vector<2x64xf32> to vector<2x64xbf16>
    %c0_100 = arith.constant 0 : index
    %c0_101 = arith.constant 0 : index
    %154 = vector.load %arg8[%c0_100, %c0_101] : memref<64x64xbf16, #tpu.memory_space<vmem>>, vector<64x64xbf16>
    %cst_102 = arith.constant dense<0.000000e+00> : vector<2x64xf32>
    %155 = tpu.matmul %153, %154, %cst_102 {dimension_numbers = #tpu.dot_dimension_numbers<[1], [0], [0], [1], [0, 0, 1, 1], [], []>} : vector<2x64xbf16>, vector<64x64xbf16>, vector<2x64xf32> -> vector<2x64xf32>
    %c0_103 = arith.constant 0 : index
    %c0_104 = arith.constant 0 : index
    %156 = vector.load %arg9[%c0_103, %c0_104] : memref<1x64xf32, #tpu.memory_space<vmem>>, vector<1x64xf32>
    %157 = vector.broadcast %156 : vector<1x64xf32> to vector<2x64xf32>
    %158 = arith.addf %155, %157 : vector<2x64xf32>
    %cst_105 = arith.constant 0.000000e+00 : f32
    %159 = vector.broadcast %cst_105 : f32 to vector<2x64xf32>
    %160 = arith.maximumf %158, %159 : vector<2x64xf32>
    %161 = arith.truncf %160 : vector<2x64xf32> to vector<2x64xbf16>
    %c0_106 = arith.constant 0 : index
    %c0_107 = arith.constant 0 : index
    %162 = vector.load %arg10[%c0_106, %c0_107] : memref<64x10xbf16, #tpu.memory_space<vmem>>, vector<64x10xbf16>
    %cst_108 = arith.constant dense<0.000000e+00> : vector<2x10xf32>
    %163 = tpu.matmul %161, %162, %cst_108 {dimension_numbers = #tpu.dot_dimension_numbers<[1], [0], [0], [1], [0, 0, 1, 1], [], []>} : vector<2x64xbf16>, vector<64x10xbf16>, vector<2x10xf32> -> vector<2x10xf32>
    %c0_109 = arith.constant 0 : index
    %c0_110 = arith.constant 0 : index
    %164 = vector.load %arg11[%c0_109, %c0_110] : memref<1x10xf32, #tpu.memory_space<vmem>>, vector<1x10xf32>
    %165 = vector.broadcast %164 : vector<1x10xf32> to vector<2x10xf32>
    %166 = arith.addf %163, %165 : vector<2x10xf32>
    %167 = vector.extract_strided_slice %166 {offsets = [0, 0], sizes = [2, 2], strides = [1, 1]} : vector<2x10xf32> to vector<2x2xf32>
    %cst_111 = arith.constant dense<0xFF800000> : vector<2xf32>
    %168 = vector.multi_reduction <maximumf>, %167, %cst_111 [1] : vector<2x2xf32> to vector<2xf32>
    %169 = vector.shape_cast %168 : vector<2xf32> to vector<2x1xf32>
    %170 = vector.broadcast %169 : vector<2x1xf32> to vector<2x2xf32>
    %171 = arith.subf %167, %170 : vector<2x2xf32>
    %172 = math.exp %171 : vector<2x2xf32>
    %cst_112 = arith.constant dense<0.000000e+00> : vector<2xf32>
    %173 = vector.multi_reduction <add>, %172, %cst_112 [1] : vector<2x2xf32> to vector<2xf32>
    %174 = vector.shape_cast %173 : vector<2xf32> to vector<2x1xf32>
    %175 = vector.broadcast %174 : vector<2x1xf32> to vector<2x2xf32>
    %176 = arith.divf %172, %175 : vector<2x2xf32>
    %177 = vector.extract_strided_slice %166 {offsets = [0, 2], sizes = [2, 8], strides = [1, 1]} : vector<2x10xf32> to vector<2x8xf32>
    %c0_113 = arith.constant 0 : index
    %c0_114 = arith.constant 0 : index
    %178 = vector.load %arg5[%c0_113, %c0_114] : memref<8x2xf32, #tpu.memory_space<vmem>>, vector<8x2xf32>
    %cst_115 = arith.constant dense<0.000000e+00> : vector<8x2xf32>
    %179 = tpu.matmul %178, %176, %cst_115 {dimension_numbers = #tpu.dot_dimension_numbers<[1], [0], [0], [1], [0, 0, 1, 1], [], []>} : vector<8x2xf32>, vector<2x2xf32>, vector<8x2xf32> -> vector<8x2xf32>
    %c0_116 = arith.constant 0 : index
    %c0_117 = arith.constant 0 : index
    %180 = vector.load %arg14[%c0_116, %c0_117] : memref<8x2xf32, #tpu.memory_space<vmem>>, vector<8x2xf32>
    tpu.vector_store %arg14[%c0_116, %c0_117], %179 {strides = array<i32>} : memref<8x2xf32, #tpu.memory_space<vmem>>, vector<8x2xf32>,
    %c0_118 = arith.constant 0 : index
    %c0_119 = arith.constant 0 : index
    %181 = vector.load %arg5[%c0_118, %c0_119] : memref<8x2xf32, #tpu.memory_space<vmem>>, vector<8x2xf32>
    %cst_120 = arith.constant dense<0.000000e+00> : vector<8x8xf32>
    %182 = tpu.matmul %181, %177, %cst_120 {dimension_numbers = #tpu.dot_dimension_numbers<[1], [0], [0], [1], [0, 0, 1, 1], [], []>} : vector<8x2xf32>, vector<2x8xf32>, vector<8x8xf32> -> vector<8x8xf32>
    %c0_121 = arith.constant 0 : index
    %c0_122 = arith.constant 0 : index
    %183 = vector.load %arg15[%c0_121, %c0_122] : memref<8x8xf32, #tpu.memory_space<vmem>>, vector<8x8xf32>
    tpu.vector_store %arg15[%c0_121, %c0_122], %182 {strides = array<i32>} : memref<8x8xf32, #tpu.memory_space<vmem>>, vector<8x8xf32>,
    return
  }
}

</mosaic_0001>

<llo_original>
// kernel: generalized_rcnn_forward.2
$region0: #{generalized_rcnn_forward.2}
  #allocation0 [shape = 'u32[]', space=smem, size = 0x4, offset = 0x4, fixed_abs, tag = 'smem constant byte address 0x4 - core index']
  #allocation1 [shape = 'u32[144,128]{1,0:T(1,128)}', space=vmem, size = 0x12000, scoped, tag = 'internal scratch']
  %s0 = inlined_call_operand.vmem [shape: bf16[768,27], index: 0, kind: input, shape index: {}]
  %s1 = inlined_call_operand.vmem [shape: bf16[27,16], index: 1, kind: input, shape index: {}]
  %s2 = inlined_call_operand.vmem [shape: f32[1,16], index: 2, kind: input, shape index: {}]
  %s3 = inlined_call_operand.vmem [shape: bf16[768,16], index: 3, kind: output, shape index: {}]
  %s4 = sld [smem:[#allocation0]]
  $region22: #{generalized_rcnn_forward.2} parent=0
    _
  %s6 = ssub.s32 1, %s4
  %s7 = scalar_select 0, %s6, %s4
  // Predicated region
  $region2: #{generalized_rcnn_forward.2} parent=0 // pred_check
    _
  $region3: #{generalized_rcnn_forward.2} parent=0 // pred_check_branch
    %9 = sbr.rel (0) target = $region5
  $region4: #{generalized_rcnn_forward.2} parent=0 // pred_region
    _
  $region5: #{generalized_rcnn_forward.2} parent=0 // pred_fallthru
    _
  // Predicated region
  $region6: #{generalized_rcnn_forward.2} parent=0 // pred_check
    _
  $region7: #{generalized_rcnn_forward.2} parent=0 // pred_check_branch
    %11 = sbr.rel (0) target = $region9
  $region8: #{generalized_rcnn_forward.2} parent=0 // pred_region
    _
  $region9: #{generalized_rcnn_forward.2} parent=0 // pred_fallthru
    _
  // Predicated region
  $region10: #{generalized_rcnn_forward.2} parent=0 // pred_check
    _
  $region11: #{generalized_rcnn_forward.2} parent=0 // pred_check_branch
    %13 = sbr.rel (0) target = $region13
  $region12: #{generalized_rcnn_forward.2} parent=0 // pred_region
    _
  $region13: #{generalized_rcnn_forward.2} parent=0 // pred_fallthru
    _
  %v15 = vld [vmem:[%s0] sm:$0xf]
  %v16 = vld [vmem:[%s0 + $0x4] sm:$0xf]
  %v17 = vld [vmem:[%s0 + $0x8] sm:$0xf]
  %v18 = vld [vmem:[%s0 + $0xc] sm:$0xf]
  %v19 = vld [vmem:[%s0 + $0x10] sm:$0xf]
  %v20 = vld [vmem:[%s0 + $0x14] sm:$0xf]
  %v21 = vld [vmem:[%s0 + $0x18] sm:$0xf]
  %v22 = vld [vmem:[%s0 + $0x1c] sm:$0xf]
  %v23 = vld [vmem:[%s0 + $0x20] sm:$0xf]
  %v24 = vld [vmem:[%s0 + $0x24] sm:$0xf]
  %v25 = vld [vmem:[%s0 + $0x28] sm:$0xf]
  %v26 = vld [vmem:[%s0 + $0x2c] sm:$0xf]
  %v27 = vld [vmem:[%s0 + $0x30] sm:$0xf]
  %v28 = vld [vmem:[%s0 + $0x34] sm:$0xf]
  %v29 = vld [vmem:[%s0 + $0x38] sm:$0xf]
  %v30 = vld [vmem:[%s0 + $0x3c] sm:$0xf]
  %v31 = vld [vmem:[%s0 + $0x40] sm:$0xf]
  %v32 = vld [vmem:[%s0 + $0x44] sm:$0xf]
  %v33 = vld [vmem:[%s0 + $0x48] sm:$0xf]
  %v34 = vld [vmem:[%s0 + $0x4c] sm:$0xf]
  %v35 = vld [vmem:[%s0 + $0x50] sm:$0xf]
  %v36 = vld [vmem:[%s0 + $0x54] sm:$0xf]
  %v37 = vld [vmem:[%s0 + $0x58] sm:$0xf]
  %v38 = vld [vmem:[%s0 + $0x5c] sm:$0xf]
  %v39 = vld [vmem:[%s0 + $0x60] sm:$0xf]
  %v40 = vld [vmem:[%s0 + $0x64] sm:$0xf]
  %v41 = vld [vmem:[%s0 + $0x68] sm:$0xf]
  %v42 = vld [vmem:[%s0 + $0x6c] sm:$0xf]
  %v43 = vld [vmem:[%s0 + $0x70] sm:$0xf]
  %v44 = vld [vmem:[%s0 + $0x74] sm:$0xf]
  %v45 = vld [vmem:[%s0 + $0x78] sm:$0xf]
  %v46 = vld [vmem:[%s0 + $0x7c] sm:$0xf]
  %v47 = vld [vmem:[%s0 + $0x80] sm:$0xf]
  %v48 = vld [vmem:[%s0 + $0x84] sm:$0xf]
  %v49 = vld [vmem:[%s0 + $0x88] sm:$0xf]
  %v50 = vld [vmem:[%s0 + $0x8c] sm:$0xf]
  %v51 = vld [vmem:[%s0 + $0x90] sm:$0xf]
  %v52 = vld [vmem:[%s0 + $0x94] sm:$0xf]
  %v53 = vld [vmem:[%s0 + $0x98] sm:$0xf]
  %v54 = vld [vmem:[%s0 + $0x9c] sm:$0xf]
  %v55 = vld [vmem:[%s0 + $0xa0] sm:$0xf]
  %v56 = vld [vmem:[%s0 + $0xa4] sm:$0xf]
  %v57 = vld [vmem:[%s0 + $0xa8] sm:$0xf]
  %v58 = vld [vmem:[%s0 + $0xac] sm:$0xf]
  %v59 = vld [vmem:[%s0 + $0xb0] sm:$0xf]
  %v60 = vld [vmem:[%s0 + $0xb4] sm:$0xf]
  %v61 = vld [vmem:[%s0 + $0xb8] sm:$0xf]
  %v62 = vld [vmem:[%s0 + $0xbc] sm:$0xf]
  %v63 = vld [vmem:[%s0 + $0xc0] sm:$0xf]
  %v64 = vld [vmem:[%s0 + $0xc4] sm:$0xf]
  %v65 = vld [vmem:[%s0 + $0xc8] sm:$0xf]
  %v66 = vld [vmem:[%s0 + $0xcc] sm:$0xf]
  %v67 = vld [vmem:[%s0 + $0xd0] sm:$0xf]
  %v68 = vld [vmem:[%s0 + $0xd4] sm:$0xf]
  %v69 = vld [vmem:[%s0 + $0xd8] sm:$0xf]
  %v70 = vld [vmem:[%s0 + $0xdc] sm:$0xf]
  %v71 = vld [vmem:[%s0 + $0xe0] sm:$0xf]
  %v72 = vld [vmem:[%s0 + $0xe4] sm:$0xf]
  %v73 = vld [vmem:[%s0 + $0xe8] sm:$0xf]
  %v74 = vld [vmem:[%s0 + $0xec] sm:$0xf]
  %v75 = vld [vmem:[%s0 + $0xf0] sm:$0xf]
  %v76 = vld [vmem:[%s0 + $0xf4] sm:$0xf]
  %v77 = vld [vmem:[%s0 + $0xf8] sm:$0xf]
  %v78 = vld [vmem:[%s0 + $0xfc] sm:$0xf]
  %v79 = vld [vmem:[%s0 + $0x100] sm:$0xf]
  %v80 = vld [vmem:[%s0 + $0x104] sm:$0xf]
  %v81 = vld [vmem:[%s0 + $0x108] sm:$0xf]
  %v82 = vld [vmem:[%s0 + $0x10c] sm:$0xf]
  %v83 = vld [vmem:[%s0 + $0x110] sm:$0xf]
  %v84 = vld [vmem:[%s0 + $0x114] sm:$0xf]
  %v85 = vld [vmem:[%s0 + $0x118] sm:$0xf]
  %v86 = vld [vmem:[%s0 + $0x11c] sm:$0xf]
  %v87 = vld [vmem:[%s0 + $0x120] sm:$0xf]
  %v88 = vld [vmem:[%s0 + $0x124] sm:$0xf]
  %v89 = vld [vmem:[%s0 + $0x128] sm:$0xf]
  %v90 = vld [vmem:[%s0 + $0x12c] sm:$0xf]
  %v91 = vld [vmem:[%s0 + $0x130] sm:$0xf]
  %v92 = vld [vmem:[%s0 + $0x134] sm:$0xf]
  %v93 = vld [vmem:[%s0 + $0x138] sm:$0xf]
  %v94 = vld [vmem:[%s0 + $0x13c] sm:$0xf]
  %v95 = vld [vmem:[%s0 + $0x140] sm:$0xf]
  %v96 = vld [vmem:[%s0 + $0x144] sm:$0xf]
  %v97 = vld [vmem:[%s0 + $0x148] sm:$0xf]
  %v98 = vld [vmem:[%s0 + $0x14c] sm:$0xf]
  %v99 = vld [vmem:[%s0 + $0x150] sm:$0xf]
  %v100 = vld [vmem:[%s0 + $0x154] sm:$0xf]
  %v101 = vld [vmem:[%s0 + $0x158] sm:$0xf]
  %v102 = vld [vmem:[%s0 + $0x15c] sm:$0xf]
  %v103 = vld [vmem:[%s0 + $0x160] sm:$0xf]
  %v104 = vld [vmem:[%s0 + $0x164] sm:$0xf]
  %v105 = vld [vmem:[%s0 + $0x168] sm:$0xf]
  %v106 = vld [vmem:[%s0 + $0x16c] sm:$0xf]
  %v107 = vld [vmem:[%s0 + $0x170] sm:$0xf]
  %v108 = vld [vmem:[%s0 + $0x174] sm:$0xf]
  %v109 = vld [vmem:[%s0 + $0x178] sm:$0xf]
  %v110 = vld [vmem:[%s0 + $0x17c] sm:$0xf]
  %v111 = vld [vmem:[%s1] sm:$0xf]
  %v112 = vld [vmem:[%s1 + $0x4] sm:$0xf]
  %v113 = vld [vmem:[%s1 + $0x8] sm:$0xf]
  %v114 = vld [vmem:[%s1 + $0xc] sm:$0x3]
  %v115 = vld [vmem:[%s2] sm:$0x1]
  %v117 = vlaneseq
  %v118 = vshrl.u32 %v117, 7
  %v119 = vsub.s32 0, %v118
  %v120 = vrot.slane %v115, %v119
  %v218 = vunpack.c.l.b16 %v15
  %v219 = vunpack.c.l.b16 %v16
  %v220 = vunpack.c.l.b16 %v17
  %v221 = vunpack.c.l.b16 %v18
  %v222 = vunpack.c.l.b16 %v19
  %v223 = vunpack.c.l.b16 %v20
  %v224 = vunpack.c.l.b16 %v21
  %v225 = vunpack.c.l.b16 %v22
  %v226 = vunpack.c.l.b16 %v23
  %v227 = vunpack.c.l.b16 %v24
  %v228 = vunpack.c.l.b16 %v25
  %v229 = vunpack.c.l.b16 %v26
  %v230 = vunpack.c.l.b16 %v27
  %v231 = vunpack.c.l.b16 %v28
  %v232 = vunpack.c.l.b16 %v29
  %v233 = vunpack.c.l.b16 %v30
  %v234 = vunpack.c.l.b16 %v31
  %v235 = vunpack.c.l.b16 %v32
  %v236 = vunpack.c.l.b16 %v33
  %v237 = vunpack.c.l.b16 %v34
  %v238 = vunpack.c.l.b16 %v35
  %v239 = vunpack.c.l.b16 %v36
  %v240 = vunpack.c.l.b16 %v37
  %v241 = vunpack.c.l.b16 %v38
  %v242 = vunpack.c.l.b16 %v39
  %v243 = vunpack.c.l.b16 %v40
  %v244 = vunpack.c.l.b16 %v41
  %v245 = vunpack.c.l.b16 %v42
  %v246 = vunpack.c.l.b16 %v43
  %v247 = vunpack.c.l.b16 %v44
  %v248 = vunpack.c.l.b16 %v45
  %v249 = vunpack.c.l.b16 %v46
  %v250 = vunpack.c.l.b16 %v47
  %v251 = vunpack.c.l.b16 %v48
  %v252 = vunpack.c.l.b16 %v49
  %v253 = vunpack.c.l.b16 %v50
  %v254 = vunpack.c.l.b16 %v51
  %v255 = vunpack.c.l.b16 %v52
  %v256 = vunpack.c.l.b16 %v53
  %v257 = vunpack.c.l.b16 %v54
  %v258 = vunpack.c.l.b16 %v55
  %v259 = vunpack.c.l.b16 %v56
  %v260 = vunpack.c.l.b16 %v57
  %v261 = vunpack.c.l.b16 %v58
  %v262 = vunpack.c.l.b16 %v59
  %v263 = vunpack.c.l.b16 %v60
  %v264 = vunpack.c.l.b16 %v61
  %v265 = vunpack.c.l.b16 %v62
  %v266 = vunpack.c.l.b16 %v63
  %v267 = vunpack.c.l.b16 %v64
  %v268 = vunpack.c.l.b16 %v65
  %v269 = vunpack.c.l.b16 %v66
  %v270 = vunpack.c.l.b16 %v67
  %v271 = vunpack.c.l.b16 %v68
  %v272 = vunpack.c.l.b16 %v69
  %v273 = vunpack.c.l.b16 %v70
  %v274 = vunpack.c.l.b16 %v71
  %v275 = vunpack.c.l.b16 %v72
  %v276 = vunpack.c.l.b16 %v73
  %v277 = vunpack.c.l.b16 %v74
  %v278 = vunpack.c.l.b16 %v75
  %v279 = vunpack.c.l.b16 %v76
  %v280 = vunpack.c.l.b16 %v77
  %v281 = vunpack.c.l.b16 %v78
  %v282 = vunpack.c.l.b16 %v79
  %v283 = vunpack.c.l.b16 %v80
  %v284 = vunpack.c.l.b16 %v81
  %v285 = vunpack.c.l.b16 %v82
  %v286 = vunpack.c.l.b16 %v83
  %v287 = vunpack.c.l.b16 %v84
  %v288 = vunpack.c.l.b16 %v85
  %v289 = vunpack.c.l.b16 %v86
  %v290 = vunpack.c.l.b16 %v87
  %v291 = vunpack.c.l.b16 %v88
  %v292 = vunpack.c.l.b16 %v89
  %v293 = vunpack.c.l.b16 %v90
  %v294 = vunpack.c.l.b16 %v91
  %v295 = vunpack.c.l.b16 %v92
  %v296 = vunpack.c.l.b16 %v93
  %v297 = vunpack.c.l.b16 %v94
  %v298 = vunpack.c.l.b16 %v95
  %v299 = vunpack.c.l.b16 %v96
  %v300 = vunpack.c.l.b16 %v97
  %v301 = vunpack.c.l.b16 %v98
  %v302 = vunpack.c.l.b16 %v99
  %v303 = vunpack.c.l.b16 %v100
  %v304 = vunpack.c.l.b16 %v101
  %v305 = vunpack.c.l.b16 %v102
  %v306 = vunpack.c.l.b16 %v103
  %v307 = vunpack.c.l.b16 %v104
  %v308 = vunpack.c.l.b16 %v105
  %v309 = vunpack.c.l.b16 %v106
  %v310 = vunpack.c.l.b16 %v107
  %v311 = vunpack.c.l.b16 %v108
  %v312 = vunpack.c.l.b16 %v109
  %v313 = vunpack.c.l.b16 %v110
  %v314 = vpack.c.b16 %v219, %v218
  %v315 = vpack.c.b16 %v221, %v220
  %v316 = vpack.c.b16 %v223, %v222
  %v317 = vpack.c.b16 %v225, %v224
  %v318 = vpack.c.b16 %v227, %v226
  %v319 = vpack.c.b16 %v229, %v228
  %v320 = vpack.c.b16 %v231, %v230
  %v321 = vpack.c.b16 %v233, %v232
  %v322 = vpack.c.b16 %v235, %v234
  %v323 = vpack.c.b16 %v237, %v236
  %v324 = vpack.c.b16 %v239, %v238
  %v325 = vpack.c.b16 %v241, %v240
  %v326 = vpack.c.b16 %v243, %v242
  %v327 = vpack.c.b16 %v245, %v244
  %v328 = vpack.c.b16 %v247, %v246
  %v329 = vpack.c.b16 %v249, %v248
  %v330 = vpack.c.b16 %v251, %v250
  %v331 = vpack.c.b16 %v253, %v252
  %v332 = vpack.c.b16 %v255, %v254
  %v333 = vpack.c.b16 %v257, %v256
  %v334 = vpack.c.b16 %v259, %v258
  %v335 = vpack.c.b16 %v261, %v260
  %v336 = vpack.c.b16 %v263, %v262
  %v337 = vpack.c.b16 %v265, %v264
  %v338 = vpack.c.b16 %v267, %v266
  %v339 = vpack.c.b16 %v269, %v268
  %v340 = vpack.c.b16 %v271, %v270
  %v341 = vpack.c.b16 %v273, %v272
  %v342 = vpack.c.b16 %v275, %v274
  %v343 = vpack.c.b16 %v277, %v276
  %v344 = vpack.c.b16 %v279, %v278
  %v345 = vpack.c.b16 %v281, %v280
  %v346 = vpack.c.b16 %v283, %v282
  %v347 = vpack.c.b16 %v285, %v284
  %v348 = vpack.c.b16 %v287, %v286
  %v349 = vpack.c.b16 %v289, %v288
  %v350 = vpack.c.b16 %v291, %v290
  %v351 = vpack.c.b16 %v293, %v292
  %v352 = vpack.c.b16 %v295, %v294
  %v353 = vpack.c.b16 %v297, %v296
  %v354 = vpack.c.b16 %v299, %v298
  %v355 = vpack.c.b16 %v301, %v300
  %v356 = vpack.c.b16 %v303, %v302
  %v357 = vpack.c.b16 %v305, %v304
  %v358 = vpack.c.b16 %v307, %v306
  %v359 = vpack.c.b16 %v309, %v308
  %v360 = vpack.c.b16 %v311, %v310
  %v361 = vpack.c.b16 %v313, %v312
  %v366 = vunpack.c.l.b16 %v111
  %v367 = vunpack.c.l.b16 %v112
  %v368 = vunpack.c.l.b16 %v113
  %v369 = vunpack.c.l.b16 %v114
  %v370 = vpack.c.b16 %v367, %v366
  %v371 = vpack.c.b16 %v369, %v368
  %vm373 = vcmask 220160
  %v375 = vsel %vm373, %v314, 0
  %v378 = vsel %vm373, %v315, 0
  %v381 = vsel %vm373, %v316, 0
  %v384 = vsel %vm373, %v317, 0
  %v387 = vsel %vm373, %v318, 0
  %v390 = vsel %vm373, %v319, 0
  %v393 = vsel %vm373, %v320, 0
  %v396 = vsel %vm373, %v321, 0
  %v399 = vsel %vm373, %v322, 0
  %v402 = vsel %vm373, %v323, 0
  %v405 = vsel %vm373, %v324, 0
  %v408 = vsel %vm373, %v325, 0
  %v411 = vsel %vm373, %v326, 0
  %v414 = vsel %vm373, %v327, 0
  %v417 = vsel %vm373, %v328, 0
  %v420 = vsel %vm373, %v329, 0
  %v423 = vsel %vm373, %v330, 0
  %v426 = vsel %vm373, %v331, 0
  %v429 = vsel %vm373, %v332, 0
  %v432 = vsel %vm373, %v333, 0
  %v435 = vsel %vm373, %v334, 0
  %v438 = vsel %vm373, %v335, 0
  %v441 = vsel %vm373, %v336, 0
  %v444 = vsel %vm373, %v337, 0
  %v447 = vsel %vm373, %v338, 0
  %v450 = vsel %vm373, %v339, 0
  %v453 = vsel %vm373, %v340, 0
  %v456 = vsel %vm373, %v341, 0
  %v459 = vsel %vm373, %v342, 0
  %v462 = vsel %vm373, %v343, 0
  %v465 = vsel %vm373, %v344, 0
  %v468 = vsel %vm373, %v345, 0
  %v471 = vsel %vm373, %v346, 0
  %v474 = vsel %vm373, %v347, 0
  %v477 = vsel %vm373, %v348, 0
  %v480 = vsel %vm373, %v349, 0
  %v483 = vsel %vm373, %v350, 0
  %v486 = vsel %vm373, %v351, 0
  %v489 = vsel %vm373, %v352, 0
  %v492 = vsel %vm373, %v353, 0
  %v495 = vsel %vm373, %v354, 0
  %v498 = vsel %vm373, %v355, 0
  %v501 = vsel %vm373, %v356, 0
  %v504 = vsel %vm373, %v357, 0
  %v507 = vsel %vm373, %v358, 0
  %v510 = vsel %vm373, %v359, 0
  %v513 = vsel %vm373, %v360, 0
  %v516 = vsel %vm373, %v361, 0
  %vm518 = vcmask 1044480
  %vm519 = vcmask 1045504
  %v520 = vsel %vm518, 4294967295, 65535
  %v521 = vsel %vm519, %v520, 0
  %v523 = vand.u32 %v371, %v521
  %525 = vmatprep.subr.bf16.mxu0 0
  %526 = vmatpush1.bf16.msra.mxu0 %v370
  %527 = vmatprep.subr.bf16.mxu0 0
  %528 = vmatpush1.bf16.msra.mxu0 %v523
  %529 = vmatprep.subr.bf16.mxu0 0
  %530 = vmatpush1.bf16.msra.mxu0 0
  %531 = vmatprep.subr.bf16.mxu0 0
  %532 = vmatpush1.bf16.msra.mxu0 0
  %533 = vmatprep.subr.bf16.mxu0 0
  %534 = vmatpush1.bf16.msra.mxu0 0
  %535 = vmatprep.subr.bf16.mxu0 0
  %536 = vmatpush1.bf16.msra.mxu0 0
  %537 = vmatprep.subr.bf16.mxu0 0
  %538 = vmatpush1.bf16.msra.mxu0 0
  %539 = vmatprep.subr.bf16.mxu0 0
  %540 = vmatpush1.bf16.msra.mxu0 0
  %541 = vmatprep.subr.bf16.mxu0 0
  %542 = vmatpush1.bf16.msra.mxu0 0
  %543 = vmatprep.subr.bf16.mxu0 0
  %544 = vmatpush1.bf16.msra.mxu0 0
  %545 = vmatprep.subr.bf16.mxu0 0
  %546 = vmatpush1.bf16.msra.mxu0 0
  %547 = vmatprep.subr.bf16.mxu0 0
  %548 = vmatpush1.bf16.msra.mxu0 0
  %549 = vmatprep.subr.bf16.mxu0 0
  %550 = vmatpush1.bf16.msra.mxu0 0
  %551 = vmatprep.subr.bf16.mxu0 0
  %552 = vmatpush1.bf16.msra.mxu0 0
  %553 = vmatprep.subr.bf16.mxu0 0
  %554 = vmatpush1.bf16.msra.mxu0 0
  %555 = vmatprep.subr.bf16.mxu0 0
  %556 = vmatpush1.bf16.msra.mxu0 0
  %557 = vmatprep.mubr.bf16.mxu0 0
  %558 = vmatmul.mubr.bf16.gmra.mrb[0].mxu0 %v375
  %v559 = vpop.f32.mrb[0].mxu0
  %v560 = vadd.f32 %v120, %v559
  %v561 = vpop.f32.mrb[0].mxu0
  %v562 = vpop.f32.mrb[0].mxu0
  %v563 = vadd.f32 %v120, %v562
  %v564 = vpop.f32.mrb[0].mxu0
  %565 = vmatprep.mubr.bf16.mxu0 0
  %566 = vmatmul.mubr.bf16.gmra.mrb[0].mxu0 %v378
  %v567 = vpop.f32.mrb[0].mxu0
  %v568 = vadd.f32 %v120, %v567
  %v569 = vpop.f32.mrb[0].mxu0
  %v570 = vpop.f32.mrb[0].mxu0
  %v571 = vadd.f32 %v120, %v570
  %v572 = vpop.f32.mrb[0].mxu0
  %573 = vmatprep.mubr.bf16.mxu0 0
  %574 = vmatmul.mubr.bf16.gmra.mrb[0].mxu0 %v381
  %v575 = vpop.f32.mrb[0].mxu0
  %v576 = vadd.f32 %v120, %v575
  %v577 = vpop.f32.mrb[0].mxu0
  %v578 = vpop.f32.mrb[0].mxu0
  %v579 = vadd.f32 %v120, %v578
  %v580 = vpop.f32.mrb[0].mxu0
  %581 = vmatprep.mubr.bf16.mxu0 0
  %582 = vmatmul.mubr.bf16.gmra.mrb[0].mxu0 %v384
  %v583 = vpop.f32.mrb[0].mxu0
  %v584 = vadd.f32 %v120, %v583
  %v585 = vpop.f32.mrb[0].mxu0
  %v586 = vpop.f32.mrb[0].mxu0
  %v587 = vadd.f32 %v120, %v586
  %v588 = vpop.f32.mrb[0].mxu0
  %589 = vmatprep.mubr.bf16.mxu0 0
  %590 = vmatmul.mubr.bf16.gmra.mrb[0].mxu0 %v387
  %v591 = vpop.f32.mrb[0].mxu0
  %v592 = vadd.f32 %v120, %v591
  %v593 = vpop.f32.mrb[0].mxu0
  %v594 = vpop.f32.mrb[0].mxu0
  %v595 = vadd.f32 %v120, %v594
  %v596 = vpop.f32.mrb[0].mxu0
  %597 = vmatprep.mubr.bf16.mxu0 0
  %598 = vmatmul.mubr.bf16.gmra.mrb[0].mxu0 %v390
  %v599 = vpop.f32.mrb[0].mxu0
  %v600 = vadd.f32 %v120, %v599
  %v601 = vpop.f32.mrb[0].mxu0
  %v602 = vpop.f32.mrb[0].mxu0
  %v603 = vadd.f32 %v120, %v602
  %v604 = vpop.f32.mrb[0].mxu0
  %605 = vmatprep.mubr.bf16.mxu0 0
  %606 = vmatmul.mubr.bf16.gmra.mrb[0].mxu0 %v393
  %v607 = vpop.f32.mrb[0].mxu0
  %v608 = vadd.f32 %v120, %v607
  %v609 = vpop.f32.mrb[0].mxu0
  %v610 = vpop.f32.mrb[0].mxu0
  %v611 = vadd.f32 %v120, %v610
  %v612 = vpop.f32.mrb[0].mxu0
  %613 = vmatprep.mubr.bf16.mxu0 0
  %614 = vmatmul.mubr.bf16.gmra.mrb[0].mxu0 %v396
  %v615 = vpop.f32.mrb[0].mxu0
  %v616 = vadd.f32 %v120, %v615
  %v617 = vpop.f32.mrb[0].mxu0
  %v618 = vpop.f32.mrb[0].mxu0
  %v619 = vadd.f32 %v120, %v618
  %v620 = vpop.f32.mrb[0].mxu0
  %621 = vmatprep.mubr.bf16.mxu0 0
  %622 = vmatmul.mubr.bf16.gmra.mrb[0].mxu0 %v399
  %v623 = vpop.f32.mrb[0].mxu0
  %v624 = vadd.f32 %v120, %v623
  %v625 = vpop.f32.mrb[0].mxu0
  %v626 = vpop.f32.mrb[0].mxu0
  %v627 = vadd.f32 %v120, %v626
  %v628 = vpop.f32.mrb[0].mxu0
  %629 = vmatprep.mubr.bf16.mxu0 0
  %630 = vmatmul.mubr.bf16.gmra.mrb[0].mxu0 %v402
  %v631 = vpop.f32.mrb[0].mxu0
  %v632 = vadd.f32 %v120, %v631
  %v633 = vpop.f32.mrb[0].mxu0
  %v634 = vpop.f32.mrb[0].mxu0
  %v635 = vadd.f32 %v120, %v634
  %v636 = vpop.f32.mrb[0].mxu0
  %637 = vmatprep.mubr.bf16.mxu0 0
  %638 = vmatmul.mubr.bf16.gmra.mrb[0].mxu0 %v405
  %v639 = vpop.f32.mrb[0].mxu0
  %v640 = vadd.f32 %v120, %v639
  %v641 = vpop.f32.mrb[0].mxu0
  %v642 = vpop.f32.mrb[0].mxu0
  %v643 = vadd.f32 %v120, %v642
  %v644 = vpop.f32.mrb[0].mxu0
  %645 = vmatprep.mubr.bf16.mxu0 0
  %646 = vmatmul.mubr.bf16.gmra.mrb[0].mxu0 %v408
  %v647 = vpop.f32.mrb[0].mxu0
  %v648 = vadd.f32 %v120, %v647
  %v649 = vpop.f32.mrb[0].mxu0
  %v650 = vpop.f32.mrb[0].mxu0
  %v651 = vadd.f32 %v120, %v650
  %v652 = vpop.f32.mrb[0].mxu0
  %653 = vmatprep.mubr.bf16.mxu0 0
  %654 = vmatmul.mubr.bf16.gmra.mrb[0].mxu0 %v411
  %v655 = vpop.f32.mrb[0].mxu0
  %v656 = vadd.f32 %v120, %v655
  %v657 = vpop.f32.mrb[0].mxu0
  %v658 = vpop.f32.mrb[0].mxu0
  %v659 = vadd.f32 %v120, %v658
  %v660 = vpop.f32.mrb[0].mxu0
  %661 = vmatprep.mubr.bf16.mxu0 0
  %662 = vmatmul.mubr.bf16.gmra.mrb[0].mxu0 %v414
  %v663 = vpop.f32.mrb[0].mxu0
  %v664 = vadd.f32 %v120, %v663
  %v665 = vpop.f32.mrb[0].mxu0
  %v666 = vpop.f32.mrb[0].mxu0
  %v667 = vadd.f32 %v120, %v666
  %v668 = vpop.f32.mrb[0].mxu0
  %669 = vmatprep.mubr.bf16.mxu0 0
  %670 = vmatmul.mubr.bf16.gmra.mrb[0].mxu0 %v417
  %v671 = vpop.f32.mrb[0].mxu0
  %v672 = vadd.f32 %v120, %v671
  %v673 = vpop.f32.mrb[0].mxu0
  %v674 = vpop.f32.mrb[0].mxu0
  %v675 = vadd.f32 %v120, %v674
  %v676 = vpop.f32.mrb[0].mxu0
  %677 = vmatprep.mubr.bf16.mxu0 0
  %678 = vmatmul.mubr.bf16.gmra.mrb[0].mxu0 %v420
  %v679 = vpop.f32.mrb[0].mxu0
  %v680 = vadd.f32 %v120, %v679
  %v681 = vpop.f32.mrb[0].mxu0
  %v682 = vpop.f32.mrb[0].mxu0
  %v683 = vadd.f32 %v120, %v682
  %v684 = vpop.f32.mrb[0].mxu0
  %685 = vmatprep.mubr.bf16.mxu0 0
  %686 = vmatmul.mubr.bf16.gmra.mrb[0].mxu0 %v423
  %v687 = vpop.f32.mrb[0].mxu0
  %v688 = vadd.f32 %v120, %v687
  %v689 = vpop.f32.mrb[0].mxu0
  %v690 = vpop.f32.mrb[0].mxu0
  %v691 = vadd.f32 %v120, %v690
  %v692 = vpop.f32.mrb[0].mxu0
  %693 = vmatprep.mubr.bf16.mxu0 0
  %694 = vmatmul.mubr.bf16.gmra.mrb[0].mxu0 %v426
  %v695 = vpop.f32.mrb[0].mxu0
  %v696 = vadd.f32 %v120, %v695
  %v697 = vpop.f32.mrb[0].mxu0
  %v698 = vpop.f32.mrb[0].mxu0
  %v699 = vadd.f32 %v120, %v698
  %v700 = vpop.f32.mrb[0].mxu0
  %701 = vmatprep.mubr.bf16.mxu0 0
  %702 = vmatmul.mubr.bf16.gmra.mrb[0].mxu0 %v429
  %v703 = vpop.f32.mrb[0].mxu0
  %v704 = vadd.f32 %v120, %v703
  %v705 = vpop.f32.mrb[0].mxu0
  %v706 = vpop.f32.mrb[0].mxu0
  %v707 = vadd.f32 %v120, %v706
  %v708 = vpop.f32.mrb[0].mxu0
  %709 = vmatprep.mubr.bf16.mxu0 0
  %710 = vmatmul.mubr.bf16.gmra.mrb[0].mxu0 %v432
  %v711 = vpop.f32.mrb[0].mxu0
  %v712 = vadd.f32 %v120, %v711
  %v713 = vpop.f32.mrb[0].mxu0
  %v714 = vpop.f32.mrb[0].mxu0
  %v715 = vadd.f32 %v120, %v714
  %v716 = vpop.f32.mrb[0].mxu0
  %717 = vmatprep.mubr.bf16.mxu0 0
  %718 = vmatmul.mubr.bf16.gmra.mrb[0].mxu0 %v435
  %v719 = vpop.f32.mrb[0].mxu0
  %v720 = vadd.f32 %v120, %v719
  %v721 = vpop.f32.mrb[0].mxu0
  %v722 = vpop.f32.mrb[0].mxu0
  %v723 = vadd.f32 %v120, %v722
  %v724 = vpop.f32.mrb[0].mxu0
  %725 = vmatprep.mubr.bf16.mxu0 0
  %726 = vmatmul.mubr.bf16.gmra.mrb[0].mxu0 %v438
  %v727 = vpop.f32.mrb[0].mxu0
  %v728 = vadd.f32 %v120, %v727
  %v729 = vpop.f32.mrb[0].mxu0
  %v730 = vpop.f32.mrb[0].mxu0
  %v731 = vadd.f32 %v120, %v730
  %v732 = vpop.f32.mrb[0].mxu0
  %733 = vmatprep.mubr.bf16.mxu0 0
  %734 = vmatmul.mubr.bf16.gmra.mrb[0].mxu0 %v441
  %v735 = vpop.f32.mrb[0].mxu0
  %v736 = vadd.f32 %v120, %v735
  %v737 = vpop.f32.mrb[0].mxu0
  %v738 = vpop.f32.mrb[0].mxu0
  %v739 = vadd.f32 %v120, %v738
  %v740 = vpop.f32.mrb[0].mxu0
  %741 = vmatprep.mubr.bf16.mxu0 0
  %742 = vmatmul.mubr.bf16.gmra.mrb[0].mxu0 %v444
  %v743 = vpop.f32.mrb[0].mxu0
  %v744 = vadd.f32 %v120, %v743
  %v745 = vpop.f32.mrb[0].mxu0
  %v746 = vpop.f32.mrb[0].mxu0
  %v747 = vadd.f32 %v120, %v746
  %v748 = vpop.f32.mrb[0].mxu0
  %749 = vmatprep.mubr.bf16.mxu0 0
  %750 = vmatmul.mubr.bf16.gmra.mrb[0].mxu0 %v447
  %v751 = vpop.f32.mrb[0].mxu0
  %v752 = vadd.f32 %v120, %v751
  %v753 = vpop.f32.mrb[0].mxu0
  %v754 = vpop.f32.mrb[0].mxu0
  %v755 = vadd.f32 %v120, %v754
  %v756 = vpop.f32.mrb[0].mxu0
  %757 = vmatprep.mubr.bf16.mxu0 0
  %758 = vmatmul.mubr.bf16.gmra.mrb[0].mxu0 %v450
  %v759 = vpop.f32.mrb[0].mxu0
  %v760 = vadd.f32 %v120, %v759
  %v761 = vpop.f32.mrb[0].mxu0
  %v762 = vpop.f32.mrb[0].mxu0
  %v763 = vadd.f32 %v120, %v762
  %v764 = vpop.f32.mrb[0].mxu0
  %765 = vmatprep.mubr.bf16.mxu0 0
  %766 = vmatmul.mubr.bf16.gmra.mrb[0].mxu0 %v453
  %v767 = vpop.f32.mrb[0].mxu0
  %v768 = vadd.f32 %v120, %v767
  %v769 = vpop.f32.mrb[0].mxu0
  %v770 = vpop.f32.mrb[0].mxu0
  %v771 = vadd.f32 %v120, %v770
  %v772 = vpop.f32.mrb[0].mxu0
  %773 = vmatprep.mubr.bf16.mxu0 0
  %774 = vmatmul.mubr.bf16.gmra.mrb[0].mxu0 %v456
  %v775 = vpop.f32.mrb[0].mxu0
  %v776 = vadd.f32 %v120, %v775
  %v777 = vpop.f32.mrb[0].mxu0
  %v778 = vpop.f32.mrb[0].mxu0
  %v779 = vadd.f32 %v120, %v778
  %v780 = vpop.f32.mrb[0].mxu0
  %781 = vmatprep.mubr.bf16.mxu0 0
  %782 = vmatmul.mubr.bf16.gmra.mrb[0].mxu0 %v459
  %v783 = vpop.f32.mrb[0].mxu0
  %v784 = vadd.f32 %v120, %v783
  %v785 = vpop.f32.mrb[0].mxu0
  %v786 = vpop.f32.mrb[0].mxu0
  %v787 = vadd.f32 %v120, %v786
  %v788 = vpop.f32.mrb[0].mxu0
  %789 = vmatprep.mubr.bf16.mxu0 0
  %790 = vmatmul.mubr.bf16.gmra.mrb[0].mxu0 %v462
  %v791 = vpop.f32.mrb[0].mxu0
  %v792 = vadd.f32 %v120, %v791
  %v793 = vpop.f32.mrb[0].mxu0
  %v794 = vpop.f32.mrb[0].mxu0
  %v795 = vadd.f32 %v120, %v794
  %v796 = vpop.f32.mrb[0].mxu0
  %797 = vmatprep.mubr.bf16.mxu0 0
  %798 = vmatmul.mubr.bf16.gmra.mrb[0].mxu0 %v465
  %v799 = vpop.f32.mrb[0].mxu0
  %v800 = vadd.f32 %v120, %v799
  %v801 = vpop.f32.mrb[0].mxu0
  %v802 = vpop.f32.mrb[0].mxu0
  %v803 = vadd.f32 %v120, %v802
  %v804 = vpop.f32.mrb[0].mxu0
  %805 = vmatprep.mubr.bf16.mxu0 0
  %806 = vmatmul.mubr.bf16.gmra.mrb[0].mxu0 %v468
  %v807 = vpop.f32.mrb[0].mxu0
  %v808 = vadd.f32 %v120, %v807
  %v809 = vpop.f32.mrb[0].mxu0
  %v810 = vpop.f32.mrb[0].mxu0
  %v811 = vadd.f32 %v120, %v810
  %v812 = vpop.f32.mrb[0].mxu0
  %813 = vmatprep.mubr.bf16.mxu0 0
  %814 = vmatmul.mubr.bf16.gmra.mrb[0].mxu0 %v471
  %v815 = vpop.f32.mrb[0].mxu0
  %v816 = vadd.f32 %v120, %v815
  %v817 = vpop.f32.mrb[0].mxu0
  %v818 = vpop.f32.mrb[0].mxu0
  %v819 = vadd.f32 %v120, %v818
  %v820 = vpop.f32.mrb[0].mxu0
  %821 = vmatprep.mubr.bf16.mxu0 0
  %822 = vmatmul.mubr.bf16.gmra.mrb[0].mxu0 %v474
  %v823 = vpop.f32.mrb[0].mxu0
  %v824 = vadd.f32 %v120, %v823
  %v825 = vpop.f32.mrb[0].mxu0
  %v826 = vpop.f32.mrb[0].mxu0
  %v827 = vadd.f32 %v120, %v826
  %v828 = vpop.f32.mrb[0].mxu0
  %829 = vmatprep.mubr.bf16.mxu0 0
  %830 = vmatmul.mubr.bf16.gmra.mrb[0].mxu0 %v477
  %v831 = vpop.f32.mrb[0].mxu0
  %v832 = vadd.f32 %v120, %v831
  %v833 = vpop.f32.mrb[0].mxu0
  %v834 = vpop.f32.mrb[0].mxu0
  %v835 = vadd.f32 %v120, %v834
  %v836 = vpop.f32.mrb[0].mxu0
  %837 = vmatprep.mubr.bf16.mxu0 0
  %838 = vmatmul.mubr.bf16.gmra.mrb[0].mxu0 %v480
  %v839 = vpop.f32.mrb[0].mxu0
  %v840 = vadd.f32 %v120, %v839
  %v841 = vpop.f32.mrb[0].mxu0
  %v842 = vpop.f32.mrb[0].mxu0
  %v843 = vadd.f32 %v120, %v842
  %v844 = vpop.f32.mrb[0].mxu0
  %845 = vmatprep.mubr.bf16.mxu0 0
  %846 = vmatmul.mubr.bf16.gmra.mrb[0].mxu0 %v483
  %v847 = vpop.f32.mrb[0].mxu0
  %v848 = vadd.f32 %v120, %v847
  %v849 = vpop.f32.mrb[0].mxu0
  %v850 = vpop.f32.mrb[0].mxu0
  %v851 = vadd.f32 %v120, %v850
  %v852 = vpop.f32.mrb[0].mxu0
  %853 = vmatprep.mubr.bf16.mxu0 0
  %854 = vmatmul.mubr.bf16.gmra.mrb[0].mxu0 %v486
  %v855 = vpop.f32.mrb[0].mxu0
  %v856 = vadd.f32 %v120, %v855
  %v857 = vpop.f32.mrb[0].mxu0
  %v858 = vpop.f32.mrb[0].mxu0
  %v859 = vadd.f32 %v120, %v858
  %v860 = vpop.f32.mrb[0].mxu0
  %861 = vmatprep.mubr.bf16.mxu0 0
  %862 = vmatmul.mubr.bf16.gmra.mrb[0].mxu0 %v489
  %v863 = vpop.f32.mrb[0].mxu0
  %v864 = vadd.f32 %v120, %v863
  %v865 = vpop.f32.mrb[0].mxu0
  %v866 = vpop.f32.mrb[0].mxu0
  %v867 = vadd.f32 %v120, %v866
  %v868 = vpop.f32.mrb[0].mxu0
  %869 = vmatprep.mubr.bf16.mxu0 0
  %870 = vmatmul.mubr.bf16.gmra.mrb[0].mxu0 %v492
  %v871 = vpop.f32.mrb[0].mxu0
  %v872 = vadd.f32 %v120, %v871
  %v873 = vpop.f32.mrb[0].mxu0
  %v874 = vpop.f32.mrb[0].mxu0
  %v875 = vadd.f32 %v120, %v874
  %v876 = vpop.f32.mrb[0].mxu0
  %877 = vmatprep.mubr.bf16.mxu0 0
  %878 = vmatmul.mubr.bf16.gmra.mrb[0].mxu0 %v495
  %v879 = vpop.f32.mrb[0].mxu0
  %v880 = vadd.f32 %v120, %v879
  %v881 = vpop.f32.mrb[0].mxu0
  %v882 = vpop.f32.mrb[0].mxu0
  %v883 = vadd.f32 %v120, %v882
  %v884 = vpop.f32.mrb[0].mxu0
  %885 = vmatprep.mubr.bf16.mxu0 0
  %886 = vmatmul.mubr.bf16.gmra.mrb[0].mxu0 %v498
  %v887 = vpop.f32.mrb[0].mxu0
  %v888 = vadd.f32 %v120, %v887
  %v889 = vpop.f32.mrb[0].mxu0
  %v890 = vpop.f32.mrb[0].mxu0
  %v891 = vadd.f32 %v120, %v890
  %v892 = vpop.f32.mrb[0].mxu0
  %893 = vmatprep.mubr.bf16.mxu0 0
  %894 = vmatmul.mubr.bf16.gmra.mrb[0].mxu0 %v501
  %v895 = vpop.f32.mrb[0].mxu0
  %v896 = vadd.f32 %v120, %v895
  %v897 = vpop.f32.mrb[0].mxu0
  %v898 = vpop.f32.mrb[0].mxu0
  %v899 = vadd.f32 %v120, %v898
  %v900 = vpop.f32.mrb[0].mxu0
  %901 = vmatprep.mubr.bf16.mxu0 0
  %902 = vmatmul.mubr.bf16.gmra.mrb[0].mxu0 %v504
  %v903 = vpop.f32.mrb[0].mxu0
  %v904 = vadd.f32 %v120, %v903
  %v905 = vpop.f32.mrb[0].mxu0
  %v906 = vpop.f32.mrb[0].mxu0
  %v907 = vadd.f32 %v120, %v906
  %v908 = vpop.f32.mrb[0].mxu0
  %909 = vmatprep.mubr.bf16.mxu0 0
  %910 = vmatmul.mubr.bf16.gmra.mrb[0].mxu0 %v507
  %v911 = vpop.f32.mrb[0].mxu0
  %v912 = vadd.f32 %v120, %v911
  %v913 = vpop.f32.mrb[0].mxu0
  %v914 = vpop.f32.mrb[0].mxu0
  %v915 = vadd.f32 %v120, %v914
  %v916 = vpop.f32.mrb[0].mxu0
  %917 = vmatprep.mubr.bf16.mxu0 0
  %918 = vmatmul.mubr.bf16.gmra.mrb[0].mxu0 %v510
  %v919 = vpop.f32.mrb[0].mxu0
  %v920 = vadd.f32 %v120, %v919
  %v921 = vpop.f32.mrb[0].mxu0
  %v922 = vpop.f32.mrb[0].mxu0
  %v923 = vadd.f32 %v120, %v922
  %v924 = vpop.f32.mrb[0].mxu0
  %925 = vmatprep.mubr.bf16.mxu0 0
  %926 = vmatmul.mubr.bf16.gmra.mrb[0].mxu0 %v513
  %v927 = vpop.f32.mrb[0].mxu0
  %v928 = vadd.f32 %v120, %v927
  %v929 = vpop.f32.mrb[0].mxu0
  %v930 = vpop.f32.mrb[0].mxu0
  %v931 = vadd.f32 %v120, %v930
  %v932 = vpop.f32.mrb[0].mxu0
  %933 = vmatprep.mubr.bf16.mxu0 0
  %934 = vmatmul.mubr.bf16.gmra.mrb[0].mxu0 %v516
  %v935 = vpop.f32.mrb[0].mxu0
  %v936 = vadd.f32 %v120, %v935
  %v937 = vpop.f32.mrb[0].mxu0
  %v938 = vpop.f32.mrb[0].mxu0
  %v939 = vadd.f32 %v120, %v938
  %v940 = vpop.f32.mrb[0].mxu0
  %941 = vdwg.mxu0
  %v942 = vmax.f32 %v560, 0.0
  %v943 = vmax.f32 %v563, 0.0
  %v944 = vmax.f32 %v568, 0.0
  %v945 = vmax.f32 %v571, 0.0
  %v946 = vmax.f32 %v576, 0.0
  %v947 = vmax.f32 %v579, 0.0
  %v948 = vmax.f32 %v584, 0.0
  %v949 = vmax.f32 %v587, 0.0
  %v950 = vmax.f32 %v592, 0.0
  %v951 = vmax.f32 %v595, 0.0
  %v952 = vmax.f32 %v600, 0.0
  %v953 = vmax.f32 %v603, 0.0
  %v954 = vmax.f32 %v608, 0.0
  %v955 = vmax.f32 %v611, 0.0
  %v956 = vmax.f32 %v616, 0.0
  %v957 = vmax.f32 %v619, 0.0
  %v958 = vmax.f32 %v624, 0.0
  %v959 = vmax.f32 %v627, 0.0
  %v960 = vmax.f32 %v632, 0.0
  %v961 = vmax.f32 %v635, 0.0
  %v962 = vmax.f32 %v640, 0.0
  %v963 = vmax.f32 %v643, 0.0
  %v964 = vmax.f32 %v648, 0.0
  %v965 = vmax.f32 %v651, 0.0
  %v966 = vmax.f32 %v656, 0.0
  %v967 = vmax.f32 %v659, 0.0
  %v968 = vmax.f32 %v664, 0.0
  %v969 = vmax.f32 %v667, 0.0
  %v970 = vmax.f32 %v672, 0.0
  %v971 = vmax.f32 %v675, 0.0
  %v972 = vmax.f32 %v680, 0.0
  %v973 = vmax.f32 %v683, 0.0
  %v974 = vmax.f32 %v688, 0.0
  %v975 = vmax.f32 %v691, 0.0
  %v976 = vmax.f32 %v696, 0.0
  %v977 = vmax.f32 %v699, 0.0
  %v978 = vmax.f32 %v704, 0.0
  %v979 = vmax.f32 %v707, 0.0
  %v980 = vmax.f32 %v712, 0.0
  %v981 = vmax.f32 %v715, 0.0
  %v982 = vmax.f32 %v720, 0.0
  %v983 = vmax.f32 %v723, 0.0
  %v984 = vmax.f32 %v728, 0.0
  %v985 = vmax.f32 %v731, 0.0
  %v986 = vmax.f32 %v736, 0.0
  %v987 = vmax.f32 %v739, 0.0
  %v988 = vmax.f32 %v744, 0.0
  %v989 = vmax.f32 %v747, 0.0
  %v990 = vmax.f32 %v752, 0.0
  %v991 = vmax.f32 %v755, 0.0
  %v992 = vmax.f32 %v760, 0.0
  %v993 = vmax.f32 %v763, 0.0
  %v994 = vmax.f32 %v768, 0.0
  %v995 = vmax.f32 %v771, 0.0
  %v996 = vmax.f32 %v776, 0.0
  %v997 = vmax.f32 %v779, 0.0
  %v998 = vmax.f32 %v784, 0.0
  %v999 = vmax.f32 %v787, 0.0
  %v1000 = vmax.f32 %v792, 0.0
  %v1001 = vmax.f32 %v795, 0.0
  %v1002 = vmax.f32 %v800, 0.0
  %v1003 = vmax.f32 %v803, 0.0
  %v1004 = vmax.f32 %v808, 0.0
  %v1005 = vmax.f32 %v811, 0.0
  %v1006 = vmax.f32 %v816, 0.0
  %v1007 = vmax.f32 %v819, 0.0
  %v1008 = vmax.f32 %v824, 0.0
  %v1009 = vmax.f32 %v827, 0.0
  %v1010 = vmax.f32 %v832, 0.0
  %v1011 = vmax.f32 %v835, 0.0
  %v1012 = vmax.f32 %v840, 0.0
  %v1013 = vmax.f32 %v843, 0.0
  %v1014 = vmax.f32 %v848, 0.0
  %v1015 = vmax.f32 %v851, 0.0
  %v1016 = vmax.f32 %v856, 0.0
  %v1017 = vmax.f32 %v859, 0.0
  %v1018 = vmax.f32 %v864, 0.0
  %v1019 = vmax.f32 %v867, 0.0
  %v1020 = vmax.f32 %v872, 0.0
  %v1021 = vmax.f32 %v875, 0.0
  %v1022 = vmax.f32 %v880, 0.0
  %v1023 = vmax.f32 %v883, 0.0
  %v1024 = vmax.f32 %v888, 0.0
  %v1025 = vmax.f32 %v891, 0.0
  %v1026 = vmax.f32 %v896, 0.0
  %v1027 = vmax.f32 %v899, 0.0
  %v1028 = vmax.f32 %v904, 0.0
  %v1029 = vmax.f32 %v907, 0.0
  %v1030 = vmax.f32 %v912, 0.0
  %v1031 = vmax.f32 %v915, 0.0
  %v1032 = vmax.f32 %v920, 0.0
  %v1033 = vmax.f32 %v923, 0.0
  %v1034 = vmax.f32 %v928, 0.0
  %v1035 = vmax.f32 %v931, 0.0
  %v1036 = vmax.f32 %v936, 0.0
  %v1037 = vmax.f32 %v939, 0.0
  %v1038 = vpack.c.bf16 %v943, %v942
  %v1039 = vpack.c.bf16 %v945, %v944
  %v1040 = vpack.c.bf16 %v947, %v946
  %v1041 = vpack.c.bf16 %v949, %v948
  %v1042 = vpack.c.bf16 %v951, %v950
  %v1043 = vpack.c.bf16 %v953, %v952
  %v1044 = vpack.c.bf16 %v955, %v954
  %v1045 = vpack.c.bf16 %v957, %v956
  %v1046 = vpack.c.bf16 %v959, %v958
  %v1047 = vpack.c.bf16 %v961, %v960
  %v1048 = vpack.c.bf16 %v963, %v962
  %v1049 = vpack.c.bf16 %v965, %v964
  %v1050 = vpack.c.bf16 %v967, %v966
  %v1051 = vpack.c.bf16 %v969, %v968
  %v1052 = vpack.c.bf16 %v971, %v970
  %v1053 = vpack.c.bf16 %v973, %v972
  %v1054 = vpack.c.bf16 %v975, %v974
  %v1055 = vpack.c.bf16 %v977, %v976
  %v1056 = vpack.c.bf16 %v979, %v978
  %v1057 = vpack.c.bf16 %v981, %v980
  %v1058 = vpack.c.bf16 %v983, %v982
  %v1059 = vpack.c.bf16 %v985, %v984
  %v1060 = vpack.c.bf16 %v987, %v986
  %v1061 = vpack.c.bf16 %v989, %v988
  %v1062 = vpack.c.bf16 %v991, %v990
  %v1063 = vpack.c.bf16 %v993, %v992
  %v1064 = vpack.c.bf16 %v995, %v994
  %v1065 = vpack.c.bf16 %v997, %v996
  %v1066 = vpack.c.bf16 %v999, %v998
  %v1067 = vpack.c.bf16 %v1001, %v1000
  %v1068 = vpack.c.bf16 %v1003, %v1002
  %v1069 = vpack.c.bf16 %v1005, %v1004
  %v1070 = vpack.c.bf16 %v1007, %v1006
  %v1071 = vpack.c.bf16 %v1009, %v1008
  %v1072 = vpack.c.bf16 %v1011, %v1010
  %v1073 = vpack.c.bf16 %v1013, %v1012
  %v1074 = vpack.c.bf16 %v1015, %v1014
  %v1075 = vpack.c.bf16 %v1017, %v1016
  %v1076 = vpack.c.bf16 %v1019, %v1018
  %v1077 = vpack.c.bf16 %v1021, %v1020
  %v1078 = vpack.c.bf16 %v1023, %v1022
  %v1079 = vpack.c.bf16 %v1025, %v1024
  %v1080 = vpack.c.bf16 %v1027, %v1026
  %v1081 = vpack.c.bf16 %v1029, %v1028
  %v1082 = vpack.c.bf16 %v1031, %v1030
  %v1083 = vpack.c.bf16 %v1033, %v1032
  %v1084 = vpack.c.bf16 %v1035, %v1034
  %v1085 = vpack.c.bf16 %v1037, %v1036
  %v1134 = vunpack.c.l.b16 %v1038
  %v1135 = vunpack.c.h.b16 %v1038
  %v1136 = vunpack.c.l.b16 %v1039
  %v1137 = vunpack.c.h.b16 %v1039
  %v1138 = vunpack.c.l.b16 %v1040
  %v1139 = vunpack.c.h.b16 %v1040
  %v1140 = vunpack.c.l.b16 %v1041
  %v1141 = vunpack.c.h.b16 %v1041
  %v1142 = vunpack.c.l.b16 %v1042
  %v1143 = vunpack.c.h.b16 %v1042
  %v1144 = vunpack.c.l.b16 %v1043
  %v1145 = vunpack.c.h.b16 %v1043
  %v1146 = vunpack.c.l.b16 %v1044
  %v1147 = vunpack.c.h.b16 %v1044
  %v1148 = vunpack.c.l.b16 %v1045
  %v1149 = vunpack.c.h.b16 %v1045
  %v1150 = vunpack.c.l.b16 %v1046
  %v1151 = vunpack.c.h.b16 %v1046
  %v1152 = vunpack.c.l.b16 %v1047
  %v1153 = vunpack.c.h.b16 %v1047
  %v1154 = vunpack.c.l.b16 %v1048
  %v1155 = vunpack.c.h.b16 %v1048
  %v1156 = vunpack.c.l.b16 %v1049
  %v1157 = vunpack.c.h.b16 %v1049
  %v1158 = vunpack.c.l.b16 %v1050
  %v1159 = vunpack.c.h.b16 %v1050
  %v1160 = vunpack.c.l.b16 %v1051
  %v1161 = vunpack.c.h.b16 %v1051
  %v1162 = vunpack.c.l.b16 %v1052
  %v1163 = vunpack.c.h.b16 %v1052
  %v1164 = vunpack.c.l.b16 %v1053
  %v1165 = vunpack.c.h.b16 %v1053
  %v1166 = vunpack.c.l.b16 %v1054
  %v1167 = vunpack.c.h.b16 %v1054
  %v1168 = vunpack.c.l.b16 %v1055
  %v1169 = vunpack.c.h.b16 %v1055
  %v1170 = vunpack.c.l.b16 %v1056
  %v1171 = vunpack.c.h.b16 %v1056
  %v1172 = vunpack.c.l.b16 %v1057
  %v1173 = vunpack.c.h.b16 %v1057
  %v1174 = vunpack.c.l.b16 %v1058
  %v1175 = vunpack.c.h.b16 %v1058
  %v1176 = vunpack.c.l.b16 %v1059
  %v1177 = vunpack.c.h.b16 %v1059
  %v1178 = vunpack.c.l.b16 %v1060
  %v1179 = vunpack.c.h.b16 %v1060
  %v1180 = vunpack.c.l.b16 %v1061
  %v1181 = vunpack.c.h.b16 %v1061
  %v1182 = vunpack.c.l.b16 %v1062
  %v1183 = vunpack.c.h.b16 %v1062
  %v1184 = vunpack.c.l.b16 %v1063
  %v1185 = vunpack.c.h.b16 %v1063
  %v1186 = vunpack.c.l.b16 %v1064
  %v1187 = vunpack.c.h.b16 %v1064
  %v1188 = vunpack.c.l.b16 %v1065
  %v1189 = vunpack.c.h.b16 %v1065
  %v1190 = vunpack.c.l.b16 %v1066
  %v1191 = vunpack.c.h.b16 %v1066
  %v1192 = vunpack.c.l.b16 %v1067
  %v1193 = vunpack.c.h.b16 %v1067
  %v1194 = vunpack.c.l.b16 %v1068
  %v1195 = vunpack.c.h.b16 %v1068
  %v1196 = vunpack.c.l.b16 %v1069
  %v1197 = vunpack.c.h.b16 %v1069
  %v1198 = vunpack.c.l.b16 %v1070
  %v1199 = vunpack.c.h.b16 %v1070
  %v1200 = vunpack.c.l.b16 %v1071
  %v1201 = vunpack.c.h.b16 %v1071
  %v1202 = vunpack.c.l.b16 %v1072
  %v1203 = vunpack.c.h.b16 %v1072
  %v1204 = vunpack.c.l.b16 %v1073
  %v1205 = vunpack.c.h.b16 %v1073
  %v1206 = vunpack.c.l.b16 %v1074
  %v1207 = vunpack.c.h.b16 %v1074
  %v1208 = vunpack.c.l.b16 %v1075
  %v1209 = vunpack.c.h.b16 %v1075
  %v1210 = vunpack.c.l.b16 %v1076
  %v1211 = vunpack.c.h.b16 %v1076
  %v1212 = vunpack.c.l.b16 %v1077
  %v1213 = vunpack.c.h.b16 %v1077
  %v1214 = vunpack.c.l.b16 %v1078
  %v1215 = vunpack.c.h.b16 %v1078
  %v1216 = vunpack.c.l.b16 %v1079
  %v1217 = vunpack.c.h.b16 %v1079
  %v1218 = vunpack.c.l.b16 %v1080
  %v1219 = vunpack.c.h.b16 %v1080
  %v1220 = vunpack.c.l.b16 %v1081
  %v1221 = vunpack.c.h.b16 %v1081
  %v1222 = vunpack.c.l.b16 %v1082
  %v1223 = vunpack.c.h.b16 %v1082
  %v1224 = vunpack.c.l.b16 %v1083
  %v1225 = vunpack.c.h.b16 %v1083
  %v1226 = vunpack.c.l.b16 %v1084
  %v1227 = vunpack.c.h.b16 %v1084
  %v1228 = vunpack.c.l.b16 %v1085
  %v1229 = vunpack.c.h.b16 %v1085
  %v1230 = vpack.c.b16 %v1134, %v1134
  %v1231 = vpack.c.b16 %v1135, %v1135
  %v1232 = vpack.c.b16 %v1136, %v1136
  %v1233 = vpack.c.b16 %v1137, %v1137
  %v1234 = vpack.c.b16 %v1138, %v1138
  %v1235 = vpack.c.b16 %v1139, %v1139
  %v1236 = vpack.c.b16 %v1140, %v1140
  %v1237 = vpack.c.b16 %v1141, %v1141
  %v1238 = vpack.c.b16 %v1142, %v1142
  %v1239 = vpack.c.b16 %v1143, %v1143
  %v1240 = vpack.c.b16 %v1144, %v1144
  %v1241 = vpack.c.b16 %v1145, %v1145
  %v1242 = vpack.c.b16 %v1146, %v1146
  %v1243 = vpack.c.b16 %v1147, %v1147
  %v1244 = vpack.c.b16 %v1148, %v1148
  %v1245 = vpack.c.b16 %v1149, %v1149
  %v1246 = vpack.c.b16 %v1150, %v1150
  %v1247 = vpack.c.b16 %v1151, %v1151
  %v1248 = vpack.c.b16 %v1152, %v1152
  %v1249 = vpack.c.b16 %v1153, %v1153
  %v1250 = vpack.c.b16 %v1154, %v1154
  %v1251 = vpack.c.b16 %v1155, %v1155
  %v1252 = vpack.c.b16 %v1156, %v1156
  %v1253 = vpack.c.b16 %v1157, %v1157
  %v1254 = vpack.c.b16 %v1158, %v1158
  %v1255 = vpack.c.b16 %v1159, %v1159
  %v1256 = vpack.c.b16 %v1160, %v1160
  %v1257 = vpack.c.b16 %v1161, %v1161
  %v1258 = vpack.c.b16 %v1162, %v1162
  %v1259 = vpack.c.b16 %v1163, %v1163
  %v1260 = vpack.c.b16 %v1164, %v1164
  %v1261 = vpack.c.b16 %v1165, %v1165
  %v1262 = vpack.c.b16 %v1166, %v1166
  %v1263 = vpack.c.b16 %v1167, %v1167
  %v1264 = vpack.c.b16 %v1168, %v1168
  %v1265 = vpack.c.b16 %v1169, %v1169
  %v1266 = vpack.c.b16 %v1170, %v1170
  %v1267 = vpack.c.b16 %v1171, %v1171
  %v1268 = vpack.c.b16 %v1172, %v1172
  %v1269 = vpack.c.b16 %v1173, %v1173
  %v1270 = vpack.c.b16 %v1174, %v1174
  %v1271 = vpack.c.b16 %v1175, %v1175
  %v1272 = vpack.c.b16 %v1176, %v1176
  %v1273 = vpack.c.b16 %v1177, %v1177
  %v1274 = vpack.c.b16 %v1178, %v1178
  %v1275 = vpack.c.b16 %v1179, %v1179
  %v1276 = vpack.c.b16 %v1180, %v1180
  %v1277 = vpack.c.b16 %v1181, %v1181
  %v1278 = vpack.c.b16 %v1182, %v1182
  %v1279 = vpack.c.b16 %v1183, %v1183
  %v1280 = vpack.c.b16 %v1184, %v1184
  %v1281 = vpack.c.b16 %v1185, %v1185
  %v1282 = vpack.c.b16 %v1186, %v1186
  %v1283 = vpack.c.b16 %v1187, %v1187
  %v1284 = vpack.c.b16 %v1188, %v1188
  %v1285 = vpack.c.b16 %v1189, %v1189
  %v1286 = vpack.c.b16 %v1190, %v1190
  %v1287 = vpack.c.b16 %v1191, %v1191
  %v1288 = vpack.c.b16 %v1192, %v1192
  %v1289 = vpack.c.b16 %v1193, %v1193
  %v1290 = vpack.c.b16 %v1194, %v1194
  %v1291 = vpack.c.b16 %v1195, %v1195
  %v1292 = vpack.c.b16 %v1196, %v1196
  %v1293 = vpack.c.b16 %v1197, %v1197
  %v1294 = vpack.c.b16 %v1198, %v1198
  %v1295 = vpack.c.b16 %v1199, %v1199
  %v1296 = vpack.c.b16 %v1200, %v1200
  %v1297 = vpack.c.b16 %v1201, %v1201
  %v1298 = vpack.c.b16 %v1202, %v1202
  %v1299 = vpack.c.b16 %v1203, %v1203
  %v1300 = vpack.c.b16 %v1204, %v1204
  %v1301 = vpack.c.b16 %v1205, %v1205
  %v1302 = vpack.c.b16 %v1206, %v1206
  %v1303 = vpack.c.b16 %v1207, %v1207
  %v1304 = vpack.c.b16 %v1208, %v1208
  %v1305 = vpack.c.b16 %v1209, %v1209
  %v1306 = vpack.c.b16 %v1210, %v1210
  %v1307 = vpack.c.b16 %v1211, %v1211
  %v1308 = vpack.c.b16 %v1212, %v1212
  %v1309 = vpack.c.b16 %v1213, %v1213
  %v1310 = vpack.c.b16 %v1214, %v1214
  %v1311 = vpack.c.b16 %v1215, %v1215
  %v1312 = vpack.c.b16 %v1216, %v1216
  %v1313 = vpack.c.b16 %v1217, %v1217
  %v1314 = vpack.c.b16 %v1218, %v1218
  %v1315 = vpack.c.b16 %v1219, %v1219
  %v1316 = vpack.c.b16 %v1220, %v1220
  %v1317 = vpack.c.b16 %v1221, %v1221
  %v1318 = vpack.c.b16 %v1222, %v1222
  %v1319 = vpack.c.b16 %v1223, %v1223
  %v1320 = vpack.c.b16 %v1224, %v1224
  %v1321 = vpack.c.b16 %v1225, %v1225
  %v1322 = vpack.c.b16 %v1226, %v1226
  %v1323 = vpack.c.b16 %v1227, %v1227
  %v1324 = vpack.c.b16 %v1228, %v1228
  %v1325 = vpack.c.b16 %v1229, %v1229
  %vm1422 = vcmask 125952
  %1423 = vst.msk [vmem:[%s3] sm:$0xf] %vm1422, %v1230
  %1424 = vst.msk [vmem:[%s3 + $0x4] sm:$0xf] %vm1422, %v1231
  %1425 = vst.msk [vmem:[%s3 + $0x8] sm:$0xf] %vm1422, %v1232
  %1426 = vst.msk [vmem:[%s3 + $0xc] sm:$0xf] %vm1422, %v1233
  %1427 = vst.msk [vmem:[%s3 + $0x10] sm:$0xf] %vm1422, %v1234
  %1428 = vst.msk [vmem:[%s3 + $0x14] sm:$0xf] %vm1422, %v1235
  %1429 = vst.msk [vmem:[%s3 + $0x18] sm:$0xf] %vm1422, %v1236
  %1430 = vst.msk [vmem:[%s3 + $0x1c] sm:$0xf] %vm1422, %v1237
  %1431 = vst.msk [vmem:[%s3 + $0x20] sm:$0xf] %vm1422, %v1238
  %1432 = vst.msk [vmem:[%s3 + $0x24] sm:$0xf] %vm1422, %v1239
  %1433 = vst.msk [vmem:[%s3 + $0x28] sm:$0xf] %vm1422, %v1240
  %1434 = vst.msk [vmem:[%s3 + $0x2c] sm:$0xf] %vm1422, %v1241
  %1435 = vst.msk [vmem:[%s3 + $0x30] sm:$0xf] %vm1422, %v1242
  %1436 = vst.msk [vmem:[%s3 + $0x34] sm:$0xf] %vm1422, %v1243
  %1437 = vst.msk [vmem:[%s3 + $0x38] sm:$0xf] %vm1422, %v1244
  %1438 = vst.msk [vmem:[%s3 + $0x3c] sm:$0xf] %vm1422, %v1245
  %1439 = vst.msk [vmem:[%s3 + $0x40] sm:$0xf] %vm1422, %v1246
  %1440 = vst.msk [vmem:[%s3 + $0x44] sm:$0xf] %vm1422, %v1247
  %1441 = vst.msk [vmem:[%s3 + $0x48] sm:$0xf] %vm1422, %v1248
  %1442 = vst.msk [vmem:[%s3 + $0x4c] sm:$0xf] %vm1422, %v1249
  %1443 = vst.msk [vmem:[%s3 + $0x50] sm:$0xf] %vm1422, %v1250
  %1444 = vst.msk [vmem:[%s3 + $0x54] sm:$0xf] %vm1422, %v1251
  %1445 = vst.msk [vmem:[%s3 + $0x58] sm:$0xf] %vm1422, %v1252
  %1446 = vst.msk [vmem:[%s3 + $0x5c] sm:$0xf] %vm1422, %v1253
  %1447 = vst.msk [vmem:[%s3 + $0x60] sm:$0xf] %vm1422, %v1254
  %1448 = vst.msk [vmem:[%s3 + $0x64] sm:$0xf] %vm1422, %v1255
  %1449 = vst.msk [vmem:[%s3 + $0x68] sm:$0xf] %vm1422, %v1256
  %1450 = vst.msk [vmem:[%s3 + $0x6c] sm:$0xf] %vm1422, %v1257
  %1451 = vst.msk [vmem:[%s3 + $0x70] sm:$0xf] %vm1422, %v1258
  %1452 = vst.msk [vmem:[%s3 + $0x74] sm:$0xf] %vm1422, %v1259
  %1453 = vst.msk [vmem:[%s3 + $0x78] sm:$0xf] %vm1422, %v1260
  %1454 = vst.msk [vmem:[%s3 + $0x7c] sm:$0xf] %vm1422, %v1261
  %1455 = vst.msk [vmem:[%s3 + $0x80] sm:$0xf] %vm1422, %v1262
  %1456 = vst.msk [vmem:[%s3 + $0x84] sm:$0xf] %vm1422, %v1263
  %1457 = vst.msk [vmem:[%s3 + $0x88] sm:$0xf] %vm1422, %v1264
  %1458 = vst.msk [vmem:[%s3 + $0x8c] sm:$0xf] %vm1422, %v1265
  %1459 = vst.msk [vmem:[%s3 + $0x90] sm:$0xf] %vm1422, %v1266
  %1460 = vst.msk [vmem:[%s3 + $0x94] sm:$0xf] %vm1422, %v1267
  %1461 = vst.msk [vmem:[%s3 + $0x98] sm:$0xf] %vm1422, %v1268
  %1462 = vst.msk [vmem:[%s3 + $0x9c] sm:$0xf] %vm1422, %v1269
  %1463 = vst.msk [vmem:[%s3 + $0xa0] sm:$0xf] %vm1422, %v1270
  %1464 = vst.msk [vmem:[%s3 + $0xa4] sm:$0xf] %vm1422, %v1271
  %1465 = vst.msk [vmem:[%s3 + $0xa8] sm:$0xf] %vm1422, %v1272
  %1466 = vst.msk [vmem:[%s3 + $0xac] sm:$0xf] %vm1422, %v1273
  %1467 = vst.msk [vmem:[%s3 + $0xb0] sm:$0xf] %vm1422, %v1274
  %1468 = vst.msk [vmem:[%s3 + $0xb4] sm:$0xf] %vm1422, %v1275
  %1469 = vst.msk [vmem:[%s3 + $0xb8] sm:$0xf] %vm1422, %v1276
  %1470 = vst.msk [vmem:[%s3 + $0xbc] sm:$0xf] %vm1422, %v1277
  %1471 = vst.msk [vmem:[%s3 + $0xc0] sm:$0xf] %vm1422, %v1278
  %1472 = vst.msk [vmem:[%s3 + $0xc4] sm:$0xf] %vm1422, %v1279
  %1473 = vst.msk [vmem:[%s3 + $0xc8] sm:$0xf] %vm1422, %v1280
  %1474 = vst.msk [vmem:[%s3 + $0xcc] sm:$0xf] %vm1422, %v1281
  %1475 = vst.msk [vmem:[%s3 + $0xd0] sm:$0xf] %vm1422, %v1282
  %1476 = vst.msk [vmem:[%s3 + $0xd4] sm:$0xf] %vm1422, %v1283
  %1477 = vst.msk [vmem:[%s3 + $0xd8] sm:$0xf] %vm1422, %v1284
  %1478 = vst.msk [vmem:[%s3 + $0xdc] sm:$0xf] %vm1422, %v1285
  %1479 = vst.msk [vmem:[%s3 + $0xe0] sm:$0xf] %vm1422, %v1286
  %1480 = vst.msk [vmem:[%s3 + $0xe4] sm:$0xf] %vm1422, %v1287
  %1481 = vst.msk [vmem:[%s3 + $0xe8] sm:$0xf] %vm1422, %v1288
  %1482 = vst.msk [vmem:[%s3 + $0xec] sm:$0xf] %vm1422, %v1289
  %1483 = vst.msk [vmem:[%s3 + $0xf0] sm:$0xf] %vm1422, %v1290
  %1484 = vst.msk [vmem:[%s3 + $0xf4] sm:$0xf] %vm1422, %v1291
  %1485 = vst.msk [vmem:[%s3 + $0xf8] sm:$0xf] %vm1422, %v1292
  %1486 = vst.msk [vmem:[%s3 + $0xfc] sm:$0xf] %vm1422, %v1293
  %1487 = vst.msk [vmem:[%s3 + $0x100] sm:$0xf] %vm1422, %v1294
  %1488 = vst.msk [vmem:[%s3 + $0x104] sm:$0xf] %vm1422, %v1295
  %1489 = vst.msk [vmem:[%s3 + $0x108] sm:$0xf] %vm1422, %v1296
  %1490 = vst.msk [vmem:[%s3 + $0x10c] sm:$0xf] %vm1422, %v1297
  %1491 = vst.msk [vmem:[%s3 + $0x110] sm:$0xf] %vm1422, %v1298
  %1492 = vst.msk [vmem:[%s3 + $0x114] sm:$0xf] %vm1422, %v1299
  %1493 = vst.msk [vmem:[%s3 + $0x118] sm:$0xf] %vm1422, %v1300
  %1494 = vst.msk [vmem:[%s3 + $0x11c] sm:$0xf] %vm1422, %v1301
  %1495 = vst.msk [vmem:[%s3 + $0x120] sm:$0xf] %vm1422, %v1302
  %1496 = vst.msk [vmem:[%s3 + $0x124] sm:$0xf] %vm1422, %v1303
  %1497 = vst.msk [vmem:[%s3 + $0x128] sm:$0xf] %vm1422, %v1304
  %1498 = vst.msk [vmem:[%s3 + $0x12c] sm:$0xf] %vm1422, %v1305
  %1499 = vst.msk [vmem:[%s3 + $0x130] sm:$0xf] %vm1422, %v1306
  %1500 = vst.msk [vmem:[%s3 + $0x134] sm:$0xf] %vm1422, %v1307
  %1501 = vst.msk [vmem:[%s3 + $0x138] sm:$0xf] %vm1422, %v1308
  %1502 = vst.msk [vmem:[%s3 + $0x13c] sm:$0xf] %vm1422, %v1309
  %1503 = vst.msk [vmem:[%s3 + $0x140] sm:$0xf] %vm1422, %v1310
  %1504 = vst.msk [vmem:[%s3 + $0x144] sm:$0xf] %vm1422, %v1311
  %1505 = vst.msk [vmem:[%s3 + $0x148] sm:$0xf] %vm1422, %v1312
  %1506 = vst.msk [vmem:[%s3 + $0x14c] sm:$0xf] %vm1422, %v1313
  %1507 = vst.msk [vmem:[%s3 + $0x150] sm:$0xf] %vm1422, %v1314
  %1508 = vst.msk [vmem:[%s3 + $0x154] sm:$0xf] %vm1422, %v1315
  %1509 = vst.msk [vmem:[%s3 + $0x158] sm:$0xf] %vm1422, %v1316
  %1510 = vst.msk [vmem:[%s3 + $0x15c] sm:$0xf] %vm1422, %v1317
  %1511 = vst.msk [vmem:[%s3 + $0x160] sm:$0xf] %vm1422, %v1318
  %1512 = vst.msk [vmem:[%s3 + $0x164] sm:$0xf] %vm1422, %v1319
  %1513 = vst.msk [vmem:[%s3 + $0x168] sm:$0xf] %vm1422, %v1320
  %1514 = vst.msk [vmem:[%s3 + $0x16c] sm:$0xf] %vm1422, %v1321
  %1515 = vst.msk [vmem:[%s3 + $0x170] sm:$0xf] %vm1422, %v1322
  %1516 = vst.msk [vmem:[%s3 + $0x174] sm:$0xf] %vm1422, %v1323
  %1517 = vst.msk [vmem:[%s3 + $0x178] sm:$0xf] %vm1422, %v1324
  %1518 = vst.msk [vmem:[%s3 + $0x17c] sm:$0xf] %vm1422, %v1325
  // Predicated region
  $region14: #{generalized_rcnn_forward.2} parent=0 // pred_check
    _
  $region15: #{generalized_rcnn_forward.2} parent=0 // pred_check_branch
    %1520 = sbr.rel (0) target = $region17
  $region16: #{generalized_rcnn_forward.2} parent=0 // pred_region
    _
  $region17: #{generalized_rcnn_forward.2} parent=0 // pred_fallthru
    _
  // Predicated region
  $region18: #{generalized_rcnn_forward.2} parent=0 // pred_check
    _
  $region19: #{generalized_rcnn_forward.2} parent=0 // pred_check_branch
    %1522 = sbr.rel (0) target = $region21
  $region20: #{generalized_rcnn_forward.2} parent=0 // pred_region
    _
  $region21: #{generalized_rcnn_forward.2} parent=0 // pred_fallthru
    _

// kernel: generalized_rcnn_forward.3
$region0: #{generalized_rcnn_forward.3}
  #allocation0 [shape = 'u32[]', space=smem, size = 0x4, offset = 0x4, fixed_abs, tag = 'smem constant byte address 0x4 - core index']
  #allocation1 [shape = 'u32[144,128]{1,0:T(1,128)}', space=vmem, size = 0x12000, scoped, tag = 'internal scratch']
  %s0 = inlined_call_operand.vmem [shape: bf16[192,144], index: 0, kind: input, shape index: {}]
  %s1 = inlined_call_operand.vmem [shape: bf16[144,32], index: 1, kind: input, shape index: {}]
  %s2 = inlined_call_operand.vmem [shape: f32[1,32], index: 2, kind: input, shape index: {}]
  %s3 = inlined_call_operand.vmem [shape: f32[2,32], index: 3, kind: input, shape index: {}]
  %s4 = inlined_call_operand.vmem [shape: bf16[16,2,128], index: 4, kind: input, shape index: {}]
  %s5 = inlined_call_operand.vmem [shape: f32[8,2], index: 5, kind: input, shape index: {}]
  %s6 = inlined_call_operand.vmem [shape: bf16[512,64], index: 6, kind: input, shape index: {}]
  %s7 = inlined_call_operand.vmem [shape: f32[1,64], index: 7, kind: input, shape index: {}]
  %s8 = inlined_call_operand.vmem [shape: bf16[64,64], index: 8, kind: input, shape index: {}]
  %s9 = inlined_call_operand.vmem [shape: f32[1,64], index: 9, kind: input, shape index: {}]
  %s10 = inlined_call_operand.vmem [shape: bf16[64,10], index: 10, kind: input, shape index: {}]
  %s11 = inlined_call_operand.vmem [shape: f32[1,10], index: 11, kind: input, shape index: {}]
  %s12 = inlined_call_operand.hbm [shape: f32[128,32], index: 12, kind: output, shape index: {0}]
  %s13 = inlined_call_operand.hbm [shape: f32[32,32], index: 13, kind: output, shape index: {1}]
  %s14 = inlined_call_operand.vmem [shape: f32[8,2], index: 14, kind: output, shape index: {2}]
  %s15 = inlined_call_operand.hbm [shape: f32[8,8], index: 15, kind: output, shape index: {3}]
  %16 = xla_tuple %s12, %s13, %s14, %s15
  %s17 = sld [smem:[#allocation0]]
  $region82: #{generalized_rcnn_forward.3} parent=0
    _
  %s19 = ssub.s32 1, %s17
  %s20 = scalar_select 0, %s19, %s17
  $region1: #{generalized_rcnn_forward.3} parent=0
    #allocation2 [shape = 'u8[65536]{0}', space=vmem, size = 0x10000, scoped, tag = 'output window, operand 0, single buffered']
    #allocation3 [shape = 's32[1]{0}', space=sflag, size = 0x4, scoped, tag = 'scoped memory for generalized_rcnn_forward.3']
    #allocation4 [shape = 'u8[16384]{0}', space=vmem, size = 0x4000, scoped, tag = 'output window, operand 1, single buffered']
    #allocation5 [shape = 's32[1]{0}', space=sflag, size = 0x4, scoped, tag = 'scoped memory for generalized_rcnn_forward.3']
    #allocation6 [shape = 'u8[4096]{0}', space=vmem, size = 0x1000, scoped, tag = 'output window, operand 3, single buffered']
    %21 = vsyncpa [#allocation3], 0
    %22 = vsyncpa [#allocation5], 0
    // Predicated region
    $region2: #{generalized_rcnn_forward.3} parent=1 // pred_check
      _
    $region3: #{generalized_rcnn_forward.3} parent=1 // pred_check_branch
      %24 = sbr.rel (0) target = $region5
    $region4: #{generalized_rcnn_forward.3} parent=1 // pred_region
      _
    $region5: #{generalized_rcnn_forward.3} parent=1 // pred_fallthru
      _
    // Predicated region
    $region6: #{generalized_rcnn_forward.3} parent=1 // pred_check
      _
    $region7: #{generalized_rcnn_forward.3} parent=1 // pred_check_branch
      %26 = sbr.rel (0) target = $region9
    $region8: #{generalized_rcnn_forward.3} parent=1 // pred_region
      _
    $region9: #{generalized_rcnn_forward.3} parent=1 // pred_fallthru
      _
    // Predicated region
    $region10: #{generalized_rcnn_forward.3} parent=1 // pred_check
      _
    $region11: #{generalized_rcnn_forward.3} parent=1 // pred_check_branch
      %28 = sbr.rel (0) target = $region13
    $region12: #{generalized_rcnn_forward.3} parent=1 // pred_region
      _
    $region13: #{generalized_rcnn_forward.3} parent=1 // pred_fallthru
      _
    // Predicated region
    $region14: #{generalized_rcnn_forward.3} parent=1 // pred_check
      _
    $region15: #{generalized_rcnn_forward.3} parent=1 // pred_check_branch
      %30 = sbr.rel (0) target = $region17
    $region16: #{generalized_rcnn_forward.3} parent=1 // pred_region
      _
    $region17: #{generalized_rcnn_forward.3} parent=1 // pred_fallthru
      _
    // Predicated region
    $region18: #{generalized_rcnn_forward.3} parent=1 // pred_check
      _
    $region19: #{generalized_rcnn_forward.3} parent=1 // pred_check_branch
      %32 = sbr.rel (0) target = $region21
    $region20: #{generalized_rcnn_forward.3} parent=1 // pred_region
      _
    $region21: #{generalized_rcnn_forward.3} parent=1 // pred_fallthru
      _
    // Predicated region
    $region22: #{generalized_rcnn_forward.3} parent=1 // pred_check
      _
    $region23: #{generalized_rcnn_forward.3} parent=1 // pred_check_branch
      %34 = sbr.rel (0) target = $region25
    $region24: #{generalized_rcnn_forward.3} parent=1 // pred_region
      _
    $region25: #{generalized_rcnn_forward.3} parent=1 // pred_fallthru
      _
    // Predicated region
    $region26: #{generalized_rcnn_forward.3} parent=1 // pred_check
      _
    $region27: #{generalized_rcnn_forward.3} parent=1 // pred_check_branch
      %36 = sbr.rel (0) target = $region29
    $region28: #{generalized_rcnn_forward.3} parent=1 // pred_region
      _
    $region29: #{generalized_rcnn_forward.3} parent=1 // pred_fallthru
      _
    // Predicated region
    $region30: #{generalized_rcnn_forward.3} parent=1 // pred_check
      _
    $region31: #{generalized_rcnn_forward.3} parent=1 // pred_check_branch
      %38 = sbr.rel (0) target = $region33
    $region32: #{generalized_rcnn_forward.3} parent=1 // pred_region
      _
    $region33: #{generalized_rcnn_forward.3} parent=1 // pred_fallthru
      _
    // Predicated region
    $region34: #{generalized_rcnn_forward.3} parent=1 // pred_check
      _
    $region35: #{generalized_rcnn_forward.3} parent=1 // pred_check_branch
      %40 = sbr.rel (0) target = $region37
    $region36: #{generalized_rcnn_forward.3} parent=1 // pred_region
      _
    $region37: #{generalized_rcnn_forward.3} parent=1 // pred_fallthru
      _
    // Predicated region
    $region38: #{generalized_rcnn_forward.3} parent=1 // pred_check
      _
    $region39: #{generalized_rcnn_forward.3} parent=1 // pred_check_branch
      %42 = sbr.rel (0) target = $region41
    $region40: #{generalized_rcnn_forward.3} parent=1 // pred_region
      _
    $region41: #{generalized_rcnn_forward.3} parent=1 // pred_fallthru
      _
    // Predicated region
    $region42: #{generalized_rcnn_forward.3} parent=1 // pred_check
      _
    $region43: #{generalized_rcnn_forward.3} parent=1 // pred_check_branch
      %44 = sbr.rel (0) target = $region45
    $region44: #{generalized_rcnn_forward.3} parent=1 // pred_region
      _
    $region45: #{generalized_rcnn_forward.3} parent=1 // pred_fallthru
      _
    // Predicated region
    $region46: #{generalized_rcnn_forward.3} parent=1 // pred_check
      _
    $region47: #{generalized_rcnn_forward.3} parent=1 // pred_check_branch
      %46 = sbr.rel (0) target = $region49
    $region48: #{generalized_rcnn_forward.3} parent=1 // pred_region
      _
    $region49: #{generalized_rcnn_forward.3} parent=1 // pred_fallthru
      _
    %v48 = vld [vmem:[%s0] sm:$0xff]
    %v49 = vld [vmem:[%s0 + $0x8] sm:$0xff]
    %v50 = vld [vmem:[%s0 + $0x10] sm:$0xff]
    %v51 = vld [vmem:[%s0 + $0x18] sm:$0xff]
    %v52 = vld [vmem:[%s0 + $0x20] sm:$0xff]
    %v53 = vld [vmem:[%s0 + $0x28] sm:$0xff]
    %v54 = vld [vmem:[%s0 + $0x30] sm:$0xff]
    %v55 = vld [vmem:[%s0 + $0x38] sm:$0xff]
    %v56 = vld [vmem:[%s0 + $0x40] sm:$0xff]
    %v57 = vld [vmem:[%s0 + $0x48] sm:$0xff]
    %v58 = vld [vmem:[%s0 + $0x50] sm:$0xff]
    %v59 = vld [vmem:[%s0 + $0x58] sm:$0xff]
    %v60 = vld [vmem:[%s0 + $0x60] sm:$0xff]
    %v61 = vld [vmem:[%s0 + $0x68] sm:$0xff]
    %v62 = vld [vmem:[%s0 + $0x70] sm:$0xff]
    %v63 = vld [vmem:[%s0 + $0x78] sm:$0xff]
    %v64 = vld [vmem:[%s0 + $0x80] sm:$0xff]
    %v65 = vld [vmem:[%s0 + $0x88] sm:$0xff]
    %v66 = vld [vmem:[%s0 + $0x90] sm:$0xff]
    %v67 = vld [vmem:[%s0 + $0x98] sm:$0xff]
    %v68 = vld [vmem:[%s0 + $0xa0] sm:$0xff]
    %v69 = vld [vmem:[%s0 + $0xa8] sm:$0xff]
    %v70 = vld [vmem:[%s0 + $0xb0] sm:$0xff]
    %v71 = vld [vmem:[%s0 + $0xb8] sm:$0xff]
    %v72 = vld [vmem:[%s1] sm:$0xf]
    %v73 = vld [vmem:[%s1 + $0x4] sm:$0xf]
    %v74 = vld [vmem:[%s1 + $0x8] sm:$0xf]
    %v75 = vld [vmem:[%s1 + $0xc] sm:$0xf]
    %v76 = vld [vmem:[%s1 + $0x10] sm:$0xf]
    %v77 = vld [vmem:[%s1 + $0x14] sm:$0xf]
    %v78 = vld [vmem:[%s1 + $0x18] sm:$0xf]
    %v79 = vld [vmem:[%s1 + $0x1c] sm:$0xf]
    %v80 = vld [vmem:[%s1 + $0x20] sm:$0xf]
    %v81 = vld [vmem:[%s1 + $0x24] sm:$0xf]
    %v82 = vld [vmem:[%s1 + $0x28] sm:$0xf]
    %v83 = vld [vmem:[%s1 + $0x2c] sm:$0xf]
    %v84 = vld [vmem:[%s1 + $0x30] sm:$0xf]
    %v85 = vld [vmem:[%s1 + $0x34] sm:$0xf]
    %v86 = vld [vmem:[%s1 + $0x38] sm:$0xf]
    %v87 = vld [vmem:[%s1 + $0x3c] sm:$0xf]
    %v88 = vld [vmem:[%s1 + $0x40] sm:$0xf]
    %v89 = vld [vmem:[%s1 + $0x44] sm:$0xf]
    %v90 = vld [vmem:[%s2] sm:$0x1]
    %v92 = vlaneseq
    %v93 = vshrl.u32 %v92, 7
    %v94 = vsub.s32 0, %v93
    %v95 = vrot.slane %v90, %v94
    %v121 = vunpack.c.l.b16 %v48
    %v122 = vunpack.c.h.b16 %v48
    %v123 = vunpack.c.l.b16 %v49
    %v124 = vunpack.c.h.b16 %v49
    %v125 = vunpack.c.l.b16 %v50
    %v126 = vunpack.c.h.b16 %v50
    %v127 = vunpack.c.l.b16 %v51
    %v128 = vunpack.c.h.b16 %v51
    %v129 = vunpack.c.l.b16 %v52
    %v130 = vunpack.c.h.b16 %v52
    %v131 = vunpack.c.l.b16 %v53
    %v132 = vunpack.c.h.b16 %v53
    %v133 = vunpack.c.l.b16 %v54
    %v134 = vunpack.c.h.b16 %v54
    %v135 = vunpack.c.l.b16 %v55
    %v136 = vunpack.c.h.b16 %v55
    %v137 = vunpack.c.l.b16 %v56
    %v138 = vunpack.c.h.b16 %v56
    %v139 = vunpack.c.l.b16 %v57
    %v140 = vunpack.c.h.b16 %v57
    %v141 = vunpack.c.l.b16 %v58
    %v142 = vunpack.c.h.b16 %v58
    %v143 = vunpack.c.l.b16 %v59
    %v144 = vunpack.c.h.b16 %v59
    %v145 = vunpack.c.l.b16 %v60
    %v146 = vunpack.c.h.b16 %v60
    %v147 = vunpack.c.l.b16 %v61
    %v148 = vunpack.c.h.b16 %v61
    %v149 = vunpack.c.l.b16 %v62
    %v150 = vunpack.c.h.b16 %v62
    %v151 = vunpack.c.l.b16 %v63
    %v152 = vunpack.c.h.b16 %v63
    %v153 = vunpack.c.l.b16 %v64
    %v154 = vunpack.c.h.b16 %v64
    %v155 = vunpack.c.l.b16 %v65
    %v156 = vunpack.c.h.b16 %v65
    %v157 = vunpack.c.l.b16 %v66
    %v158 = vunpack.c.h.b16 %v66
    %v159 = vunpack.c.l.b16 %v67
    %v160 = vunpack.c.h.b16 %v67
    %v161 = vunpack.c.l.b16 %v68
    %v162 = vunpack.c.h.b16 %v68
    %v163 = vunpack.c.l.b16 %v69
    %v164 = vunpack.c.h.b16 %v69
    %v165 = vunpack.c.l.b16 %v70
    %v166 = vunpack.c.h.b16 %v70
    %v167 = vunpack.c.l.b16 %v71
    %v168 = vunpack.c.h.b16 %v71
    %v169 = vpack.c.b16 %v123, %v121
    %v170 = vpack.c.b16 %v124, %v122
    %v171 = vpack.c.b16 %v127, %v125
    %v172 = vpack.c.b16 %v128, %v126
    %v173 = vpack.c.b16 %v131, %v129
    %v174 = vpack.c.b16 %v132, %v130
    %v175 = vpack.c.b16 %v135, %v133
    %v176 = vpack.c.b16 %v136, %v134
    %v177 = vpack.c.b16 %v139, %v137
    %v178 = vpack.c.b16 %v140, %v138
    %v179 = vpack.c.b16 %v143, %v141
    %v180 = vpack.c.b16 %v144, %v142
    %v181 = vpack.c.b16 %v147, %v145
    %v182 = vpack.c.b16 %v148, %v146
    %v183 = vpack.c.b16 %v151, %v149
    %v184 = vpack.c.b16 %v152, %v150
    %v185 = vpack.c.b16 %v155, %v153
    %v186 = vpack.c.b16 %v156, %v154
    %v187 = vpack.c.b16 %v159, %v157
    %v188 = vpack.c.b16 %v160, %v158
    %v189 = vpack.c.b16 %v163, %v161
    %v190 = vpack.c.b16 %v164, %v162
    %v191 = vpack.c.b16 %v167, %v165
    %v192 = vpack.c.b16 %v168, %v166
    %v223 = vunpack.c.l.b16 %v72
    %v224 = vunpack.c.l.b16 %v73
    %v225 = vunpack.c.l.b16 %v74
    %v226 = vunpack.c.l.b16 %v75
    %v227 = vunpack.c.l.b16 %v76
    %v228 = vunpack.c.l.b16 %v77
    %v229 = vunpack.c.l.b16 %v78
    %v230 = vunpack.c.l.b16 %v79
    %v231 = vunpack.c.l.b16 %v80
    %v232 = vunpack.c.l.b16 %v81
    %v233 = vunpack.c.l.b16 %v82
    %v234 = vunpack.c.l.b16 %v83
    %v235 = vunpack.c.l.b16 %v84
    %v236 = vunpack.c.l.b16 %v85
    %v237 = vunpack.c.l.b16 %v86
    %v238 = vunpack.c.l.b16 %v87
    %v239 = vunpack.c.l.b16 %v88
    %v240 = vunpack.c.l.b16 %v89
    %v241 = vpack.c.b16 %v224, %v223
    %v242 = vpack.c.b16 %v226, %v225
    %v243 = vpack.c.b16 %v228, %v227
    %v244 = vpack.c.b16 %v230, %v229
    %v245 = vpack.c.b16 %v232, %v231
    %v246 = vpack.c.b16 %v234, %v233
    %v247 = vpack.c.b16 %v236, %v235
    %v248 = vpack.c.b16 %v238, %v237
    %v249 = vpack.c.b16 %v240, %v239
    %vm259 = vcmask 130048
    %v261 = vsel %vm259, %v170, 0
    %v264 = vsel %vm259, %v172, 0
    %v267 = vsel %vm259, %v174, 0
    %v270 = vsel %vm259, %v176, 0
    %v273 = vsel %vm259, %v178, 0
    %v276 = vsel %vm259, %v180, 0
    %v279 = vsel %vm259, %v182, 0
    %v282 = vsel %vm259, %v184, 0
    %v285 = vsel %vm259, %v186, 0
    %v288 = vsel %vm259, %v188, 0
    %v291 = vsel %vm259, %v190, 0
    %v294 = vsel %vm259, %v192, 0
    %296 = vmatprep.subr.bf16.mxu0 0
    %297 = vmatpush1.bf16.msra.mxu0 %v241
    %298 = vmatprep.subr.bf16.mxu0 0
    %299 = vmatpush1.bf16.msra.mxu0 %v242
    %300 = vmatprep.subr.bf16.mxu0 0
    %301 = vmatpush1.bf16.msra.mxu0 %v243
    %302 = vmatprep.subr.bf16.mxu0 0
    %303 = vmatpush1.bf16.msra.mxu0 %v244
    %304 = vmatprep.subr.bf16.mxu0 0
    %305 = vmatpush1.bf16.msra.mxu0 %v245
    %306 = vmatprep.subr.bf16.mxu0 0
    %307 = vmatpush1.bf16.msra.mxu0 %v246
    %308 = vmatprep.subr.bf16.mxu0 0
    %309 = vmatpush1.bf16.msra.mxu0 %v247
    %310 = vmatprep.subr.bf16.mxu0 0
    %311 = vmatpush1.bf16.msra.mxu0 %v248
    %312 = vmatprep.subr.bf16.mxu0 0
    %313 = vmatpush1.bf16.msra.mxu0 %v249
    %314 = vmatprep.subr.bf16.mxu0 0
    %315 = vmatpush1.bf16.msra.mxu0 0
    %316 = vmatprep.subr.bf16.mxu0 0
    %317 = vmatpush1.bf16.msra.mxu0 0
    %318 = vmatprep.subr.bf16.mxu0 0
    %319 = vmatpush1.bf16.msra.mxu0 0
    %320 = vmatprep.subr.bf16.mxu0 0
    %321 = vmatpush1.bf16.msra.mxu0 0
    %322 = vmatprep.subr.bf16.mxu0 0
    %323 = vmatpush1.bf16.msra.mxu0 0
    %324 = vmatprep.subr.bf16.mxu0 0
    %325 = vmatpush1.bf16.msra.mxu0 0
    %326 = vmatprep.subr.bf16.mxu0 0
    %327 = vmatpush1.bf16.msra.mxu0 0
    %328 = vmatprep.mubr.bf16.mxu0 %v261
    %329 = vmatmul.mubr.bf16.gmra.mrb[0].mxu0 %v169
    %v330 = vpop.f32.mrb[0].mxu0
    %v331 = vadd.f32 %v95, %v330
    %v332 = vpop.f32.mrb[0].mxu0
    %v333 = vpop.f32.mrb[0].mxu0
    %v334 = vadd.f32 %v95, %v333
    %v335 = vpop.f32.mrb[0].mxu0
    %336 = vmatprep.mubr.bf16.mxu0 %v264
    %337 = vmatmul.mubr.bf16.gmra.mrb[0].mxu0 %v171
    %v338 = vpop.f32.mrb[0].mxu0
    %v339 = vadd.f32 %v95, %v338
    %v340 = vpop.f32.mrb[0].mxu0
    %v341 = vpop.f32.mrb[0].mxu0
    %v342 = vadd.f32 %v95, %v341
    %v343 = vpop.f32.mrb[0].mxu0
    %344 = vmatprep.mubr.bf16.mxu0 %v267
    %345 = vmatmul.mubr.bf16.gmra.mrb[0].mxu0 %v173
    %v346 = vpop.f32.mrb[0].mxu0
    %v347 = vadd.f32 %v95, %v346
    %v348 = vpop.f32.mrb[0].mxu0
    %v349 = vpop.f32.mrb[0].mxu0
    %v350 = vadd.f32 %v95, %v349
    %v351 = vpop.f32.mrb[0].mxu0
    %352 = vmatprep.mubr.bf16.mxu0 %v270
    %353 = vmatmul.mubr.bf16.gmra.mrb[0].mxu0 %v175
    %v354 = vpop.f32.mrb[0].mxu0
    %v355 = vadd.f32 %v95, %v354
    %v356 = vpop.f32.mrb[0].mxu0
    %v357 = vpop.f32.mrb[0].mxu0
    %v358 = vadd.f32 %v95, %v357
    %v359 = vpop.f32.mrb[0].mxu0
    %360 = vmatprep.mubr.bf16.mxu0 %v273
    %361 = vmatmul.mubr.bf16.gmra.mrb[0].mxu0 %v177
    %v362 = vpop.f32.mrb[0].mxu0
    %v363 = vadd.f32 %v95, %v362
    %v364 = vpop.f32.mrb[0].mxu0
    %v365 = vpop.f32.mrb[0].mxu0
    %v366 = vadd.f32 %v95, %v365
    %v367 = vpop.f32.mrb[0].mxu0
    %368 = vmatprep.mubr.bf16.mxu0 %v276
    %369 = vmatmul.mubr.bf16.gmra.mrb[0].mxu0 %v179
    %v370 = vpop.f32.mrb[0].mxu0
    %v371 = vadd.f32 %v95, %v370
    %v372 = vpop.f32.mrb[0].mxu0
    %v373 = vpop.f32.mrb[0].mxu0
    %v374 = vadd.f32 %v95, %v373
    %v375 = vpop.f32.mrb[0].mxu0
    %376 = vmatprep.mubr.bf16.mxu0 %v279
    %377 = vmatmul.mubr.bf16.gmra.mrb[0].mxu0 %v181
    %v378 = vpop.f32.mrb[0].mxu0
    %v379 = vadd.f32 %v95, %v378
    %v380 = vpop.f32.mrb[0].mxu0
    %v381 = vpop.f32.mrb[0].mxu0
    %v382 = vadd.f32 %v95, %v381
    %v383 = vpop.f32.mrb[0].mxu0
    %384 = vmatprep.mubr.bf16.mxu0 %v282
    %385 = vmatmul.mubr.bf16.gmra.mrb[0].mxu0 %v183
    %v386 = vpop.f32.mrb[0].mxu0
    %v387 = vadd.f32 %v95, %v386
    %v388 = vpop.f32.mrb[0].mxu0
    %v389 = vpop.f32.mrb[0].mxu0
    %v390 = vadd.f32 %v95, %v389
    %v391 = vpop.f32.mrb[0].mxu0
    %392 = vmatprep.mubr.bf16.mxu0 %v285
    %393 = vmatmul.mubr.bf16.gmra.mrb[0].mxu0 %v185
    %v394 = vpop.f32.mrb[0].mxu0
    %v395 = vadd.f32 %v95, %v394
    %v396 = vpop.f32.mrb[0].mxu0
    %v397 = vpop.f32.mrb[0].mxu0
    %v398 = vadd.f32 %v95, %v397
    %v399 = vpop.f32.mrb[0].mxu0
    %400 = vmatprep.mubr.bf16.mxu0 %v288
    %401 = vmatmul.mubr.bf16.gmra.mrb[0].mxu0 %v187
    %v402 = vpop.f32.mrb[0].mxu0
    %v403 = vadd.f32 %v95, %v402
    %v404 = vpop.f32.mrb[0].mxu0
    %v405 = vpop.f32.mrb[0].mxu0
    %v406 = vadd.f32 %v95, %v405
    %v407 = vpop.f32.mrb[0].mxu0
    %408 = vmatprep.mubr.bf16.mxu0 %v291
    %409 = vmatmul.mubr.bf16.gmra.mrb[0].mxu0 %v189
    %v410 = vpop.f32.mrb[0].mxu0
    %v411 = vadd.f32 %v95, %v410
    %v412 = vpop.f32.mrb[0].mxu0
    %v413 = vpop.f32.mrb[0].mxu0
    %v414 = vadd.f32 %v95, %v413
    %v415 = vpop.f32.mrb[0].mxu0
    %416 = vmatprep.mubr.bf16.mxu0 %v294
    %417 = vmatmul.mubr.bf16.gmra.mrb[0].mxu0 %v191
    %v418 = vpop.f32.mrb[0].mxu0
    %v419 = vadd.f32 %v95, %v418
    %v420 = vpop.f32.mrb[0].mxu0
    %v421 = vpop.f32.mrb[0].mxu0
    %v422 = vadd.f32 %v95, %v421
    %v423 = vpop.f32.mrb[0].mxu0
    %424 = vdwg.mxu0
    %v425 = vmax.f32 %v331, 0.0
    %v426 = vmax.f32 %v334, 0.0
    %v427 = vmax.f32 %v339, 0.0
    %v428 = vmax.f32 %v342, 0.0
    %v429 = vmax.f32 %v347, 0.0
    %v430 = vmax.f32 %v350, 0.0
    %v431 = vmax.f32 %v355, 0.0
    %v432 = vmax.f32 %v358, 0.0
    %v433 = vmax.f32 %v363, 0.0
    %v434 = vmax.f32 %v366, 0.0
    %v435 = vmax.f32 %v371, 0.0
    %v436 = vmax.f32 %v374, 0.0
    %v437 = vmax.f32 %v379, 0.0
    %v438 = vmax.f32 %v382, 0.0
    %v439 = vmax.f32 %v387, 0.0
    %v440 = vmax.f32 %v390, 0.0
    %v441 = vmax.f32 %v395, 0.0
    %v442 = vmax.f32 %v398, 0.0
    %v443 = vmax.f32 %v403, 0.0
    %v444 = vmax.f32 %v406, 0.0
    %v445 = vmax.f32 %v411, 0.0
    %v446 = vmax.f32 %v414, 0.0
    %v447 = vmax.f32 %v419, 0.0
    %v448 = vmax.f32 %v422, 0.0
    %vm449 = vcmask 261120
    %450 = vst.msk [vmem:[#allocation2] sm:$0xff] %vm449, %v425
    %451 = vst.msk [vmem:[#allocation2 + $0x8] sm:$0xff] %vm449, %v426
    %452 = vst.msk [vmem:[#allocation2 + $0x10] sm:$0xff] %vm449, %v427
    %453 = vst.msk [vmem:[#allocation2 + $0x18] sm:$0xff] %vm449, %v428
    %454 = vst.msk [vmem:[#allocation2 + $0x20] sm:$0xff] %vm449, %v429
    %455 = vst.msk [vmem:[#allocation2 + $0x28] sm:$0xff] %vm449, %v430
    %456 = vst.msk [vmem:[#allocation2 + $0x30] sm:$0xff] %vm449, %v431
    %457 = vst.msk [vmem:[#allocation2 + $0x38] sm:$0xff] %vm449, %v432
    %458 = vst.msk [vmem:[#allocation2 + $0x40] sm:$0xff] %vm449, %v433
    %459 = vst.msk [vmem:[#allocation2 + $0x48] sm:$0xff] %vm449, %v434
    %460 = vst.msk [vmem:[#allocation2 + $0x50] sm:$0xff] %vm449, %v435
    %461 = vst.msk [vmem:[#allocation2 + $0x58] sm:$0xff] %vm449, %v436
    %462 = vst.msk [vmem:[#allocation2 + $0x60] sm:$0xff] %vm449, %v437
    %463 = vst.msk [vmem:[#allocation2 + $0x68] sm:$0xff] %vm449, %v438
    %464 = vst.msk [vmem:[#allocation2 + $0x70] sm:$0xff] %vm449, %v439
    %465 = vst.msk [vmem:[#allocation2 + $0x78] sm:$0xff] %vm449, %v440
    %v466 = vadd.f32 %v441, %v445
    %v467 = vadd.f32 %v442, %v446
    %v468 = vadd.f32 %v443, %v447
    %v469 = vadd.f32 %v444, %v448
    %v470 = vmul.f32 %v466, 0.5
    %v471 = vmul.f32 %v467, 0.5
    %v472 = vmul.f32 %v468, 0.5
    %v473 = vmul.f32 %v469, 0.5
    %474 = vst.msk [vmem:[#allocation4] sm:$0xff] %vm449, %v470
    %475 = vst.msk [vmem:[#allocation4 + $0x8] sm:$0xff] %vm449, %v471
    %476 = vst.msk [vmem:[#allocation4 + $0x10] sm:$0xff] %vm449, %v472
    %477 = vst.msk [vmem:[#allocation4 + $0x18] sm:$0xff] %vm449, %v473
    %v478 = vld [vmem:[%s3] sm:$0x3]
    %v480 = vsel %vm449, %v478, 0
    %482 = vmatprep.subr.mxu0 0.0
    %483 = vmatpush1.msra.mxu0 %v470
    %484 = vmatprep.subr.mxu0 0.0
    %485 = vmatpush1.msra.mxu0 %v471
    %486 = vmatprep.subr.mxu0 0.0
    %487 = vmatpush1.msra.mxu0 %v472
    %488 = vmatprep.subr.mxu0 0.0
    %489 = vmatpush1.msra.mxu0 %v473
    %490 = vmatprep.subr.mxu0 0.0
    %491 = vmatpush1.msra.mxu0 0.0
    %492 = vmatprep.subr.mxu0 0.0
    %493 = vmatpush1.msra.mxu0 0.0
    %494 = vmatprep.subr.mxu0 0.0
    %495 = vmatpush1.msra.mxu0 0.0
    %496 = vmatprep.subr.mxu0 0.0
    %497 = vmatpush1.msra.mxu0 0.0
    %498 = vmatprep.subr.mxu0 0.0
    %499 = vmatpush1.msra.mxu0 0.0
    %500 = vmatprep.subr.mxu0 0.0
    %501 = vmatpush1.msra.mxu0 0.0
    %502 = vmatprep.subr.mxu0 0.0
    %503 = vmatpush1.msra.mxu0 0.0
    %504 = vmatprep.subr.mxu0 0.0
    %505 = vmatpush1.msra.mxu0 0.0
    %506 = vmatprep.subr.mxu0 0.0
    %507 = vmatpush1.msra.mxu0 0.0
    %508 = vmatprep.subr.mxu0 0.0
    %509 = vmatpush1.msra.mxu0 0.0
    %510 = vmatprep.subr.mxu0 0.0
    %511 = vmatpush1.msra.mxu0 0.0
    %512 = vmatprep.subr.mxu0 0.0
    %513 = vmatpush1.msra.mxu0 0.0
    %514 = vmatprep.subr.mxu0 0.0
    %515 = vmatpush1.msra.mxu0 0.0
    %516 = vmatprep.subr.mxu0 0.0
    %517 = vmatpush1.msra.mxu0 0.0
    %518 = vmatprep.subr.mxu0 0.0
    %519 = vmatpush1.msra.mxu0 0.0
    %520 = vmatprep.subr.mxu0 0.0
    %521 = vmatpush1.msra.mxu0 0.0
    %522 = vmatprep.subr.mxu0 0.0
    %523 = vmatpush1.msra.mxu0 0.0
    %524 = vmatprep.subr.mxu0 0.0
    %525 = vmatpush1.msra.mxu0 0.0
    %526 = vmatprep.subr.mxu0 0.0
    %527 = vmatpush1.msra.mxu0 0.0
    %528 = vmatprep.subr.mxu0 0.0
    %529 = vmatpush1.msra.mxu0 0.0
    %530 = vmatprep.subr.mxu0 0.0
    %531 = vmatpush1.msra.mxu0 0.0
    %532 = vmatprep.subr.mxu0 0.0
    %533 = vmatpush1.msra.mxu0 0.0
    %534 = vmatprep.subr.mxu0 0.0
    %535 = vmatpush1.msra.mxu0 0.0
    %536 = vmatprep.subr.mxu0 0.0
    %537 = vmatpush1.msra.mxu0 0.0
    %538 = vmatprep.subr.mxu0 0.0
    %539 = vmatpush1.msra.mxu0 0.0
    %540 = vmatprep.subr.mxu0 0.0
    %541 = vmatpush1.msra.mxu0 0.0
    %542 = vmatprep.subr.mxu0 0.0
    %543 = vmatpush1.msra.mxu0 0.0
    %544 = vmatprep.subr.mxu0 0.0
    %545 = vmatpush1.msra.mxu0 0.0
    %546 = vmatprep.mubr.f32.mxu0 0.0
    %547 = vmatmul.mubr.f32.gmra.mrb[0].mxu0 %v480
    %v548 = vpop.f32.mrb[0].mxu0
    %v549 = vadd.f32 0.0, %v548
    %v550 = vpop.f32.mrb[0].mxu0
    %551 = vdwg.mxu0
    %v552 = vpack.c.bf16 %v426, %v425
    %v553 = vpack.c.bf16 %v428, %v427
    %v554 = vpack.c.bf16 %v430, %v429
    %v555 = vpack.c.bf16 %v432, %v431
    %v556 = vpack.c.bf16 %v434, %v433
    %v557 = vpack.c.bf16 %v436, %v435
    %v558 = vpack.c.bf16 %v438, %v437
    %v559 = vpack.c.bf16 %v440, %v439
    %v560 = vld [vmem:[%s4] sm:$0x1]
    %561 = vmatprep.subr.bf16.mxu0 0
    %562 = vmatpush1.bf16.msra.mxu0 %v552
    %563 = vmatprep.subr.bf16.mxu0 0
    %564 = vmatpush1.bf16.msra.mxu0 %v553
    %565 = vmatprep.subr.bf16.mxu0 0
    %566 = vmatpush1.bf16.msra.mxu0 %v554
    %567 = vmatprep.subr.bf16.mxu0 0
    %568 = vmatpush1.bf16.msra.mxu0 %v555
    %569 = vmatprep.subr.bf16.mxu0 0
    %570 = vmatpush1.bf16.msra.mxu0 %v556
    %571 = vmatprep.subr.bf16.mxu0 0
    %572 = vmatpush1.bf16.msra.mxu0 %v557
    %573 = vmatprep.subr.bf16.mxu0 0
    %574 = vmatpush1.bf16.msra.mxu0 %v558
    %575 = vmatprep.subr.bf16.mxu0 0
    %576 = vmatpush1.bf16.msra.mxu0 %v559
    %577 = vmatprep.subr.bf16.mxu0 0
    %578 = vmatpush1.bf16.msra.mxu0 0
    %579 = vmatprep.subr.bf16.mxu0 0
    %580 = vmatpush1.bf16.msra.mxu0 0
    %581 = vmatprep.subr.bf16.mxu0 0
    %582 = vmatpush1.bf16.msra.mxu0 0
    %583 = vmatprep.subr.bf16.mxu0 0
    %584 = vmatpush1.bf16.msra.mxu0 0
    %585 = vmatprep.subr.bf16.mxu0 0
    %586 = vmatpush1.bf16.msra.mxu0 0
    %587 = vmatprep.subr.bf16.mxu0 0
    %588 = vmatpush1.bf16.msra.mxu0 0
    %589 = vmatprep.subr.bf16.mxu0 0
    %590 = vmatpush1.bf16.msra.mxu0 0
    %591 = vmatprep.subr.bf16.mxu0 0
    %592 = vmatpush1.bf16.msra.mxu0 0
    %593 = vmatprep.mubr.bf16.mxu0 0
    %594 = vmatmul.mubr.bf16.gmra.mrb[0].mxu0 %v560
    %v595 = vpop.f32.mrb[0].mxu0
    %v596 = vadd.f32 0.0, %v595
    %v597 = vpop.f32.mrb[0].mxu0
    %v598 = vpop.f32.mrb[0].mxu0
    %v599 = vpop.f32.mrb[0].mxu0
    %600 = vdwg.mxu0
    %v601 = vmul.f32 %v596, %v549
    %v602 = vpack.c.bf16 %v601, %v601
    %v603 = vld [vmem:[%s6] sm:$0xf]
    %v604 = vld [vmem:[%s6 + $0x4] sm:$0xf]
    %v605 = vld [vmem:[%s6 + $0x8] sm:$0xf]
    %v606 = vld [vmem:[%s6 + $0xc] sm:$0xf]
    %s607 = scalar_lea.vmem %s4, 1
    %v608 = vld [vmem:[%s607] sm:$0x1]
    %609 = vmatprep.subr.bf16.mxu0 0
    %610 = vmatpush1.bf16.msra.mxu0 %v552
    %611 = vmatprep.subr.bf16.mxu0 0
    %612 = vmatpush1.bf16.msra.mxu0 %v553
    %613 = vmatprep.subr.bf16.mxu0 0
    %614 = vmatpush1.bf16.msra.mxu0 %v554
    %615 = vmatprep.subr.bf16.mxu0 0
    %616 = vmatpush1.bf16.msra.mxu0 %v555
    %617 = vmatprep.subr.bf16.mxu0 0
    %618 = vmatpush1.bf16.msra.mxu0 %v556
    %619 = vmatprep.subr.bf16.mxu0 0
    %620 = vmatpush1.bf16.msra.mxu0 %v557
    %621 = vmatprep.subr.bf16.mxu0 0
    %622 = vmatpush1.bf16.msra.mxu0 %v558
    %623 = vmatprep.subr.bf16.mxu0 0
    %624 = vmatpush1.bf16.msra.mxu0 %v559
    %625 = vmatprep.subr.bf16.mxu0 0
    %626 = vmatpush1.bf16.msra.mxu0 0
    %627 = vmatprep.subr.bf16.mxu0 0
    %628 = vmatpush1.bf16.msra.mxu0 0
    %629 = vmatprep.subr.bf16.mxu0 0
    %630 = vmatpush1.bf16.msra.mxu0 0
    %631 = vmatprep.subr.bf16.mxu0 0
    %632 = vmatpush1.bf16.msra.mxu0 0
    %633 = vmatprep.subr.bf16.mxu0 0
    %634 = vmatpush1.bf16.msra.mxu0 0
    %635 = vmatprep.subr.bf16.mxu0 0
    %636 = vmatpush1.bf16.msra.mxu0 0
    %637 = vmatprep.subr.bf16.mxu0 0
    %638 = vmatpush1.bf16.msra.mxu0 0
    %639 = vmatprep.subr.bf16.mxu0 0
    %640 = vmatpush1.bf16.msra.mxu0 0
    %641 = vmatprep.mubr.bf16.mxu0 0
    %642 = vmatmul.mubr.bf16.gmra.mrb[0].mxu0 %v608
    %v643 = vpop.f32.mrb[0].mxu0
    %v644 = vadd.f32 0.0, %v643
    %v645 = vpop.f32.mrb[0].mxu0
    %v646 = vpop.f32.mrb[0].mxu0
    %v647 = vpop.f32.mrb[0].mxu0
    %648 = vdwg.mxu0
    %v649 = vmul.f32 %v644, %v549
    %v650 = vpack.c.bf16 %v649, %v649
    %v651 = vld [vmem:[%s6 + $0x10] sm:$0xf]
    %v652 = vld [vmem:[%s6 + $0x14] sm:$0xf]
    %v653 = vld [vmem:[%s6 + $0x18] sm:$0xf]
    %v654 = vld [vmem:[%s6 + $0x1c] sm:$0xf]
    %v659 = vunpack.c.l.b16 %v651
    %v660 = vunpack.c.l.b16 %v652
    %v661 = vunpack.c.l.b16 %v653
    %v662 = vunpack.c.l.b16 %v654
    %v663 = vpack.c.b16 %v660, %v659
    %v664 = vpack.c.b16 %v662, %v661
    %v668 = vsel %vm449, %v650, 0
    %670 = vmatprep.subr.bf16.mxu0 0
    %671 = vmatpush1.bf16.msra.mxu0 %v663
    %672 = vmatprep.subr.bf16.mxu0 0
    %673 = vmatpush1.bf16.msra.mxu0 %v664
    %674 = vmatprep.subr.bf16.mxu0 0
    %675 = vmatpush1.bf16.msra.mxu0 0
    %676 = vmatprep.subr.bf16.mxu0 0
    %677 = vmatpush1.bf16.msra.mxu0 0
    %678 = vmatprep.subr.bf16.mxu0 0
    %679 = vmatpush1.bf16.msra.mxu0 0
    %680 = vmatprep.subr.bf16.mxu0 0
    %681 = vmatpush1.bf16.msra.mxu0 0
    %682 = vmatprep.subr.bf16.mxu0 0
    %683 = vmatpush1.bf16.msra.mxu0 0
    %684 = vmatprep.subr.bf16.mxu0 0
    %685 = vmatpush1.bf16.msra.mxu0 0
    %686 = vmatprep.subr.bf16.mxu0 0
    %687 = vmatpush1.bf16.msra.mxu0 0
    %688 = vmatprep.subr.bf16.mxu0 0
    %689 = vmatpush1.bf16.msra.mxu0 0
    %690 = vmatprep.subr.bf16.mxu0 0
    %691 = vmatpush1.bf16.msra.mxu0 0
    %692 = vmatprep.subr.bf16.mxu0 0
    %693 = vmatpush1.bf16.msra.mxu0 0
    %694 = vmatprep.subr.bf16.mxu0 0
    %695 = vmatpush1.bf16.msra.mxu0 0
    %696 = vmatprep.subr.bf16.mxu0 0
    %697 = vmatpush1.bf16.msra.mxu0 0
    %698 = vmatprep.subr.bf16.mxu0 0
    %699 = vmatpush1.bf16.msra.mxu0 0
    %700 = vmatprep.subr.bf16.mxu0 0
    %701 = vmatpush1.bf16.msra.mxu0 0
    %702 = vmatprep.mubr.bf16.mxu0 0
    %703 = vmatmul.mubr.bf16.gmra.mrb[0].mxu0 %v668
    %v704 = vpop.f32.mrb[0].mxu0
    %v705 = vadd.f32 0.0, %v704
    %v706 = vpop.f32.mrb[0].mxu0
    %v707 = vpop.f32.mrb[0].mxu0
    %v708 = vpop.f32.mrb[0].mxu0
    %709 = vdwg.mxu0
    %v714 = vunpack.c.l.b16 %v603
    %v715 = vunpack.c.l.b16 %v604
    %v716 = vunpack.c.l.b16 %v605
    %v717 = vunpack.c.l.b16 %v606
    %v718 = vpack.c.b16 %v715, %v714
    %v719 = vpack.c.b16 %v717, %v716
    %v723 = vsel %vm449, %v602, 0
    %725 = vmatprep.subr.bf16.mxu0 0
    %726 = vmatpush1.bf16.msra.mxu0 %v718
    %727 = vmatprep.subr.bf16.mxu0 0
    %728 = vmatpush1.bf16.msra.mxu0 %v719
    %729 = vmatprep.subr.bf16.mxu0 0
    %730 = vmatpush1.bf16.msra.mxu0 0
    %731 = vmatprep.subr.bf16.mxu0 0
    %732 = vmatpush1.bf16.msra.mxu0 0
    %733 = vmatprep.subr.bf16.mxu0 0
    %734 = vmatpush1.bf16.msra.mxu0 0
    %735 = vmatprep.subr.bf16.mxu0 0
    %736 = vmatpush1.bf16.msra.mxu0 0
    %737 = vmatprep.subr.bf16.mxu0 0
    %738 = vmatpush1.bf16.msra.mxu0 0
    %739 = vmatprep.subr.bf16.mxu0 0
    %740 = vmatpush1.bf16.msra.mxu0 0
    %741 = vmatprep.subr.bf16.mxu0 0
    %742 = vmatpush1.bf16.msra.mxu0 0
    %743 = vmatprep.subr.bf16.mxu0 0
    %744 = vmatpush1.bf16.msra.mxu0 0
    %745 = vmatprep.subr.bf16.mxu0 0
    %746 = vmatpush1.bf16.msra.mxu0 0
    %747 = vmatprep.subr.bf16.mxu0 0
    %748 = vmatpush1.bf16.msra.mxu0 0
    %749 = vmatprep.subr.bf16.mxu0 0
    %750 = vmatpush1.bf16.msra.mxu0 0
    %751 = vmatprep.subr.bf16.mxu0 0
    %752 = vmatpush1.bf16.msra.mxu0 0
    %753 = vmatprep.subr.bf16.mxu0 0
    %754 = vmatpush1.bf16.msra.mxu0 0
    %755 = vmatprep.subr.bf16.mxu0 0
    %756 = vmatpush1.bf16.msra.mxu0 0
    %757 = vmatprep.mubr.bf16.mxu0 0
    %758 = vmatmul.mubr.bf16.gmra.mrb[0].mxu0 %v723
    %v759 = vpop.f32.mrb[0].mxu0
    %v760 = vadd.f32 %v705, %v759
    %v761 = vpop.f32.mrb[0].mxu0
    %v762 = vpop.f32.mrb[0].mxu0
    %v763 = vpop.f32.mrb[0].mxu0
    %764 = vdwg.mxu0
    %s765 = scalar_lea.vmem %s4, 2
    %v766 = vld [vmem:[%s765] sm:$0x1]
    %767 = vmatprep.subr.bf16.mxu0 0
    %768 = vmatpush1.bf16.msra.mxu0 %v552
    %769 = vmatprep.subr.bf16.mxu0 0
    %770 = vmatpush1.bf16.msra.mxu0 %v553
    %771 = vmatprep.subr.bf16.mxu0 0
    %772 = vmatpush1.bf16.msra.mxu0 %v554
    %773 = vmatprep.subr.bf16.mxu0 0
    %774 = vmatpush1.bf16.msra.mxu0 %v555
    %775 = vmatprep.subr.bf16.mxu0 0
    %776 = vmatpush1.bf16.msra.mxu0 %v556
    %777 = vmatprep.subr.bf16.mxu0 0
    %778 = vmatpush1.bf16.msra.mxu0 %v557
    %779 = vmatprep.subr.bf16.mxu0 0
    %780 = vmatpush1.bf16.msra.mxu0 %v558
    %781 = vmatprep.subr.bf16.mxu0 0
    %782 = vmatpush1.bf16.msra.mxu0 %v559
    %783 = vmatprep.subr.bf16.mxu0 0
    %784 = vmatpush1.bf16.msra.mxu0 0
    %785 = vmatprep.subr.bf16.mxu0 0
    %786 = vmatpush1.bf16.msra.mxu0 0
    %787 = vmatprep.subr.bf16.mxu0 0
    %788 = vmatpush1.bf16.msra.mxu0 0
    %789 = vmatprep.subr.bf16.mxu0 0
    %790 = vmatpush1.bf16.msra.mxu0 0
    %791 = vmatprep.subr.bf16.mxu0 0
    %792 = vmatpush1.bf16.msra.mxu0 0
    %793 = vmatprep.subr.bf16.mxu0 0
    %794 = vmatpush1.bf16.msra.mxu0 0
    %795 = vmatprep.subr.bf16.mxu0 0
    %796 = vmatpush1.bf16.msra.mxu0 0
    %797 = vmatprep.subr.bf16.mxu0 0
    %798 = vmatpush1.bf16.msra.mxu0 0
    %799 = vmatprep.mubr.bf16.mxu0 0
    %800 = vmatmul.mubr.bf16.gmra.mrb[0].mxu0 %v766
    %v801 = vpop.f32.mrb[0].mxu0
    %v802 = vadd.f32 0.0, %v801
    %v803 = vpop.f32.mrb[0].mxu0
    %v804 = vpop.f32.mrb[0].mxu0
    %v805 = vpop.f32.mrb[0].mxu0
    %806 = vdwg.mxu0
    %v807 = vmul.f32 %v802, %v549
    %v808 = vpack.c.bf16 %v807, %v807
    %v809 = vld [vmem:[%s6 + $0x20] sm:$0xf]
    %v810 = vld [vmem:[%s6 + $0x24] sm:$0xf]
    %v811 = vld [vmem:[%s6 + $0x28] sm:$0xf]
    %v812 = vld [vmem:[%s6 + $0x2c] sm:$0xf]
    %v817 = vunpack.c.l.b16 %v809
    %v818 = vunpack.c.l.b16 %v810
    %v819 = vunpack.c.l.b16 %v811
    %v820 = vunpack.c.l.b16 %v812
    %v821 = vpack.c.b16 %v818, %v817
    %v822 = vpack.c.b16 %v820, %v819
    %v826 = vsel %vm449, %v808, 0
    %828 = vmatprep.subr.bf16.mxu0 0
    %829 = vmatpush1.bf16.msra.mxu0 %v821
    %830 = vmatprep.subr.bf16.mxu0 0
    %831 = vmatpush1.bf16.msra.mxu0 %v822
    %832 = vmatprep.subr.bf16.mxu0 0
    %833 = vmatpush1.bf16.msra.mxu0 0
    %834 = vmatprep.subr.bf16.mxu0 0
    %835 = vmatpush1.bf16.msra.mxu0 0
    %836 = vmatprep.subr.bf16.mxu0 0
    %837 = vmatpush1.bf16.msra.mxu0 0
    %838 = vmatprep.subr.bf16.mxu0 0
    %839 = vmatpush1.bf16.msra.mxu0 0
    %840 = vmatprep.subr.bf16.mxu0 0
    %841 = vmatpush1.bf16.msra.mxu0 0
    %842 = vmatprep.subr.bf16.mxu0 0
    %843 = vmatpush1.bf16.msra.mxu0 0
    %844 = vmatprep.subr.bf16.mxu0 0
    %845 = vmatpush1.bf16.msra.mxu0 0
    %846 = vmatprep.subr.bf16.mxu0 0
    %847 = vmatpush1.bf16.msra.mxu0 0
    %848 = vmatprep.subr.bf16.mxu0 0
    %849 = vmatpush1.bf16.msra.mxu0 0
    %850 = vmatprep.subr.bf16.mxu0 0
    %851 = vmatpush1.bf16.msra.mxu0 0
    %852 = vmatprep.subr.bf16.mxu0 0
    %853 = vmatpush1.bf16.msra.mxu0 0
    %854 = vmatprep.subr.bf16.mxu0 0
    %855 = vmatpush1.bf16.msra.mxu0 0
    %856 = vmatprep.subr.bf16.mxu0 0
    %857 = vmatpush1.bf16.msra.mxu0 0
    %858 = vmatprep.subr.bf16.mxu0 0
    %859 = vmatpush1.bf16.msra.mxu0 0
    %860 = vmatprep.mubr.bf16.mxu0 0
    %861 = vmatmul.mubr.bf16.gmra.mrb[0].mxu0 %v826
    %v862 = vpop.f32.mrb[0].mxu0
    %v863 = vadd.f32 0.0, %v862
    %v864 = vpop.f32.mrb[0].mxu0
    %v865 = vpop.f32.mrb[0].mxu0
    %v866 = vpop.f32.mrb[0].mxu0
    %867 = vdwg.mxu0
    %v868 = vadd.f32 %v760, %v863
    %s869 = scalar_lea.vmem %s4, 3
    %v870 = vld [vmem:[%s869] sm:$0x1]
    %871 = vmatprep.subr.bf16.mxu0 0
    %872 = vmatpush1.bf16.msra.mxu0 %v552
    %873 = vmatprep.subr.bf16.mxu0 0
    %874 = vmatpush1.bf16.msra.mxu0 %v553
    %875 = vmatprep.subr.bf16.mxu0 0
    %876 = vmatpush1.bf16.msra.mxu0 %v554
    %877 = vmatprep.subr.bf16.mxu0 0
    %878 = vmatpush1.bf16.msra.mxu0 %v555
    %879 = vmatprep.subr.bf16.mxu0 0
    %880 = vmatpush1.bf16.msra.mxu0 %v556
    %881 = vmatprep.subr.bf16.mxu0 0
    %882 = vmatpush1.bf16.msra.mxu0 %v557
    %883 = vmatprep.subr.bf16.mxu0 0
    %884 = vmatpush1.bf16.msra.mxu0 %v558
    %885 = vmatprep.subr.bf16.mxu0 0
    %886 = vmatpush1.bf16.msra.mxu0 %v559
    %887 = vmatprep.subr.bf16.mxu0 0
    %888 = vmatpush1.bf16.msra.mxu0 0
    %889 = vmatprep.subr.bf16.mxu0 0
    %890 = vmatpush1.bf16.msra.mxu0 0
    %891 = vmatprep.subr.bf16.mxu0 0
    %892 = vmatpush1.bf16.msra.mxu0 0
    %893 = vmatprep.subr.bf16.mxu0 0
    %894 = vmatpush1.bf16.msra.mxu0 0
    %895 = vmatprep.subr.bf16.mxu0 0
    %896 = vmatpush1.bf16.msra.mxu0 0
    %897 = vmatprep.subr.bf16.mxu0 0
    %898 = vmatpush1.bf16.msra.mxu0 0
    %899 = vmatprep.subr.bf16.mxu0 0
    %900 = vmatpush1.bf16.msra.mxu0 0
    %901 = vmatprep.subr.bf16.mxu0 0
    %902 = vmatpush1.bf16.msra.mxu0 0
    %903 = vmatprep.mubr.bf16.mxu0 0
    %904 = vmatmul.mubr.bf16.gmra.mrb[0].mxu0 %v870
    %v905 = vpop.f32.mrb[0].mxu0
    %v906 = vadd.f32 0.0, %v905
    %v907 = vpop.f32.mrb[0].mxu0
    %v908 = vpop.f32.mrb[0].mxu0
    %v909 = vpop.f32.mrb[0].mxu0
    %910 = vdwg.mxu0
    %v911 = vmul.f32 %v906, %v549
    %v912 = vpack.c.bf16 %v911, %v911
    %v913 = vld [vmem:[%s6 + $0x30] sm:$0xf]
    %v914 = vld [vmem:[%s6 + $0x34] sm:$0xf]
    %v915 = vld [vmem:[%s6 + $0x38] sm:$0xf]
    %v916 = vld [vmem:[%s6 + $0x3c] sm:$0xf]
    %v921 = vunpack.c.l.b16 %v913
    %v922 = vunpack.c.l.b16 %v914
    %v923 = vunpack.c.l.b16 %v915
    %v924 = vunpack.c.l.b16 %v916
    %v925 = vpack.c.b16 %v922, %v921
    %v926 = vpack.c.b16 %v924, %v923
    %v930 = vsel %vm449, %v912, 0
    %932 = vmatprep.subr.bf16.mxu0 0
    %933 = vmatpush1.bf16.msra.mxu0 %v925
    %934 = vmatprep.subr.bf16.mxu0 0
    %935 = vmatpush1.bf16.msra.mxu0 %v926
    %936 = vmatprep.subr.bf16.mxu0 0
    %937 = vmatpush1.bf16.msra.mxu0 0
    %938 = vmatprep.subr.bf16.mxu0 0
    %939 = vmatpush1.bf16.msra.mxu0 0
    %940 = vmatprep.subr.bf16.mxu0 0
    %941 = vmatpush1.bf16.msra.mxu0 0
    %942 = vmatprep.subr.bf16.mxu0 0
    %943 = vmatpush1.bf16.msra.mxu0 0
    %944 = vmatprep.subr.bf16.mxu0 0
    %945 = vmatpush1.bf16.msra.mxu0 0
    %946 = vmatprep.subr.bf16.mxu0 0
    %947 = vmatpush1.bf16.msra.mxu0 0
    %948 = vmatprep.subr.bf16.mxu0 0
    %949 = vmatpush1.bf16.msra.mxu0 0
    %950 = vmatprep.subr.bf16.mxu0 0
    %951 = vmatpush1.bf16.msra.mxu0 0
    %952 = vmatprep.subr.bf16.mxu0 0
    %953 = vmatpush1.bf16.msra.mxu0 0
    %954 = vmatprep.subr.bf16.mxu0 0
    %955 = vmatpush1.bf16.msra.mxu0 0
    %956 = vmatprep.subr.bf16.mxu0 0
    %957 = vmatpush1.bf16.msra.mxu0 0
    %958 = vmatprep.subr.bf16.mxu0 0
    %959 = vmatpush1.bf16.msra.mxu0 0
    %960 = vmatprep.subr.bf16.mxu0 0
    %961 = vmatpush1.bf16.msra.mxu0 0
    %962 = vmatprep.subr.bf16.mxu0 0
    %963 = vmatpush1.bf16.msra.mxu0 0
    %964 = vmatprep.mubr.bf16.mxu0 0
    %965 = vmatmul.mubr.bf16.gmra.mrb[0].mxu0 %v930
    %v966 = vpop.f32.mrb[0].mxu0
    %v967 = vadd.f32 0.0, %v966
    %v968 = vpop.f32.mrb[0].mxu0
    %v969 = vpop.f32.mrb[0].mxu0
    %v970 = vpop.f32.mrb[0].mxu0
    %971 = vdwg.mxu0
    %v972 = vadd.f32 %v868, %v967
    %s973 = scalar_lea.vmem %s4, 4
    %v974 = vld [vmem:[%s973] sm:$0x1]
    %975 = vmatprep.subr.bf16.mxu0 0
    %976 = vmatpush1.bf16.msra.mxu0 %v552
    %977 = vmatprep.subr.bf16.mxu0 0
    %978 = vmatpush1.bf16.msra.mxu0 %v553
    %979 = vmatprep.subr.bf16.mxu0 0
    %980 = vmatpush1.bf16.msra.mxu0 %v554
    %981 = vmatprep.subr.bf16.mxu0 0
    %982 = vmatpush1.bf16.msra.mxu0 %v555
    %983 = vmatprep.subr.bf16.mxu0 0
    %984 = vmatpush1.bf16.msra.mxu0 %v556
    %985 = vmatprep.subr.bf16.mxu0 0
    %986 = vmatpush1.bf16.msra.mxu0 %v557
    %987 = vmatprep.subr.bf16.mxu0 0
    %988 = vmatpush1.bf16.msra.mxu0 %v558
    %989 = vmatprep.subr.bf16.mxu0 0
    %990 = vmatpush1.bf16.msra.mxu0 %v559
    %991 = vmatprep.subr.bf16.mxu0 0
    %992 = vmatpush1.bf16.msra.mxu0 0
    %993 = vmatprep.subr.bf16.mxu0 0
    %994 = vmatpush1.bf16.msra.mxu0 0
    %995 = vmatprep.subr.bf16.mxu0 0
    %996 = vmatpush1.bf16.msra.mxu0 0
    %997 = vmatprep.subr.bf16.mxu0 0
    %998 = vmatpush1.bf16.msra.mxu0 0
    %999 = vmatprep.subr.bf16.mxu0 0
    %1000 = vmatpush1.bf16.msra.mxu0 0
    %1001 = vmatprep.subr.bf16.mxu0 0
    %1002 = vmatpush1.bf16.msra.mxu0 0
    %1003 = vmatprep.subr.bf16.mxu0 0
    %1004 = vmatpush1.bf16.msra.mxu0 0
    %1005 = vmatprep.subr.bf16.mxu0 0
    %1006 = vmatpush1.bf16.msra.mxu0 0
    %1007 = vmatprep.mubr.bf16.mxu0 0
    %1008 = vmatmul.mubr.bf16.gmra.mrb[0].mxu0 %v974
    %v1009 = vpop.f32.mrb[0].mxu0
    %v1010 = vadd.f32 0.0, %v1009
    %v1011 = vpop.f32.mrb[0].mxu0
    %v1012 = vpop.f32.mrb[0].mxu0
    %v1013 = vpop.f32.mrb[0].mxu0
    %1014 = vdwg.mxu0
    %v1015 = vmul.f32 %v1010, %v549
    %v1016 = vpack.c.bf16 %v1015, %v1015
    %v1017 = vld [vmem:[%s6 + $0x40] sm:$0xf]
    %v1018 = vld [vmem:[%s6 + $0x44] sm:$0xf]
    %v1019 = vld [vmem:[%s6 + $0x48] sm:$0xf]
    %v1020 = vld [vmem:[%s6 + $0x4c] sm:$0xf]
    %v1025 = vunpack.c.l.b16 %v1017
    %v1026 = vunpack.c.l.b16 %v1018
    %v1027 = vunpack.c.l.b16 %v1019
    %v1028 = vunpack.c.l.b16 %v1020
    %v1029 = vpack.c.b16 %v1026, %v1025
    %v1030 = vpack.c.b16 %v1028, %v1027
    %v1034 = vsel %vm449, %v1016, 0
    %1036 = vmatprep.subr.bf16.mxu0 0
    %1037 = vmatpush1.bf16.msra.mxu0 %v1029
    %1038 = vmatprep.subr.bf16.mxu0 0
    %1039 = vmatpush1.bf16.msra.mxu0 %v1030
    %1040 = vmatprep.subr.bf16.mxu0 0
    %1041 = vmatpush1.bf16.msra.mxu0 0
    %1042 = vmatprep.subr.bf16.mxu0 0
    %1043 = vmatpush1.bf16.msra.mxu0 0
    %1044 = vmatprep.subr.bf16.mxu0 0
    %1045 = vmatpush1.bf16.msra.mxu0 0
    %1046 = vmatprep.subr.bf16.mxu0 0
    %1047 = vmatpush1.bf16.msra.mxu0 0
    %1048 = vmatprep.subr.bf16.mxu0 0
    %1049 = vmatpush1.bf16.msra.mxu0 0
    %1050 = vmatprep.subr.bf16.mxu0 0
    %1051 = vmatpush1.bf16.msra.mxu0 0
    %1052 = vmatprep.subr.bf16.mxu0 0
    %1053 = vmatpush1.bf16.msra.mxu0 0
    %1054 = vmatprep.subr.bf16.mxu0 0
    %1055 = vmatpush1.bf16.msra.mxu0 0
    %1056 = vmatprep.subr.bf16.mxu0 0
    %1057 = vmatpush1.bf16.msra.mxu0 0
    %1058 = vmatprep.subr.bf16.mxu0 0
    %1059 = vmatpush1.bf16.msra.mxu0 0
    %1060 = vmatprep.subr.bf16.mxu0 0
    %1061 = vmatpush1.bf16.msra.mxu0 0
    %1062 = vmatprep.subr.bf16.mxu0 0
    %1063 = vmatpush1.bf16.msra.mxu0 0
    %1064 = vmatprep.subr.bf16.mxu0 0
    %1065 = vmatpush1.bf16.msra.mxu0 0
    %1066 = vmatprep.subr.bf16.mxu0 0
    %1067 = vmatpush1.bf16.msra.mxu0 0
    %1068 = vmatprep.mubr.bf16.mxu0 0
    %1069 = vmatmul.mubr.bf16.gmra.mrb[0].mxu0 %v1034
    %v1070 = vpop.f32.mrb[0].mxu0
    %v1071 = vadd.f32 0.0, %v1070
    %v1072 = vpop.f32.mrb[0].mxu0
    %v1073 = vpop.f32.mrb[0].mxu0
    %v1074 = vpop.f32.mrb[0].mxu0
    %1075 = vdwg.mxu0
    %v1076 = vadd.f32 %v972, %v1071
    %s1077 = scalar_lea.vmem %s4, 5
    %v1078 = vld [vmem:[%s1077] sm:$0x1]
    %1079 = vmatprep.subr.bf16.mxu0 0
    %1080 = vmatpush1.bf16.msra.mxu0 %v552
    %1081 = vmatprep.subr.bf16.mxu0 0
    %1082 = vmatpush1.bf16.msra.mxu0 %v553
    %1083 = vmatprep.subr.bf16.mxu0 0
    %1084 = vmatpush1.bf16.msra.mxu0 %v554
    %1085 = vmatprep.subr.bf16.mxu0 0
    %1086 = vmatpush1.bf16.msra.mxu0 %v555
    %1087 = vmatprep.subr.bf16.mxu0 0
    %1088 = vmatpush1.bf16.msra.mxu0 %v556
    %1089 = vmatprep.subr.bf16.mxu0 0
    %1090 = vmatpush1.bf16.msra.mxu0 %v557
    %1091 = vmatprep.subr.bf16.mxu0 0
    %1092 = vmatpush1.bf16.msra.mxu0 %v558
    %1093 = vmatprep.subr.bf16.mxu0 0
    %1094 = vmatpush1.bf16.msra.mxu0 %v559
    %1095 = vmatprep.subr.bf16.mxu0 0
    %1096 = vmatpush1.bf16.msra.mxu0 0
    %1097 = vmatprep.subr.bf16.mxu0 0
    %1098 = vmatpush1.bf16.msra.mxu0 0
    %1099 = vmatprep.subr.bf16.mxu0 0
    %1100 = vmatpush1.bf16.msra.mxu0 0
    %1101 = vmatprep.subr.bf16.mxu0 0
    %1102 = vmatpush1.bf16.msra.mxu0 0
    %1103 = vmatprep.subr.bf16.mxu0 0
    %1104 = vmatpush1.bf16.msra.mxu0 0
    %1105 = vmatprep.subr.bf16.mxu0 0
    %1106 = vmatpush1.bf16.msra.mxu0 0
    %1107 = vmatprep.subr.bf16.mxu0 0
    %1108 = vmatpush1.bf16.msra.mxu0 0
    %1109 = vmatprep.subr.bf16.mxu0 0
    %1110 = vmatpush1.bf16.msra.mxu0 0
    %1111 = vmatprep.mubr.bf16.mxu0 0
    %1112 = vmatmul.mubr.bf16.gmra.mrb[0].mxu0 %v1078
    %v1113 = vpop.f32.mrb[0].mxu0
    %v1114 = vadd.f32 0.0, %v1113
    %v1115 = vpop.f32.mrb[0].mxu0
    %v1116 = vpop.f32.mrb[0].mxu0
    %v1117 = vpop.f32.mrb[0].mxu0
    %1118 = vdwg.mxu0
    %v1119 = vmul.f32 %v1114, %v549
    %v1120 = vpack.c.bf16 %v1119, %v1119
    %v1121 = vld [vmem:[%s6 + $0x50] sm:$0xf]
    %v1122 = vld [vmem:[%s6 + $0x54] sm:$0xf]
    %v1123 = vld [vmem:[%s6 + $0x58] sm:$0xf]
    %v1124 = vld [vmem:[%s6 + $0x5c] sm:$0xf]
    %v1129 = vunpack.c.l.b16 %v1121
    %v1130 = vunpack.c.l.b16 %v1122
    %v1131 = vunpack.c.l.b16 %v1123
    %v1132 = vunpack.c.l.b16 %v1124
    %v1133 = vpack.c.b16 %v1130, %v1129
    %v1134 = vpack.c.b16 %v1132, %v1131
    %v1138 = vsel %vm449, %v1120, 0
    %1140 = vmatprep.subr.bf16.mxu0 0
    %1141 = vmatpush1.bf16.msra.mxu0 %v1133
    %1142 = vmatprep.subr.bf16.mxu0 0
    %1143 = vmatpush1.bf16.msra.mxu0 %v1134
    %1144 = vmatprep.subr.bf16.mxu0 0
    %1145 = vmatpush1.bf16.msra.mxu0 0
    %1146 = vmatprep.subr.bf16.mxu0 0
    %1147 = vmatpush1.bf16.msra.mxu0 0
    %1148 = vmatprep.subr.bf16.mxu0 0
    %1149 = vmatpush1.bf16.msra.mxu0 0
    %1150 = vmatprep.subr.bf16.mxu0 0
    %1151 = vmatpush1.bf16.msra.mxu0 0
    %1152 = vmatprep.subr.bf16.mxu0 0
    %1153 = vmatpush1.bf16.msra.mxu0 0
    %1154 = vmatprep.subr.bf16.mxu0 0
    %1155 = vmatpush1.bf16.msra.mxu0 0
    %1156 = vmatprep.subr.bf16.mxu0 0
    %1157 = vmatpush1.bf16.msra.mxu0 0
    %1158 = vmatprep.subr.bf16.mxu0 0
    %1159 = vmatpush1.bf16.msra.mxu0 0
    %1160 = vmatprep.subr.bf16.mxu0 0
    %1161 = vmatpush1.bf16.msra.mxu0 0
    %1162 = vmatprep.subr.bf16.mxu0 0
    %1163 = vmatpush1.bf16.msra.mxu0 0
    %1164 = vmatprep.subr.bf16.mxu0 0
    %1165 = vmatpush1.bf16.msra.mxu0 0
    %1166 = vmatprep.subr.bf16.mxu0 0
    %1167 = vmatpush1.bf16.msra.mxu0 0
    %1168 = vmatprep.subr.bf16.mxu0 0
    %1169 = vmatpush1.bf16.msra.mxu0 0
    %1170 = vmatprep.subr.bf16.mxu0 0
    %1171 = vmatpush1.bf16.msra.mxu0 0
    %1172 = vmatprep.mubr.bf16.mxu0 0
    %1173 = vmatmul.mubr.bf16.gmra.mrb[0].mxu0 %v1138
    %v1174 = vpop.f32.mrb[0].mxu0
    %v1175 = vadd.f32 0.0, %v1174
    %v1176 = vpop.f32.mrb[0].mxu0
    %v1177 = vpop.f32.mrb[0].mxu0
    %v1178 = vpop.f32.mrb[0].mxu0
    %1179 = vdwg.mxu0
    %v1180 = vadd.f32 %v1076, %v1175
    %s1181 = scalar_lea.vmem %s4, 6
    %v1182 = vld [vmem:[%s1181] sm:$0x1]
    %1183 = vmatprep.subr.bf16.mxu0 0
    %1184 = vmatpush1.bf16.msra.mxu0 %v552
    %1185 = vmatprep.subr.bf16.mxu0 0
    %1186 = vmatpush1.bf16.msra.mxu0 %v553
    %1187 = vmatprep.subr.bf16.mxu0 0
    %1188 = vmatpush1.bf16.msra.mxu0 %v554
    %1189 = vmatprep.subr.bf16.mxu0 0
    %1190 = vmatpush1.bf16.msra.mxu0 %v555
    %1191 = vmatprep.subr.bf16.mxu0 0
    %1192 = vmatpush1.bf16.msra.mxu0 %v556
    %1193 = vmatprep.subr.bf16.mxu0 0
    %1194 = vmatpush1.bf16.msra.mxu0 %v557
    %1195 = vmatprep.subr.bf16.mxu0 0
    %1196 = vmatpush1.bf16.msra.mxu0 %v558
    %1197 = vmatprep.subr.bf16.mxu0 0
    %1198 = vmatpush1.bf16.msra.mxu0 %v559
    %1199 = vmatprep.subr.bf16.mxu0 0
    %1200 = vmatpush1.bf16.msra.mxu0 0
    %1201 = vmatprep.subr.bf16.mxu0 0
    %1202 = vmatpush1.bf16.msra.mxu0 0
    %1203 = vmatprep.subr.bf16.mxu0 0
    %1204 = vmatpush1.bf16.msra.mxu0 0
    %1205 = vmatprep.subr.bf16.mxu0 0
    %1206 = vmatpush1.bf16.msra.mxu0 0
    %1207 = vmatprep.subr.bf16.mxu0 0
    %1208 = vmatpush1.bf16.msra.mxu0 0
    %1209 = vmatprep.subr.bf16.mxu0 0
    %1210 = vmatpush1.bf16.msra.mxu0 0
    %1211 = vmatprep.subr.bf16.mxu0 0
    %1212 = vmatpush1.bf16.msra.mxu0 0
    %1213 = vmatprep.subr.bf16.mxu0 0
    %1214 = vmatpush1.bf16.msra.mxu0 0
    %1215 = vmatprep.mubr.bf16.mxu0 0
    %1216 = vmatmul.mubr.bf16.gmra.mrb[0].mxu0 %v1182
    %v1217 = vpop.f32.mrb[0].mxu0
    %v1218 = vadd.f32 0.0, %v1217
    %v1219 = vpop.f32.mrb[0].mxu0
    %v1220 = vpop.f32.mrb[0].mxu0
    %v1221 = vpop.f32.mrb[0].mxu0
    %1222 = vdwg.mxu0
    %v1223 = vmul.f32 %v1218, %v549
    %v1224 = vpack.c.bf16 %v1223, %v1223
    %v1225 = vld [vmem:[%s6 + $0x60] sm:$0xf]
    %v1226 = vld [vmem:[%s6 + $0x64] sm:$0xf]
    %v1227 = vld [vmem:[%s6 + $0x68] sm:$0xf]
    %v1228 = vld [vmem:[%s6 + $0x6c] sm:$0xf]
    %v1233 = vunpack.c.l.b16 %v1225
    %v1234 = vunpack.c.l.b16 %v1226
    %v1235 = vunpack.c.l.b16 %v1227
    %v1236 = vunpack.c.l.b16 %v1228
    %v1237 = vpack.c.b16 %v1234, %v1233
    %v1238 = vpack.c.b16 %v1236, %v1235
    %v1242 = vsel %vm449, %v1224, 0
    %1244 = vmatprep.subr.bf16.mxu0 0
    %1245 = vmatpush1.bf16.msra.mxu0 %v1237
    %1246 = vmatprep.subr.bf16.mxu0 0
    %1247 = vmatpush1.bf16.msra.mxu0 %v1238
    %1248 = vmatprep.subr.bf16.mxu0 0
    %1249 = vmatpush1.bf16.msra.mxu0 0
    %1250 = vmatprep.subr.bf16.mxu0 0
    %1251 = vmatpush1.bf16.msra.mxu0 0
    %1252 = vmatprep.subr.bf16.mxu0 0
    %1253 = vmatpush1.bf16.msra.mxu0 0
    %1254 = vmatprep.subr.bf16.mxu0 0
    %1255 = vmatpush1.bf16.msra.mxu0 0
    %1256 = vmatprep.subr.bf16.mxu0 0
    %1257 = vmatpush1.bf16.msra.mxu0 0
    %1258 = vmatprep.subr.bf16.mxu0 0
    %1259 = vmatpush1.bf16.msra.mxu0 0
    %1260 = vmatprep.subr.bf16.mxu0 0
    %1261 = vmatpush1.bf16.msra.mxu0 0
    %1262 = vmatprep.subr.bf16.mxu0 0
    %1263 = vmatpush1.bf16.msra.mxu0 0
    %1264 = vmatprep.subr.bf16.mxu0 0
    %1265 = vmatpush1.bf16.msra.mxu0 0
    %1266 = vmatprep.subr.bf16.mxu0 0
    %1267 = vmatpush1.bf16.msra.mxu0 0
    %1268 = vmatprep.subr.bf16.mxu0 0
    %1269 = vmatpush1.bf16.msra.mxu0 0
    %1270 = vmatprep.subr.bf16.mxu0 0
    %1271 = vmatpush1.bf16.msra.mxu0 0
    %1272 = vmatprep.subr.bf16.mxu0 0
    %1273 = vmatpush1.bf16.msra.mxu0 0
    %1274 = vmatprep.subr.bf16.mxu0 0
    %1275 = vmatpush1.bf16.msra.mxu0 0
    %1276 = vmatprep.mubr.bf16.mxu0 0
    %1277 = vmatmul.mubr.bf16.gmra.mrb[0].mxu0 %v1242
    %v1278 = vpop.f32.mrb[0].mxu0
    %v1279 = vadd.f32 0.0, %v1278
    %v1280 = vpop.f32.mrb[0].mxu0
    %v1281 = vpop.f32.mrb[0].mxu0
    %v1282 = vpop.f32.mrb[0].mxu0
    %1283 = vdwg.mxu0
    %v1284 = vadd.f32 %v1180, %v1279
    %s1285 = scalar_lea.vmem %s4, 7
    %v1286 = vld [vmem:[%s1285] sm:$0x1]
    %1287 = vmatprep.subr.bf16.mxu0 0
    %1288 = vmatpush1.bf16.msra.mxu0 %v552
    %1289 = vmatprep.subr.bf16.mxu0 0
    %1290 = vmatpush1.bf16.msra.mxu0 %v553
    %1291 = vmatprep.subr.bf16.mxu0 0
    %1292 = vmatpush1.bf16.msra.mxu0 %v554
    %1293 = vmatprep.subr.bf16.mxu0 0
    %1294 = vmatpush1.bf16.msra.mxu0 %v555
    %1295 = vmatprep.subr.bf16.mxu0 0
    %1296 = vmatpush1.bf16.msra.mxu0 %v556
    %1297 = vmatprep.subr.bf16.mxu0 0
    %1298 = vmatpush1.bf16.msra.mxu0 %v557
    %1299 = vmatprep.subr.bf16.mxu0 0
    %1300 = vmatpush1.bf16.msra.mxu0 %v558
    %1301 = vmatprep.subr.bf16.mxu0 0
    %1302 = vmatpush1.bf16.msra.mxu0 %v559
    %1303 = vmatprep.subr.bf16.mxu0 0
    %1304 = vmatpush1.bf16.msra.mxu0 0
    %1305 = vmatprep.subr.bf16.mxu0 0
    %1306 = vmatpush1.bf16.msra.mxu0 0
    %1307 = vmatprep.subr.bf16.mxu0 0
    %1308 = vmatpush1.bf16.msra.mxu0 0
    %1309 = vmatprep.subr.bf16.mxu0 0
    %1310 = vmatpush1.bf16.msra.mxu0 0
    %1311 = vmatprep.subr.bf16.mxu0 0
    %1312 = vmatpush1.bf16.msra.mxu0 0
    %1313 = vmatprep.subr.bf16.mxu0 0
    %1314 = vmatpush1.bf16.msra.mxu0 0
    %1315 = vmatprep.subr.bf16.mxu0 0
    %1316 = vmatpush1.bf16.msra.mxu0 0
    %1317 = vmatprep.subr.bf16.mxu0 0
    %1318 = vmatpush1.bf16.msra.mxu0 0
    %1319 = vmatprep.mubr.bf16.mxu0 0
    %1320 = vmatmul.mubr.bf16.gmra.mrb[0].mxu0 %v1286
    %v1321 = vpop.f32.mrb[0].mxu0
    %v1322 = vadd.f32 0.0, %v1321
    %v1323 = vpop.f32.mrb[0].mxu0
    %v1324 = vpop.f32.mrb[0].mxu0
    %v1325 = vpop.f32.mrb[0].mxu0
    %1326 = vdwg.mxu0
    %v1327 = vmul.f32 %v1322, %v549
    %v1328 = vpack.c.bf16 %v1327, %v1327
    %v1329 = vld [vmem:[%s6 + $0x70] sm:$0xf]
    %v1330 = vld [vmem:[%s6 + $0x74] sm:$0xf]
    %v1331 = vld [vmem:[%s6 + $0x78] sm:$0xf]
    %v1332 = vld [vmem:[%s6 + $0x7c] sm:$0xf]
    %v1337 = vunpack.c.l.b16 %v1329
    %v1338 = vunpack.c.l.b16 %v1330
    %v1339 = vunpack.c.l.b16 %v1331
    %v1340 = vunpack.c.l.b16 %v1332
    %v1341 = vpack.c.b16 %v1338, %v1337
    %v1342 = vpack.c.b16 %v1340, %v1339
    %v1346 = vsel %vm449, %v1328, 0
    %1348 = vmatprep.subr.bf16.mxu0 0
    %1349 = vmatpush1.bf16.msra.mxu0 %v1341
    %1350 = vmatprep.subr.bf16.mxu0 0
    %1351 = vmatpush1.bf16.msra.mxu0 %v1342
    %1352 = vmatprep.subr.bf16.mxu0 0
    %1353 = vmatpush1.bf16.msra.mxu0 0
    %1354 = vmatprep.subr.bf16.mxu0 0
    %1355 = vmatpush1.bf16.msra.mxu0 0
    %1356 = vmatprep.subr.bf16.mxu0 0
    %1357 = vmatpush1.bf16.msra.mxu0 0
    %1358 = vmatprep.subr.bf16.mxu0 0
    %1359 = vmatpush1.bf16.msra.mxu0 0
    %1360 = vmatprep.subr.bf16.mxu0 0
    %1361 = vmatpush1.bf16.msra.mxu0 0
    %1362 = vmatprep.subr.bf16.mxu0 0
    %1363 = vmatpush1.bf16.msra.mxu0 0
    %1364 = vmatprep.subr.bf16.mxu0 0
    %1365 = vmatpush1.bf16.msra.mxu0 0
    %1366 = vmatprep.subr.bf16.mxu0 0
    %1367 = vmatpush1.bf16.msra.mxu0 0
    %1368 = vmatprep.subr.bf16.mxu0 0
    %1369 = vmatpush1.bf16.msra.mxu0 0
    %1370 = vmatprep.subr.bf16.mxu0 0
    %1371 = vmatpush1.bf16.msra.mxu0 0
    %1372 = vmatprep.subr.bf16.mxu0 0
    %1373 = vmatpush1.bf16.msra.mxu0 0
    %1374 = vmatprep.subr.bf16.mxu0 0
    %1375 = vmatpush1.bf16.msra.mxu0 0
    %1376 = vmatprep.subr.bf16.mxu0 0
    %1377 = vmatpush1.bf16.msra.mxu0 0
    %1378 = vmatprep.subr.bf16.mxu0 0
    %1379 = vmatpush1.bf16.msra.mxu0 0
    %1380 = vmatprep.mubr.bf16.mxu0 0
    %1381 = vmatmul.mubr.bf16.gmra.mrb[0].mxu0 %v1346
    %v1382 = vpop.f32.mrb[0].mxu0
    %v1383 = vadd.f32 0.0, %v1382
    %v1384 = vpop.f32.mrb[0].mxu0
    %v1385 = vpop.f32.mrb[0].mxu0
    %v1386 = vpop.f32.mrb[0].mxu0
    %1387 = vdwg.mxu0
    %v1388 = vadd.f32 %v1284, %v1383
    %s1389 = scalar_lea.vmem %s4, 8
    %v1390 = vld [vmem:[%s1389] sm:$0x1]
    %1391 = vmatprep.subr.bf16.mxu0 0
    %1392 = vmatpush1.bf16.msra.mxu0 %v552
    %1393 = vmatprep.subr.bf16.mxu0 0
    %1394 = vmatpush1.bf16.msra.mxu0 %v553
    %1395 = vmatprep.subr.bf16.mxu0 0
    %1396 = vmatpush1.bf16.msra.mxu0 %v554
    %1397 = vmatprep.subr.bf16.mxu0 0
    %1398 = vmatpush1.bf16.msra.mxu0 %v555
    %1399 = vmatprep.subr.bf16.mxu0 0
    %1400 = vmatpush1.bf16.msra.mxu0 %v556
    %1401 = vmatprep.subr.bf16.mxu0 0
    %1402 = vmatpush1.bf16.msra.mxu0 %v557
    %1403 = vmatprep.subr.bf16.mxu0 0
    %1404 = vmatpush1.bf16.msra.mxu0 %v558
    %1405 = vmatprep.subr.bf16.mxu0 0
    %1406 = vmatpush1.bf16.msra.mxu0 %v559
    %1407 = vmatprep.subr.bf16.mxu0 0
    %1408 = vmatpush1.bf16.msra.mxu0 0
    %1409 = vmatprep.subr.bf16.mxu0 0
    %1410 = vmatpush1.bf16.msra.mxu0 0
    %1411 = vmatprep.subr.bf16.mxu0 0
    %1412 = vmatpush1.bf16.msra.mxu0 0
    %1413 = vmatprep.subr.bf16.mxu0 0
    %1414 = vmatpush1.bf16.msra.mxu0 0
    %1415 = vmatprep.subr.bf16.mxu0 0
    %1416 = vmatpush1.bf16.msra.mxu0 0
    %1417 = vmatprep.subr.bf16.mxu0 0
    %1418 = vmatpush1.bf16.msra.mxu0 0
    %1419 = vmatprep.subr.bf16.mxu0 0
    %1420 = vmatpush1.bf16.msra.mxu0 0
    %1421 = vmatprep.subr.bf16.mxu0 0
    %1422 = vmatpush1.bf16.msra.mxu0 0
    %1423 = vmatprep.mubr.bf16.mxu0 0
    %1424 = vmatmul.mubr.bf16.gmra.mrb[0].mxu0 %v1390
    %v1425 = vpop.f32.mrb[0].mxu0
    %v1426 = vadd.f32 0.0, %v1425
    %v1427 = vpop.f32.mrb[0].mxu0
    %v1428 = vpop.f32.mrb[0].mxu0
    %v1429 = vpop.f32.mrb[0].mxu0
    %1430 = vdwg.mxu0
    %v1431 = vmul.f32 %v1426, %v549
    %v1432 = vpack.c.bf16 %v1431, %v1431
    %v1433 = vld [vmem:[%s6 + $0x80] sm:$0xf]
    %v1434 = vld [vmem:[%s6 + $0x84] sm:$0xf]
    %v1435 = vld [vmem:[%s6 + $0x88] sm:$0xf]
    %v1436 = vld [vmem:[%s6 + $0x8c] sm:$0xf]
    %v1441 = vunpack.c.l.b16 %v1433
    %v1442 = vunpack.c.l.b16 %v1434
    %v1443 = vunpack.c.l.b16 %v1435
    %v1444 = vunpack.c.l.b16 %v1436
    %v1445 = vpack.c.b16 %v1442, %v1441
    %v1446 = vpack.c.b16 %v1444, %v1443
    %v1450 = vsel %vm449, %v1432, 0
    %1452 = vmatprep.subr.bf16.mxu0 0
    %1453 = vmatpush1.bf16.msra.mxu0 %v1445
    %1454 = vmatprep.subr.bf16.mxu0 0
    %1455 = vmatpush1.bf16.msra.mxu0 %v1446
    %1456 = vmatprep.subr.bf16.mxu0 0
    %1457 = vmatpush1.bf16.msra.mxu0 0
    %1458 = vmatprep.subr.bf16.mxu0 0
    %1459 = vmatpush1.bf16.msra.mxu0 0
    %1460 = vmatprep.subr.bf16.mxu0 0
    %1461 = vmatpush1.bf16.msra.mxu0 0
    %1462 = vmatprep.subr.bf16.mxu0 0
    %1463 = vmatpush1.bf16.msra.mxu0 0
    %1464 = vmatprep.subr.bf16.mxu0 0
    %1465 = vmatpush1.bf16.msra.mxu0 0
    %1466 = vmatprep.subr.bf16.mxu0 0
    %1467 = vmatpush1.bf16.msra.mxu0 0
    %1468 = vmatprep.subr.bf16.mxu0 0
    %1469 = vmatpush1.bf16.msra.mxu0 0
    %1470 = vmatprep.subr.bf16.mxu0 0
    %1471 = vmatpush1.bf16.msra.mxu0 0
    %1472 = vmatprep.subr.bf16.mxu0 0
    %1473 = vmatpush1.bf16.msra.mxu0 0
    %1474 = vmatprep.subr.bf16.mxu0 0
    %1475 = vmatpush1.bf16.msra.mxu0 0
    %1476 = vmatprep.subr.bf16.mxu0 0
    %1477 = vmatpush1.bf16.msra.mxu0 0
    %1478 = vmatprep.subr.bf16.mxu0 0
    %1479 = vmatpush1.bf16.msra.mxu0 0
    %1480 = vmatprep.subr.bf16.mxu0 0
    %1481 = vmatpush1.bf16.msra.mxu0 0
    %1482 = vmatprep.subr.bf16.mxu0 0
    %1483 = vmatpush1.bf16.msra.mxu0 0
    %1484 = vmatprep.mubr.bf16.mxu0 0
    %1485 = vmatmul.mubr.bf16.gmra.mrb[0].mxu0 %v1450
    %v1486 = vpop.f32.mrb[0].mxu0
    %v1487 = vadd.f32 0.0, %v1486
    %v1488 = vpop.f32.mrb[0].mxu0
    %v1489 = vpop.f32.mrb[0].mxu0
    %v1490 = vpop.f32.mrb[0].mxu0
    %1491 = vdwg.mxu0
    %v1492 = vadd.f32 %v1388, %v1487
    %s1493 = scalar_lea.vmem %s4, 9
    %v1494 = vld [vmem:[%s1493] sm:$0x1]
    %1495 = vmatprep.subr.bf16.mxu0 0
    %1496 = vmatpush1.bf16.msra.mxu0 %v552
    %1497 = vmatprep.subr.bf16.mxu0 0
    %1498 = vmatpush1.bf16.msra.mxu0 %v553
    %1499 = vmatprep.subr.bf16.mxu0 0
    %1500 = vmatpush1.bf16.msra.mxu0 %v554
    %1501 = vmatprep.subr.bf16.mxu0 0
    %1502 = vmatpush1.bf16.msra.mxu0 %v555
    %1503 = vmatprep.subr.bf16.mxu0 0
    %1504 = vmatpush1.bf16.msra.mxu0 %v556
    %1505 = vmatprep.subr.bf16.mxu0 0
    %1506 = vmatpush1.bf16.msra.mxu0 %v557
    %1507 = vmatprep.subr.bf16.mxu0 0
    %1508 = vmatpush1.bf16.msra.mxu0 %v558
    %1509 = vmatprep.subr.bf16.mxu0 0
    %1510 = vmatpush1.bf16.msra.mxu0 %v559
    %1511 = vmatprep.subr.bf16.mxu0 0
    %1512 = vmatpush1.bf16.msra.mxu0 0
    %1513 = vmatprep.subr.bf16.mxu0 0
    %1514 = vmatpush1.bf16.msra.mxu0 0
    %1515 = vmatprep.subr.bf16.mxu0 0
    %1516 = vmatpush1.bf16.msra.mxu0 0
    %1517 = vmatprep.subr.bf16.mxu0 0
    %1518 = vmatpush1.bf16.msra.mxu0 0
    %1519 = vmatprep.subr.bf16.mxu0 0
    %1520 = vmatpush1.bf16.msra.mxu0 0
    %1521 = vmatprep.subr.bf16.mxu0 0
    %1522 = vmatpush1.bf16.msra.mxu0 0
    %1523 = vmatprep.subr.bf16.mxu0 0
    %1524 = vmatpush1.bf16.msra.mxu0 0
    %1525 = vmatprep.subr.bf16.mxu0 0
    %1526 = vmatpush1.bf16.msra.mxu0 0
    %1527 = vmatprep.mubr.bf16.mxu0 0
    %1528 = vmatmul.mubr.bf16.gmra.mrb[0].mxu0 %v1494
    %v1529 = vpop.f32.mrb[0].mxu0
    %v1530 = vadd.f32 0.0, %v1529
    %v1531 = vpop.f32.mrb[0].mxu0
    %v1532 = vpop.f32.mrb[0].mxu0
    %v1533 = vpop.f32.mrb[0].mxu0
    %1534 = vdwg.mxu0
    %v1535 = vmul.f32 %v1530, %v549
    %v1536 = vpack.c.bf16 %v1535, %v1535
    %v1537 = vld [vmem:[%s6 + $0x90] sm:$0xf]
    %v1538 = vld [vmem:[%s6 + $0x94] sm:$0xf]
    %v1539 = vld [vmem:[%s6 + $0x98] sm:$0xf]
    %v1540 = vld [vmem:[%s6 + $0x9c] sm:$0xf]
    %v1545 = vunpack.c.l.b16 %v1537
    %v1546 = vunpack.c.l.b16 %v1538
    %v1547 = vunpack.c.l.b16 %v1539
    %v1548 = vunpack.c.l.b16 %v1540
    %v1549 = vpack.c.b16 %v1546, %v1545
    %v1550 = vpack.c.b16 %v1548, %v1547
    %v1554 = vsel %vm449, %v1536, 0
    %1556 = vmatprep.subr.bf16.mxu0 0
    %1557 = vmatpush1.bf16.msra.mxu0 %v1549
    %1558 = vmatprep.subr.bf16.mxu0 0
    %1559 = vmatpush1.bf16.msra.mxu0 %v1550
    %1560 = vmatprep.subr.bf16.mxu0 0
    %1561 = vmatpush1.bf16.msra.mxu0 0
    %1562 = vmatprep.subr.bf16.mxu0 0
    %1563 = vmatpush1.bf16.msra.mxu0 0
    %1564 = vmatprep.subr.bf16.mxu0 0
    %1565 = vmatpush1.bf16.msra.mxu0 0
    %1566 = vmatprep.subr.bf16.mxu0 0
    %1567 = vmatpush1.bf16.msra.mxu0 0
    %1568 = vmatprep.subr.bf16.mxu0 0
    %1569 = vmatpush1.bf16.msra.mxu0 0
    %1570 = vmatprep.subr.bf16.mxu0 0
    %1571 = vmatpush1.bf16.msra.mxu0 0
    %1572 = vmatprep.subr.bf16.mxu0 0
    %1573 = vmatpush1.bf16.msra.mxu0 0
    %1574 = vmatprep.subr.bf16.mxu0 0
    %1575 = vmatpush1.bf16.msra.mxu0 0
    %1576 = vmatprep.subr.bf16.mxu0 0
    %1577 = vmatpush1.bf16.msra.mxu0 0
    %1578 = vmatprep.subr.bf16.mxu0 0
    %1579 = vmatpush1.bf16.msra.mxu0 0
    %1580 = vmatprep.subr.bf16.mxu0 0
    %1581 = vmatpush1.bf16.msra.mxu0 0
    %1582 = vmatprep.subr.bf16.mxu0 0
    %1583 = vmatpush1.bf16.msra.mxu0 0
    %1584 = vmatprep.subr.bf16.mxu0 0
    %1585 = vmatpush1.bf16.msra.mxu0 0
    %1586 = vmatprep.subr.bf16.mxu0 0
    %1587 = vmatpush1.bf16.msra.mxu0 0
    %1588 = vmatprep.mubr.bf16.mxu0 0
    %1589 = vmatmul.mubr.bf16.gmra.mrb[0].mxu0 %v1554
    %v1590 = vpop.f32.mrb[0].mxu0
    %v1591 = vadd.f32 0.0, %v1590
    %v1592 = vpop.f32.mrb[0].mxu0
    %v1593 = vpop.f32.mrb[0].mxu0
    %v1594 = vpop.f32.mrb[0].mxu0
    %1595 = vdwg.mxu0
    %v1596 = vadd.f32 %v1492, %v1591
    %s1597 = scalar_lea.vmem %s4, 10
    %v1598 = vld [vmem:[%s1597] sm:$0x1]
    %1599 = vmatprep.subr.bf16.mxu0 0
    %1600 = vmatpush1.bf16.msra.mxu0 %v552
    %1601 = vmatprep.subr.bf16.mxu0 0
    %1602 = vmatpush1.bf16.msra.mxu0 %v553
    %1603 = vmatprep.subr.bf16.mxu0 0
    %1604 = vmatpush1.bf16.msra.mxu0 %v554
    %1605 = vmatprep.subr.bf16.mxu0 0
    %1606 = vmatpush1.bf16.msra.mxu0 %v555
    %1607 = vmatprep.subr.bf16.mxu0 0
    %1608 = vmatpush1.bf16.msra.mxu0 %v556
    %1609 = vmatprep.subr.bf16.mxu0 0
    %1610 = vmatpush1.bf16.msra.mxu0 %v557
    %1611 = vmatprep.subr.bf16.mxu0 0
    %1612 = vmatpush1.bf16.msra.mxu0 %v558
    %1613 = vmatprep.subr.bf16.mxu0 0
    %1614 = vmatpush1.bf16.msra.mxu0 %v559
    %1615 = vmatprep.subr.bf16.mxu0 0
    %1616 = vmatpush1.bf16.msra.mxu0 0
    %1617 = vmatprep.subr.bf16.mxu0 0
    %1618 = vmatpush1.bf16.msra.mxu0 0
    %1619 = vmatprep.subr.bf16.mxu0 0
    %1620 = vmatpush1.bf16.msra.mxu0 0
    %1621 = vmatprep.subr.bf16.mxu0 0
    %1622 = vmatpush1.bf16.msra.mxu0 0
    %1623 = vmatprep.subr.bf16.mxu0 0
    %1624 = vmatpush1.bf16.msra.mxu0 0
    %1625 = vmatprep.subr.bf16.mxu0 0
    %1626 = vmatpush1.bf16.msra.mxu0 0
    %1627 = vmatprep.subr.bf16.mxu0 0
    %1628 = vmatpush1.bf16.msra.mxu0 0
    %1629 = vmatprep.subr.bf16.mxu0 0
    %1630 = vmatpush1.bf16.msra.mxu0 0
    %1631 = vmatprep.mubr.bf16.mxu0 0
    %1632 = vmatmul.mubr.bf16.gmra.mrb[0].mxu0 %v1598
    %v1633 = vpop.f32.mrb[0].mxu0
    %v1634 = vadd.f32 0.0, %v1633
    %v1635 = vpop.f32.mrb[0].mxu0
    %v1636 = vpop.f32.mrb[0].mxu0
    %v1637 = vpop.f32.mrb[0].mxu0
    %1638 = vdwg.mxu0
    %v1639 = vmul.f32 %v1634, %v549
    %v1640 = vpack.c.bf16 %v1639, %v1639
    %v1641 = vld [vmem:[%s6 + $0xa0] sm:$0xf]
    %v1642 = vld [vmem:[%s6 + $0xa4] sm:$0xf]
    %v1643 = vld [vmem:[%s6 + $0xa8] sm:$0xf]
    %v1644 = vld [vmem:[%s6 + $0xac] sm:$0xf]
    %v1649 = vunpack.c.l.b16 %v1641
    %v1650 = vunpack.c.l.b16 %v1642
    %v1651 = vunpack.c.l.b16 %v1643
    %v1652 = vunpack.c.l.b16 %v1644
    %v1653 = vpack.c.b16 %v1650, %v1649
    %v1654 = vpack.c.b16 %v1652, %v1651
    %v1658 = vsel %vm449, %v1640, 0
    %1660 = vmatprep.subr.bf16.mxu0 0
    %1661 = vmatpush1.bf16.msra.mxu0 %v1653
    %1662 = vmatprep.subr.bf16.mxu0 0
    %1663 = vmatpush1.bf16.msra.mxu0 %v1654
    %1664 = vmatprep.subr.bf16.mxu0 0
    %1665 = vmatpush1.bf16.msra.mxu0 0
    %1666 = vmatprep.subr.bf16.mxu0 0
    %1667 = vmatpush1.bf16.msra.mxu0 0
    %1668 = vmatprep.subr.bf16.mxu0 0
    %1669 = vmatpush1.bf16.msra.mxu0 0
    %1670 = vmatprep.subr.bf16.mxu0 0
    %1671 = vmatpush1.bf16.msra.mxu0 0
    %1672 = vmatprep.subr.bf16.mxu0 0
    %1673 = vmatpush1.bf16.msra.mxu0 0
    %1674 = vmatprep.subr.bf16.mxu0 0
    %1675 = vmatpush1.bf16.msra.mxu0 0
    %1676 = vmatprep.subr.bf16.mxu0 0
    %1677 = vmatpush1.bf16.msra.mxu0 0
    %1678 = vmatprep.subr.bf16.mxu0 0
    %1679 = vmatpush1.bf16.msra.mxu0 0
    %1680 = vmatprep.subr.bf16.mxu0 0
    %1681 = vmatpush1.bf16.msra.mxu0 0
    %1682 = vmatprep.subr.bf16.mxu0 0
    %1683 = vmatpush1.bf16.msra.mxu0 0
    %1684 = vmatprep.subr.bf16.mxu0 0
    %1685 = vmatpush1.bf16.msra.mxu0 0
    %1686 = vmatprep.subr.bf16.mxu0 0
    %1687 = vmatpush1.bf16.msra.mxu0 0
    %1688 = vmatprep.subr.bf16.mxu0 0
    %1689 = vmatpush1.bf16.msra.mxu0 0
    %1690 = vmatprep.subr.bf16.mxu0 0
    %1691 = vmatpush1.bf16.msra.mxu0 0
    %1692 = vmatprep.mubr.bf16.mxu0 0
    %1693 = vmatmul.mubr.bf16.gmra.mrb[0].mxu0 %v1658
    %v1694 = vpop.f32.mrb[0].mxu0
    %v1695 = vadd.f32 0.0, %v1694
    %v1696 = vpop.f32.mrb[0].mxu0
    %v1697 = vpop.f32.mrb[0].mxu0
    %v1698 = vpop.f32.mrb[0].mxu0
    %1699 = vdwg.mxu0
    %v1700 = vadd.f32 %v1596, %v1695
    %s1701 = scalar_lea.vmem %s4, 11
    %v1702 = vld [vmem:[%s1701] sm:$0x1]
    %1703 = vmatprep.subr.bf16.mxu0 0
    %1704 = vmatpush1.bf16.msra.mxu0 %v552
    %1705 = vmatprep.subr.bf16.mxu0 0
    %1706 = vmatpush1.bf16.msra.mxu0 %v553
    %1707 = vmatprep.subr.bf16.mxu0 0
    %1708 = vmatpush1.bf16.msra.mxu0 %v554
    %1709 = vmatprep.subr.bf16.mxu0 0
    %1710 = vmatpush1.bf16.msra.mxu0 %v555
    %1711 = vmatprep.subr.bf16.mxu0 0
    %1712 = vmatpush1.bf16.msra.mxu0 %v556
    %1713 = vmatprep.subr.bf16.mxu0 0
    %1714 = vmatpush1.bf16.msra.mxu0 %v557
    %1715 = vmatprep.subr.bf16.mxu0 0
    %1716 = vmatpush1.bf16.msra.mxu0 %v558
    %1717 = vmatprep.subr.bf16.mxu0 0
    %1718 = vmatpush1.bf16.msra.mxu0 %v559
    %1719 = vmatprep.subr.bf16.mxu0 0
    %1720 = vmatpush1.bf16.msra.mxu0 0
    %1721 = vmatprep.subr.bf16.mxu0 0
    %1722 = vmatpush1.bf16.msra.mxu0 0
    %1723 = vmatprep.subr.bf16.mxu0 0
    %1724 = vmatpush1.bf16.msra.mxu0 0
    %1725 = vmatprep.subr.bf16.mxu0 0
    %1726 = vmatpush1.bf16.msra.mxu0 0
    %1727 = vmatprep.subr.bf16.mxu0 0
    %1728 = vmatpush1.bf16.msra.mxu0 0
    %1729 = vmatprep.subr.bf16.mxu0 0
    %1730 = vmatpush1.bf16.msra.mxu0 0
    %1731 = vmatprep.subr.bf16.mxu0 0
    %1732 = vmatpush1.bf16.msra.mxu0 0
    %1733 = vmatprep.subr.bf16.mxu0 0
    %1734 = vmatpush1.bf16.msra.mxu0 0
    %1735 = vmatprep.mubr.bf16.mxu0 0
    %1736 = vmatmul.mubr.bf16.gmra.mrb[0].mxu0 %v1702
    %v1737 = vpop.f32.mrb[0].mxu0
    %v1738 = vadd.f32 0.0, %v1737
    %v1739 = vpop.f32.mrb[0].mxu0
    %v1740 = vpop.f32.mrb[0].mxu0
    %v1741 = vpop.f32.mrb[0].mxu0
    %1742 = vdwg.mxu0
    %v1743 = vmul.f32 %v1738, %v549
    %v1744 = vpack.c.bf16 %v1743, %v1743
    %v1745 = vld [vmem:[%s6 + $0xb0] sm:$0xf]
    %v1746 = vld [vmem:[%s6 + $0xb4] sm:$0xf]
    %v1747 = vld [vmem:[%s6 + $0xb8] sm:$0xf]
    %v1748 = vld [vmem:[%s6 + $0xbc] sm:$0xf]
    %v1753 = vunpack.c.l.b16 %v1745
    %v1754 = vunpack.c.l.b16 %v1746
    %v1755 = vunpack.c.l.b16 %v1747
    %v1756 = vunpack.c.l.b16 %v1748
    %v1757 = vpack.c.b16 %v1754, %v1753
    %v1758 = vpack.c.b16 %v1756, %v1755
    %v1762 = vsel %vm449, %v1744, 0
    %1764 = vmatprep.subr.bf16.mxu0 0
    %1765 = vmatpush1.bf16.msra.mxu0 %v1757
    %1766 = vmatprep.subr.bf16.mxu0 0
    %1767 = vmatpush1.bf16.msra.mxu0 %v1758
    %1768 = vmatprep.subr.bf16.mxu0 0
    %1769 = vmatpush1.bf16.msra.mxu0 0
    %1770 = vmatprep.subr.bf16.mxu0 0
    %1771 = vmatpush1.bf16.msra.mxu0 0
    %1772 = vmatprep.subr.bf16.mxu0 0
    %1773 = vmatpush1.bf16.msra.mxu0 0
    %1774 = vmatprep.subr.bf16.mxu0 0
    %1775 = vmatpush1.bf16.msra.mxu0 0
    %1776 = vmatprep.subr.bf16.mxu0 0
    %1777 = vmatpush1.bf16.msra.mxu0 0
    %1778 = vmatprep.subr.bf16.mxu0 0
    %1779 = vmatpush1.bf16.msra.mxu0 0
    %1780 = vmatprep.subr.bf16.mxu0 0
    %1781 = vmatpush1.bf16.msra.mxu0 0
    %1782 = vmatprep.subr.bf16.mxu0 0
    %1783 = vmatpush1.bf16.msra.mxu0 0
    %1784 = vmatprep.subr.bf16.mxu0 0
    %1785 = vmatpush1.bf16.msra.mxu0 0
    %1786 = vmatprep.subr.bf16.mxu0 0
    %1787 = vmatpush1.bf16.msra.mxu0 0
    %1788 = vmatprep.subr.bf16.mxu0 0
    %1789 = vmatpush1.bf16.msra.mxu0 0
    %1790 = vmatprep.subr.bf16.mxu0 0
    %1791 = vmatpush1.bf16.msra.mxu0 0
    %1792 = vmatprep.subr.bf16.mxu0 0
    %1793 = vmatpush1.bf16.msra.mxu0 0
    %1794 = vmatprep.subr.bf16.mxu0 0
    %1795 = vmatpush1.bf16.msra.mxu0 0
    %1796 = vmatprep.mubr.bf16.mxu0 0
    %1797 = vmatmul.mubr.bf16.gmra.mrb[0].mxu0 %v1762
    %v1798 = vpop.f32.mrb[0].mxu0
    %v1799 = vadd.f32 0.0, %v1798
    %v1800 = vpop.f32.mrb[0].mxu0
    %v1801 = vpop.f32.mrb[0].mxu0
    %v1802 = vpop.f32.mrb[0].mxu0
    %1803 = vdwg.mxu0
    %v1804 = vadd.f32 %v1700, %v1799
    %s1805 = scalar_lea.vmem %s4, 12
    %v1806 = vld [vmem:[%s1805] sm:$0x1]
    %1807 = vmatprep.subr.bf16.mxu0 0
    %1808 = vmatpush1.bf16.msra.mxu0 %v552
    %1809 = vmatprep.subr.bf16.mxu0 0
    %1810 = vmatpush1.bf16.msra.mxu0 %v553
    %1811 = vmatprep.subr.bf16.mxu0 0
    %1812 = vmatpush1.bf16.msra.mxu0 %v554
    %1813 = vmatprep.subr.bf16.mxu0 0
    %1814 = vmatpush1.bf16.msra.mxu0 %v555
    %1815 = vmatprep.subr.bf16.mxu0 0
    %1816 = vmatpush1.bf16.msra.mxu0 %v556
    %1817 = vmatprep.subr.bf16.mxu0 0
    %1818 = vmatpush1.bf16.msra.mxu0 %v557
    %1819 = vmatprep.subr.bf16.mxu0 0
    %1820 = vmatpush1.bf16.msra.mxu0 %v558
    %1821 = vmatprep.subr.bf16.mxu0 0
    %1822 = vmatpush1.bf16.msra.mxu0 %v559
    %1823 = vmatprep.subr.bf16.mxu0 0
    %1824 = vmatpush1.bf16.msra.mxu0 0
    %1825 = vmatprep.subr.bf16.mxu0 0
    %1826 = vmatpush1.bf16.msra.mxu0 0
    %1827 = vmatprep.subr.bf16.mxu0 0
    %1828 = vmatpush1.bf16.msra.mxu0 0
    %1829 = vmatprep.subr.bf16.mxu0 0
    %1830 = vmatpush1.bf16.msra.mxu0 0
    %1831 = vmatprep.subr.bf16.mxu0 0
    %1832 = vmatpush1.bf16.msra.mxu0 0
    %1833 = vmatprep.subr.bf16.mxu0 0
    %1834 = vmatpush1.bf16.msra.mxu0 0
    %1835 = vmatprep.subr.bf16.mxu0 0
    %1836 = vmatpush1.bf16.msra.mxu0 0
    %1837 = vmatprep.subr.bf16.mxu0 0
    %1838 = vmatpush1.bf16.msra.mxu0 0
    %1839 = vmatprep.mubr.bf16.mxu0 0
    %1840 = vmatmul.mubr.bf16.gmra.mrb[0].mxu0 %v1806
    %v1841 = vpop.f32.mrb[0].mxu0
    %v1842 = vadd.f32 0.0, %v1841
    %v1843 = vpop.f32.mrb[0].mxu0
    %v1844 = vpop.f32.mrb[0].mxu0
    %v1845 = vpop.f32.mrb[0].mxu0
    %1846 = vdwg.mxu0
    %v1847 = vmul.f32 %v1842, %v549
    %v1848 = vpack.c.bf16 %v1847, %v1847
    %v1849 = vld [vmem:[%s6 + $0xc0] sm:$0xf]
    %v1850 = vld [vmem:[%s6 + $0xc4] sm:$0xf]
    %v1851 = vld [vmem:[%s6 + $0xc8] sm:$0xf]
    %v1852 = vld [vmem:[%s6 + $0xcc] sm:$0xf]
    %v1857 = vunpack.c.l.b16 %v1849
    %v1858 = vunpack.c.l.b16 %v1850
    %v1859 = vunpack.c.l.b16 %v1851
    %v1860 = vunpack.c.l.b16 %v1852
    %v1861 = vpack.c.b16 %v1858, %v1857
    %v1862 = vpack.c.b16 %v1860, %v1859
    %v1866 = vsel %vm449, %v1848, 0
    %1868 = vmatprep.subr.bf16.mxu0 0
    %1869 = vmatpush1.bf16.msra.mxu0 %v1861
    %1870 = vmatprep.subr.bf16.mxu0 0
    %1871 = vmatpush1.bf16.msra.mxu0 %v1862
    %1872 = vmatprep.subr.bf16.mxu0 0
    %1873 = vmatpush1.bf16.msra.mxu0 0
    %1874 = vmatprep.subr.bf16.mxu0 0
    %1875 = vmatpush1.bf16.msra.mxu0 0
    %1876 = vmatprep.subr.bf16.mxu0 0
    %1877 = vmatpush1.bf16.msra.mxu0 0
    %1878 = vmatprep.subr.bf16.mxu0 0
    %1879 = vmatpush1.bf16.msra.mxu0 0
    %1880 = vmatprep.subr.bf16.mxu0 0
    %1881 = vmatpush1.bf16.msra.mxu0 0
    %1882 = vmatprep.subr.bf16.mxu0 0
    %1883 = vmatpush1.bf16.msra.mxu0 0
    %1884 = vmatprep.subr.bf16.mxu0 0
    %1885 = vmatpush1.bf16.msra.mxu0 0
    %1886 = vmatprep.subr.bf16.mxu0 0
    %1887 = vmatpush1.bf16.msra.mxu0 0
    %1888 = vmatprep.subr.bf16.mxu0 0
    %1889 = vmatpush1.bf16.msra.mxu0 0
    %1890 = vmatprep.subr.bf16.mxu0 0
    %1891 = vmatpush1.bf16.msra.mxu0 0
    %1892 = vmatprep.subr.bf16.mxu0 0
    %1893 = vmatpush1.bf16.msra.mxu0 0
    %1894 = vmatprep.subr.bf16.mxu0 0
    %1895 = vmatpush1.bf16.msra.mxu0 0
    %1896 = vmatprep.subr.bf16.mxu0 0
    %1897 = vmatpush1.bf16.msra.mxu0 0
    %1898 = vmatprep.subr.bf16.mxu0 0
    %1899 = vmatpush1.bf16.msra.mxu0 0
    %1900 = vmatprep.mubr.bf16.mxu0 0
    %1901 = vmatmul.mubr.bf16.gmra.mrb[0].mxu0 %v1866
    %v1902 = vpop.f32.mrb[0].mxu0
    %v1903 = vadd.f32 0.0, %v1902
    %v1904 = vpop.f32.mrb[0].mxu0
    %v1905 = vpop.f32.mrb[0].mxu0
    %v1906 = vpop.f32.mrb[0].mxu0
    %1907 = vdwg.mxu0
    %v1908 = vadd.f32 %v1804, %v1903
    %s1909 = scalar_lea.vmem %s4, 13
    %v1910 = vld [vmem:[%s1909] sm:$0x1]
    %1911 = vmatprep.subr.bf16.mxu0 0
    %1912 = vmatpush1.bf16.msra.mxu0 %v552
    %1913 = vmatprep.subr.bf16.mxu0 0
    %1914 = vmatpush1.bf16.msra.mxu0 %v553
    %1915 = vmatprep.subr.bf16.mxu0 0
    %1916 = vmatpush1.bf16.msra.mxu0 %v554
    %1917 = vmatprep.subr.bf16.mxu0 0
    %1918 = vmatpush1.bf16.msra.mxu0 %v555
    %1919 = vmatprep.subr.bf16.mxu0 0
    %1920 = vmatpush1.bf16.msra.mxu0 %v556
    %1921 = vmatprep.subr.bf16.mxu0 0
    %1922 = vmatpush1.bf16.msra.mxu0 %v557
    %1923 = vmatprep.subr.bf16.mxu0 0
    %1924 = vmatpush1.bf16.msra.mxu0 %v558
    %1925 = vmatprep.subr.bf16.mxu0 0
    %1926 = vmatpush1.bf16.msra.mxu0 %v559
    %1927 = vmatprep.subr.bf16.mxu0 0
    %1928 = vmatpush1.bf16.msra.mxu0 0
    %1929 = vmatprep.subr.bf16.mxu0 0
    %1930 = vmatpush1.bf16.msra.mxu0 0
    %1931 = vmatprep.subr.bf16.mxu0 0
    %1932 = vmatpush1.bf16.msra.mxu0 0
    %1933 = vmatprep.subr.bf16.mxu0 0
    %1934 = vmatpush1.bf16.msra.mxu0 0
    %1935 = vmatprep.subr.bf16.mxu0 0
    %1936 = vmatpush1.bf16.msra.mxu0 0
    %1937 = vmatprep.subr.bf16.mxu0 0
    %1938 = vmatpush1.bf16.msra.mxu0 0
    %1939 = vmatprep.subr.bf16.mxu0 0
    %1940 = vmatpush1.bf16.msra.mxu0 0
    %1941 = vmatprep.subr.bf16.mxu0 0
    %1942 = vmatpush1.bf16.msra.mxu0 0
    %1943 = vmatprep.mubr.bf16.mxu0 0
    %1944 = vmatmul.mubr.bf16.gmra.mrb[0].mxu0 %v1910
    %v1945 = vpop.f32.mrb[0].mxu0
    %v1946 = vadd.f32 0.0, %v1945
    %v1947 = vpop.f32.mrb[0].mxu0
    %v1948 = vpop.f32.mrb[0].mxu0
    %v1949 = vpop.f32.mrb[0].mxu0
    %1950 = vdwg.mxu0
    %v1951 = vmul.f32 %v1946, %v549
    %v1952 = vpack.c.bf16 %v1951, %v1951
    %v1953 = vld [vmem:[%s6 + $0xd0] sm:$0xf]
    %v1954 = vld [vmem:[%s6 + $0xd4] sm:$0xf]
    %v1955 = vld [vmem:[%s6 + $0xd8] sm:$0xf]
    %v1956 = vld [vmem:[%s6 + $0xdc] sm:$0xf]
    %v1961 = vunpack.c.l.b16 %v1953
    %v1962 = vunpack.c.l.b16 %v1954
    %v1963 = vunpack.c.l.b16 %v1955
    %v1964 = vunpack.c.l.b16 %v1956
    %v1965 = vpack.c.b16 %v1962, %v1961
    %v1966 = vpack.c.b16 %v1964, %v1963
    %v1970 = vsel %vm449, %v1952, 0
    %1972 = vmatprep.subr.bf16.mxu0 0
    %1973 = vmatpush1.bf16.msra.mxu0 %v1965
    %1974 = vmatprep.subr.bf16.mxu0 0
    %1975 = vmatpush1.bf16.msra.mxu0 %v1966
    %1976 = vmatprep.subr.bf16.mxu0 0
    %1977 = vmatpush1.bf16.msra.mxu0 0
    %1978 = vmatprep.subr.bf16.mxu0 0
    %1979 = vmatpush1.bf16.msra.mxu0 0
    %1980 = vmatprep.subr.bf16.mxu0 0
    %1981 = vmatpush1.bf16.msra.mxu0 0
    %1982 = vmatprep.subr.bf16.mxu0 0
    %1983 = vmatpush1.bf16.msra.mxu0 0
    %1984 = vmatprep.subr.bf16.mxu0 0
    %1985 = vmatpush1.bf16.msra.mxu0 0
    %1986 = vmatprep.subr.bf16.mxu0 0
    %1987 = vmatpush1.bf16.msra.mxu0 0
    %1988 = vmatprep.subr.bf16.mxu0 0
    %1989 = vmatpush1.bf16.msra.mxu0 0
    %1990 = vmatprep.subr.bf16.mxu0 0
    %1991 = vmatpush1.bf16.msra.mxu0 0
    %1992 = vmatprep.subr.bf16.mxu0 0
    %1993 = vmatpush1.bf16.msra.mxu0 0
    %1994 = vmatprep.subr.bf16.mxu0 0
    %1995 = vmatpush1.bf16.msra.mxu0 0
    %1996 = vmatprep.subr.bf16.mxu0 0
    %1997 = vmatpush1.bf16.msra.mxu0 0
    %1998 = vmatprep.subr.bf16.mxu0 0
    %1999 = vmatpush1.bf16.msra.mxu0 0
    %2000 = vmatprep.subr.bf16.mxu0 0
    %2001 = vmatpush1.bf16.msra.mxu0 0
    %2002 = vmatprep.subr.bf16.mxu0 0
    %2003 = vmatpush1.bf16.msra.mxu0 0
    %2004 = vmatprep.mubr.bf16.mxu0 0
    %2005 = vmatmul.mubr.bf16.gmra.mrb[0].mxu0 %v1970
    %v2006 = vpop.f32.mrb[0].mxu0
    %v2007 = vadd.f32 0.0, %v2006
    %v2008 = vpop.f32.mrb[0].mxu0
    %v2009 = vpop.f32.mrb[0].mxu0
    %v2010 = vpop.f32.mrb[0].mxu0
    %2011 = vdwg.mxu0
    %v2012 = vadd.f32 %v1908, %v2007
    %s2013 = scalar_lea.vmem %s4, 14
    %v2014 = vld [vmem:[%s2013] sm:$0x1]
    %2015 = vmatprep.subr.bf16.mxu0 0
    %2016 = vmatpush1.bf16.msra.mxu0 %v552
    %2017 = vmatprep.subr.bf16.mxu0 0
    %2018 = vmatpush1.bf16.msra.mxu0 %v553
    %2019 = vmatprep.subr.bf16.mxu0 0
    %2020 = vmatpush1.bf16.msra.mxu0 %v554
    %2021 = vmatprep.subr.bf16.mxu0 0
    %2022 = vmatpush1.bf16.msra.mxu0 %v555
    %2023 = vmatprep.subr.bf16.mxu0 0
    %2024 = vmatpush1.bf16.msra.mxu0 %v556
    %2025 = vmatprep.subr.bf16.mxu0 0
    %2026 = vmatpush1.bf16.msra.mxu0 %v557
    %2027 = vmatprep.subr.bf16.mxu0 0
    %2028 = vmatpush1.bf16.msra.mxu0 %v558
    %2029 = vmatprep.subr.bf16.mxu0 0
    %2030 = vmatpush1.bf16.msra.mxu0 %v559
    %2031 = vmatprep.subr.bf16.mxu0 0
    %2032 = vmatpush1.bf16.msra.mxu0 0
    %2033 = vmatprep.subr.bf16.mxu0 0
    %2034 = vmatpush1.bf16.msra.mxu0 0
    %2035 = vmatprep.subr.bf16.mxu0 0
    %2036 = vmatpush1.bf16.msra.mxu0 0
    %2037 = vmatprep.subr.bf16.mxu0 0
    %2038 = vmatpush1.bf16.msra.mxu0 0
    %2039 = vmatprep.subr.bf16.mxu0 0
    %2040 = vmatpush1.bf16.msra.mxu0 0
    %2041 = vmatprep.subr.bf16.mxu0 0
    %2042 = vmatpush1.bf16.msra.mxu0 0
    %2043 = vmatprep.subr.bf16.mxu0 0
    %2044 = vmatpush1.bf16.msra.mxu0 0
    %2045 = vmatprep.subr.bf16.mxu0 0
    %2046 = vmatpush1.bf16.msra.mxu0 0
    %2047 = vmatprep.mubr.bf16.mxu0 0
    %2048 = vmatmul.mubr.bf16.gmra.mrb[0].mxu0 %v2014
    %v2049 = vpop.f32.mrb[0].mxu0
    %v2050 = vadd.f32 0.0, %v2049
    %v2051 = vpop.f32.mrb[0].mxu0
    %v2052 = vpop.f32.mrb[0].mxu0
    %v2053 = vpop.f32.mrb[0].mxu0
    %2054 = vdwg.mxu0
    %v2055 = vmul.f32 %v2050, %v549
    %v2056 = vpack.c.bf16 %v2055, %v2055
    %v2057 = vld [vmem:[%s6 + $0xe0] sm:$0xf]
    %v2058 = vld [vmem:[%s6 + $0xe4] sm:$0xf]
    %v2059 = vld [vmem:[%s6 + $0xe8] sm:$0xf]
    %v2060 = vld [vmem:[%s6 + $0xec] sm:$0xf]
    %v2065 = vunpack.c.l.b16 %v2057
    %v2066 = vunpack.c.l.b16 %v2058
    %v2067 = vunpack.c.l.b16 %v2059
    %v2068 = vunpack.c.l.b16 %v2060
    %v2069 = vpack.c.b16 %v2066, %v2065
    %v2070 = vpack.c.b16 %v2068, %v2067
    %v2074 = vsel %vm449, %v2056, 0
    %2076 = vmatprep.subr.bf16.mxu0 0
    %2077 = vmatpush1.bf16.msra.mxu0 %v2069
    %2078 = vmatprep.subr.bf16.mxu0 0
    %2079 = vmatpush1.bf16.msra.mxu0 %v2070
    %2080 = vmatprep.subr.bf16.mxu0 0
    %2081 = vmatpush1.bf16.msra.mxu0 0
    %2082 = vmatprep.subr.bf16.mxu0 0
    %2083 = vmatpush1.bf16.msra.mxu0 0
    %2084 = vmatprep.subr.bf16.mxu0 0
    %2085 = vmatpush1.bf16.msra.mxu0 0
    %2086 = vmatprep.subr.bf16.mxu0 0
    %2087 = vmatpush1.bf16.msra.mxu0 0
    %2088 = vmatprep.subr.bf16.mxu0 0
    %2089 = vmatpush1.bf16.msra.mxu0 0
    %2090 = vmatprep.subr.bf16.mxu0 0
    %2091 = vmatpush1.bf16.msra.mxu0 0
    %2092 = vmatprep.subr.bf16.mxu0 0
    %2093 = vmatpush1.bf16.msra.mxu0 0
    %2094 = vmatprep.subr.bf16.mxu0 0
    %2095 = vmatpush1.bf16.msra.mxu0 0
    %2096 = vmatprep.subr.bf16.mxu0 0
    %2097 = vmatpush1.bf16.msra.mxu0 0
    %2098 = vmatprep.subr.bf16.mxu0 0
    %2099 = vmatpush1.bf16.msra.mxu0 0
    %2100 = vmatprep.subr.bf16.mxu0 0
    %2101 = vmatpush1.bf16.msra.mxu0 0
    %2102 = vmatprep.subr.bf16.mxu0 0
    %2103 = vmatpush1.bf16.msra.mxu0 0
    %2104 = vmatprep.subr.bf16.mxu0 0
    %2105 = vmatpush1.bf16.msra.mxu0 0
    %2106 = vmatprep.subr.bf16.mxu0 0
    %2107 = vmatpush1.bf16.msra.mxu0 0
    %2108 = vmatprep.mubr.bf16.mxu0 0
    %2109 = vmatmul.mubr.bf16.gmra.mrb[0].mxu0 %v2074
    %v2110 = vpop.f32.mrb[0].mxu0
    %v2111 = vadd.f32 0.0, %v2110
    %v2112 = vpop.f32.mrb[0].mxu0
    %v2113 = vpop.f32.mrb[0].mxu0
    %v2114 = vpop.f32.mrb[0].mxu0
    %2115 = vdwg.mxu0
    %v2116 = vadd.f32 %v2012, %v2111
    %s2117 = scalar_lea.vmem %s4, 15
    %v2118 = vld [vmem:[%s2117] sm:$0x1]
    %2119 = vmatprep.subr.bf16.mxu0 0
    %2120 = vmatpush1.bf16.msra.mxu0 %v552
    %2121 = vmatprep.subr.bf16.mxu0 0
    %2122 = vmatpush1.bf16.msra.mxu0 %v553
    %2123 = vmatprep.subr.bf16.mxu0 0
    %2124 = vmatpush1.bf16.msra.mxu0 %v554
    %2125 = vmatprep.subr.bf16.mxu0 0
    %2126 = vmatpush1.bf16.msra.mxu0 %v555
    %2127 = vmatprep.subr.bf16.mxu0 0
    %2128 = vmatpush1.bf16.msra.mxu0 %v556
    %2129 = vmatprep.subr.bf16.mxu0 0
    %2130 = vmatpush1.bf16.msra.mxu0 %v557
    %2131 = vmatprep.subr.bf16.mxu0 0
    %2132 = vmatpush1.bf16.msra.mxu0 %v558
    %2133 = vmatprep.subr.bf16.mxu0 0
    %2134 = vmatpush1.bf16.msra.mxu0 %v559
    %2135 = vmatprep.subr.bf16.mxu0 0
    %2136 = vmatpush1.bf16.msra.mxu0 0
    %2137 = vmatprep.subr.bf16.mxu0 0
    %2138 = vmatpush1.bf16.msra.mxu0 0
    %2139 = vmatprep.subr.bf16.mxu0 0
    %2140 = vmatpush1.bf16.msra.mxu0 0
    %2141 = vmatprep.subr.bf16.mxu0 0
    %2142 = vmatpush1.bf16.msra.mxu0 0
    %2143 = vmatprep.subr.bf16.mxu0 0
    %2144 = vmatpush1.bf16.msra.mxu0 0
    %2145 = vmatprep.subr.bf16.mxu0 0
    %2146 = vmatpush1.bf16.msra.mxu0 0
    %2147 = vmatprep.subr.bf16.mxu0 0
    %2148 = vmatpush1.bf16.msra.mxu0 0
    %2149 = vmatprep.subr.bf16.mxu0 0
    %2150 = vmatpush1.bf16.msra.mxu0 0
    %2151 = vmatprep.mubr.bf16.mxu0 0
    %2152 = vmatmul.mubr.bf16.gmra.mrb[0].mxu0 %v2118
    %v2153 = vpop.f32.mrb[0].mxu0
    %v2154 = vadd.f32 0.0, %v2153
    %v2155 = vpop.f32.mrb[0].mxu0
    %v2156 = vpop.f32.mrb[0].mxu0
    %v2157 = vpop.f32.mrb[0].mxu0
    %2158 = vdwg.mxu0
    %v2159 = vmul.f32 %v2154, %v549
    %v2160 = vpack.c.bf16 %v2159, %v2159
    %v2161 = vld [vmem:[%s6 + $0xf0] sm:$0xf]
    %v2162 = vld [vmem:[%s6 + $0xf4] sm:$0xf]
    %v2163 = vld [vmem:[%s6 + $0xf8] sm:$0xf]
    %v2164 = vld [vmem:[%s6 + $0xfc] sm:$0xf]
    %v2169 = vunpack.c.l.b16 %v2161
    %v2170 = vunpack.c.l.b16 %v2162
    %v2171 = vunpack.c.l.b16 %v2163
    %v2172 = vunpack.c.l.b16 %v2164
    %v2173 = vpack.c.b16 %v2170, %v2169
    %v2174 = vpack.c.b16 %v2172, %v2171
    %v2178 = vsel %vm449, %v2160, 0
    %2180 = vmatprep.subr.bf16.mxu0 0
    %2181 = vmatpush1.bf16.msra.mxu0 %v2173
    %2182 = vmatprep.subr.bf16.mxu0 0
    %2183 = vmatpush1.bf16.msra.mxu0 %v2174
    %2184 = vmatprep.subr.bf16.mxu0 0
    %2185 = vmatpush1.bf16.msra.mxu0 0
    %2186 = vmatprep.subr.bf16.mxu0 0
    %2187 = vmatpush1.bf16.msra.mxu0 0
    %2188 = vmatprep.subr.bf16.mxu0 0
    %2189 = vmatpush1.bf16.msra.mxu0 0
    %2190 = vmatprep.subr.bf16.mxu0 0
    %2191 = vmatpush1.bf16.msra.mxu0 0
    %2192 = vmatprep.subr.bf16.mxu0 0
    %2193 = vmatpush1.bf16.msra.mxu0 0
    %2194 = vmatprep.subr.bf16.mxu0 0
    %2195 = vmatpush1.bf16.msra.mxu0 0
    %2196 = vmatprep.subr.bf16.mxu0 0
    %2197 = vmatpush1.bf16.msra.mxu0 0
    %2198 = vmatprep.subr.bf16.mxu0 0
    %2199 = vmatpush1.bf16.msra.mxu0 0
    %2200 = vmatprep.subr.bf16.mxu0 0
    %2201 = vmatpush1.bf16.msra.mxu0 0
    %2202 = vmatprep.subr.bf16.mxu0 0
    %2203 = vmatpush1.bf16.msra.mxu0 0
    %2204 = vmatprep.subr.bf16.mxu0 0
    %2205 = vmatpush1.bf16.msra.mxu0 0
    %2206 = vmatprep.subr.bf16.mxu0 0
    %2207 = vmatpush1.bf16.msra.mxu0 0
    %2208 = vmatprep.subr.bf16.mxu0 0
    %2209 = vmatpush1.bf16.msra.mxu0 0
    %2210 = vmatprep.subr.bf16.mxu0 0
    %2211 = vmatpush1.bf16.msra.mxu0 0
    %2212 = vmatprep.mubr.bf16.mxu0 0
    %2213 = vmatmul.mubr.bf16.gmra.mrb[0].mxu0 %v2178
    %v2214 = vpop.f32.mrb[0].mxu0
    %v2215 = vadd.f32 0.0, %v2214
    %v2216 = vpop.f32.mrb[0].mxu0
    %v2217 = vpop.f32.mrb[0].mxu0
    %v2218 = vpop.f32.mrb[0].mxu0
    %2219 = vdwg.mxu0
    %v2220 = vadd.f32 %v2116, %v2215
    %v2221 = vld [vmem:[%s7] sm:$0x1]
    %v2223 = vlaneseq
    %v2224 = vshrl.u32 %v2223, 7
    %v2225 = vsub.s32 0, %v2224
    %v2226 = vrot.slane %v2221, %v2225
    %v2228 = vadd.f32 %v2220, %v2226
    %v2229 = vmax.f32 %v2228, 0.0
    %v2230 = vpack.c.bf16 %v2229, %v2229
    %v2231 = vld [vmem:[%s8] sm:$0xf]
    %v2232 = vld [vmem:[%s8 + $0x4] sm:$0xf]
    %v2233 = vld [vmem:[%s8 + $0x8] sm:$0xf]
    %v2234 = vld [vmem:[%s8 + $0xc] sm:$0xf]
    %v2235 = vld [vmem:[%s8 + $0x10] sm:$0xf]
    %v2236 = vld [vmem:[%s8 + $0x14] sm:$0xf]
    %v2237 = vld [vmem:[%s8 + $0x18] sm:$0xf]
    %v2238 = vld [vmem:[%s8 + $0x1c] sm:$0xf]
    %v2239 = vld [vmem:[%s9] sm:$0x1]
    %v2241 = vlaneseq
    %v2242 = vshrl.u32 %v2241, 7
    %v2243 = vsub.s32 0, %v2242
    %v2244 = vrot.slane %v2239, %v2243
    %v2254 = vunpack.c.l.b16 %v2231
    %v2255 = vunpack.c.l.b16 %v2232
    %v2256 = vunpack.c.l.b16 %v2233
    %v2257 = vunpack.c.l.b16 %v2234
    %v2258 = vunpack.c.l.b16 %v2235
    %v2259 = vunpack.c.l.b16 %v2236
    %v2260 = vunpack.c.l.b16 %v2237
    %v2261 = vunpack.c.l.b16 %v2238
    %v2262 = vpack.c.b16 %v2255, %v2254
    %v2263 = vpack.c.b16 %v2257, %v2256
    %v2264 = vpack.c.b16 %v2259, %v2258
    %v2265 = vpack.c.b16 %v2261, %v2260
    %vm2270 = vcmask 523264
    %v2272 = vsel %vm2270, %v2230, 0
    %2274 = vmatprep.subr.bf16.mxu0 0
    %2275 = vmatpush1.bf16.msra.mxu0 %v2262
    %2276 = vmatprep.subr.bf16.mxu0 0
    %2277 = vmatpush1.bf16.msra.mxu0 %v2263
    %2278 = vmatprep.subr.bf16.mxu0 0
    %2279 = vmatpush1.bf16.msra.mxu0 %v2264
    %2280 = vmatprep.subr.bf16.mxu0 0
    %2281 = vmatpush1.bf16.msra.mxu0 %v2265
    %2282 = vmatprep.subr.bf16.mxu0 0
    %2283 = vmatpush1.bf16.msra.mxu0 0
    %2284 = vmatprep.subr.bf16.mxu0 0
    %2285 = vmatpush1.bf16.msra.mxu0 0
    %2286 = vmatprep.subr.bf16.mxu0 0
    %2287 = vmatpush1.bf16.msra.mxu0 0
    %2288 = vmatprep.subr.bf16.mxu0 0
    %2289 = vmatpush1.bf16.msra.mxu0 0
    %2290 = vmatprep.subr.bf16.mxu0 0
    %2291 = vmatpush1.bf16.msra.mxu0 0
    %2292 = vmatprep.subr.bf16.mxu0 0
    %2293 = vmatpush1.bf16.msra.mxu0 0
    %2294 = vmatprep.subr.bf16.mxu0 0
    %2295 = vmatpush1.bf16.msra.mxu0 0
    %2296 = vmatprep.subr.bf16.mxu0 0
    %2297 = vmatpush1.bf16.msra.mxu0 0
    %2298 = vmatprep.subr.bf16.mxu0 0
    %2299 = vmatpush1.bf16.msra.mxu0 0
    %2300 = vmatprep.subr.bf16.mxu0 0
    %2301 = vmatpush1.bf16.msra.mxu0 0
    %2302 = vmatprep.subr.bf16.mxu0 0
    %2303 = vmatpush1.bf16.msra.mxu0 0
    %2304 = vmatprep.subr.bf16.mxu0 0
    %2305 = vmatpush1.bf16.msra.mxu0 0
    %2306 = vmatprep.mubr.bf16.mxu0 0
    %2307 = vmatmul.mubr.bf16.gmra.mrb[0].mxu0 %v2272
    %v2308 = vpop.f32.mrb[0].mxu0
    %v2309 = vadd.f32 %v2244, %v2308
    %v2310 = vpop.f32.mrb[0].mxu0
    %v2311 = vpop.f32.mrb[0].mxu0
    %v2312 = vpop.f32.mrb[0].mxu0
    %2313 = vdwg.mxu0
    %v2314 = vmax.f32 %v2309, 0.0
    %v2315 = vpack.c.bf16 %v2314, %v2314
    %v2316 = vld [vmem:[%s10] sm:$0xf]
    %v2317 = vld [vmem:[%s10 + $0x4] sm:$0xf]
    %v2318 = vld [vmem:[%s10 + $0x8] sm:$0xf]
    %v2319 = vld [vmem:[%s10 + $0xc] sm:$0xf]
    %v2320 = vld [vmem:[%s10 + $0x10] sm:$0xf]
    %v2321 = vld [vmem:[%s10 + $0x14] sm:$0xf]
    %v2322 = vld [vmem:[%s10 + $0x18] sm:$0xf]
    %v2323 = vld [vmem:[%s10 + $0x1c] sm:$0xf]
    %v2324 = vld [vmem:[%s11] sm:$0x1]
    %v2326 = vlaneseq
    %v2327 = vshrl.u32 %v2326, 7
    %v2328 = vsub.s32 0, %v2327
    %v2329 = vrot.slane %v2324, %v2328
    %v2339 = vunpack.c.l.b16 %v2316
    %v2340 = vunpack.c.l.b16 %v2317
    %v2341 = vunpack.c.l.b16 %v2318
    %v2342 = vunpack.c.l.b16 %v2319
    %v2343 = vunpack.c.l.b16 %v2320
    %v2344 = vunpack.c.l.b16 %v2321
    %v2345 = vunpack.c.l.b16 %v2322
    %v2346 = vunpack.c.l.b16 %v2323
    %v2347 = vpack.c.b16 %v2340, %v2339
    %v2348 = vpack.c.b16 %v2342, %v2341
    %v2349 = vpack.c.b16 %v2344, %v2343
    %v2350 = vpack.c.b16 %v2346, %v2345
    %v2356 = vsel %vm2270, %v2315, 0
    %2358 = vmatprep.subr.bf16.mxu0 0
    %2359 = vmatpush1.bf16.msra.mxu0 %v2347
    %2360 = vmatprep.subr.bf16.mxu0 0
    %2361 = vmatpush1.bf16.msra.mxu0 %v2348
    %2362 = vmatprep.subr.bf16.mxu0 0
    %2363 = vmatpush1.bf16.msra.mxu0 %v2349
    %2364 = vmatprep.subr.bf16.mxu0 0
    %2365 = vmatpush1.bf16.msra.mxu0 %v2350
    %2366 = vmatprep.subr.bf16.mxu0 0
    %2367 = vmatpush1.bf16.msra.mxu0 0
    %2368 = vmatprep.subr.bf16.mxu0 0
    %2369 = vmatpush1.bf16.msra.mxu0 0
    %2370 = vmatprep.subr.bf16.mxu0 0
    %2371 = vmatpush1.bf16.msra.mxu0 0
    %2372 = vmatprep.subr.bf16.mxu0 0
    %2373 = vmatpush1.bf16.msra.mxu0 0
    %2374 = vmatprep.subr.bf16.mxu0 0
    %2375 = vmatpush1.bf16.msra.mxu0 0
    %2376 = vmatprep.subr.bf16.mxu0 0
    %2377 = vmatpush1.bf16.msra.mxu0 0
    %2378 = vmatprep.subr.bf16.mxu0 0
    %2379 = vmatpush1.bf16.msra.mxu0 0
    %2380 = vmatprep.subr.bf16.mxu0 0
    %2381 = vmatpush1.bf16.msra.mxu0 0
    %2382 = vmatprep.subr.bf16.mxu0 0
    %2383 = vmatpush1.bf16.msra.mxu0 0
    %2384 = vmatprep.subr.bf16.mxu0 0
    %2385 = vmatpush1.bf16.msra.mxu0 0
    %2386 = vmatprep.subr.bf16.mxu0 0
    %2387 = vmatpush1.bf16.msra.mxu0 0
    %2388 = vmatprep.subr.bf16.mxu0 0
    %2389 = vmatpush1.bf16.msra.mxu0 0
    %2390 = vmatprep.mubr.bf16.mxu0 0
    %2391 = vmatmul.mubr.bf16.gmra.mrb[0].mxu0 %v2356
    %v2392 = vpop.f32.mrb[0].mxu0
    %v2393 = vadd.f32 %v2329, %v2392
    %v2394 = vpop.f32.mrb[0].mxu0
    %v2395 = vpop.f32.mrb[0].mxu0
    %v2396 = vpop.f32.mrb[0].mxu0
    %2397 = vdwg.mxu0
    %vm2398 = vcmask 9216
    %v2399 = vsel %vm2398, %v2393, -inf
    %2400 = vmax.xlane.f32.xlu0 %v2399
    %v2401 = vpop.xlane.xlu0 %2400
    %v2402 = vsub.f32 %v2393, %v2401
    %v2403 = vmul.f32 %v2402, 1.442695
    %v2404 = vpow.pop %v2403
    %v2405 = vsel %vm2398, %v2404, 0.0
    %2406 = vadd.xlane.f32.xlu0 %v2405
    %v2407 = vpop.xlane.xlu0 %2406
    %v2408 = vrcp.pop %v2407
    %v2409 = vmul.f32 %v2404, %v2408
    %v2410 = vld [vmem:[%s5] sm:$0xff]
    %vm2411 = vcmask 15360
    %v2413 = vsel %vm2411, %v2410, 0
    %vm2415 = vcmask 1041408
    %v2417 = vsel %vm2415, %v2409, 0
    %2419 = vmatprep.subr.mxu0 0.0
    %2420 = vmatpush1.msra.mxu0 %v2417
    %2421 = vmatprep.subr.mxu0 0.0
    %2422 = vmatpush1.msra.mxu0 0.0
    %2423 = vmatprep.subr.mxu0 0.0
    %2424 = vmatpush1.msra.mxu0 0.0
    %2425 = vmatprep.subr.mxu0 0.0
    %2426 = vmatpush1.msra.mxu0 0.0
    %2427 = vmatprep.subr.mxu0 0.0
    %2428 = vmatpush1.msra.mxu0 0.0
    %2429 = vmatprep.subr.mxu0 0.0
    %2430 = vmatpush1.msra.mxu0 0.0
    %2431 = vmatprep.subr.mxu0 0.0
    %2432 = vmatpush1.msra.mxu0 0.0
    %2433 = vmatprep.subr.mxu0 0.0
    %2434 = vmatpush1.msra.mxu0 0.0
    %2435 = vmatprep.subr.mxu0 0.0
    %2436 = vmatpush1.msra.mxu0 0.0
    %2437 = vmatprep.subr.mxu0 0.0
    %2438 = vmatpush1.msra.mxu0 0.0
    %2439 = vmatprep.subr.mxu0 0.0
    %2440 = vmatpush1.msra.mxu0 0.0
    %2441 = vmatprep.subr.mxu0 0.0
    %2442 = vmatpush1.msra.mxu0 0.0
    %2443 = vmatprep.subr.mxu0 0.0
    %2444 = vmatpush1.msra.mxu0 0.0
    %2445 = vmatprep.subr.mxu0 0.0
    %2446 = vmatpush1.msra.mxu0 0.0
    %2447 = vmatprep.subr.mxu0 0.0
    %2448 = vmatpush1.msra.mxu0 0.0
    %2449 = vmatprep.subr.mxu0 0.0
    %2450 = vmatpush1.msra.mxu0 0.0
    %2451 = vmatprep.subr.mxu0 0.0
    %2452 = vmatpush1.msra.mxu0 0.0
    %2453 = vmatprep.subr.mxu0 0.0
    %2454 = vmatpush1.msra.mxu0 0.0
    %2455 = vmatprep.subr.mxu0 0.0
    %2456 = vmatpush1.msra.mxu0 0.0
    %2457 = vmatprep.subr.mxu0 0.0
    %2458 = vmatpush1.msra.mxu0 0.0
    %2459 = vmatprep.subr.mxu0 0.0
    %2460 = vmatpush1.msra.mxu0 0.0
    %2461 = vmatprep.subr.mxu0 0.0
    %2462 = vmatpush1.msra.mxu0 0.0
    %2463 = vmatprep.subr.mxu0 0.0
    %2464 = vmatpush1.msra.mxu0 0.0
    %2465 = vmatprep.subr.mxu0 0.0
    %2466 = vmatpush1.msra.mxu0 0.0
    %2467 = vmatprep.subr.mxu0 0.0
    %2468 = vmatpush1.msra.mxu0 0.0
    %2469 = vmatprep.subr.mxu0 0.0
    %2470 = vmatpush1.msra.mxu0 0.0
    %2471 = vmatprep.subr.mxu0 0.0
    %2472 = vmatpush1.msra.mxu0 0.0
    %2473 = vmatprep.subr.mxu0 0.0
    %2474 = vmatpush1.msra.mxu0 0.0
    %2475 = vmatprep.subr.mxu0 0.0
    %2476 = vmatpush1.msra.mxu0 0.0
    %2477 = vmatprep.subr.mxu0 0.0
    %2478 = vmatpush1.msra.mxu0 0.0
    %2479 = vmatprep.subr.mxu0 0.0
    %2480 = vmatpush1.msra.mxu0 0.0
    %2481 = vmatprep.subr.mxu0 0.0
    %2482 = vmatpush1.msra.mxu0 0.0
    %2483 = vmatprep.mubr.f32.mxu0 0.0
    %2484 = vmatmul.mubr.f32.gmra.mrb[0].mxu0 %v2413
    %v2485 = vpop.f32.mrb[0].mxu0
    %v2486 = vadd.f32 0.0, %v2485
    %v2487 = vpop.f32.mrb[0].mxu0
    %2488 = vdwg.mxu0
    %2489 = vst.msk [vmem:[%s14] sm:$0xff] %vm2411, %v2486
    %v2490 = vld [vmem:[%s5] sm:$0xff]
    %2492 = vrot.lane.b32.xlu0 %v2393, 126
    %v2493 = vpop.permute.xlu0 %2492
    %v2495 = vsel %vm2411, %v2490, 0
    %v2497 = vsel %vm2415, %v2493, 0
    %2499 = vmatprep.subr.mxu0 0.0
    %2500 = vmatpush1.msra.mxu0 %v2497
    %2501 = vmatprep.subr.mxu0 0.0
    %2502 = vmatpush1.msra.mxu0 0.0
    %2503 = vmatprep.subr.mxu0 0.0
    %2504 = vmatpush1.msra.mxu0 0.0
    %2505 = vmatprep.subr.mxu0 0.0
    %2506 = vmatpush1.msra.mxu0 0.0
    %2507 = vmatprep.subr.mxu0 0.0
    %2508 = vmatpush1.msra.mxu0 0.0
    %2509 = vmatprep.subr.mxu0 0.0
    %2510 = vmatpush1.msra.mxu0 0.0
    %2511 = vmatprep.subr.mxu0 0.0
    %2512 = vmatpush1.msra.mxu0 0.0
    %2513 = vmatprep.subr.mxu0 0.0
    %2514 = vmatpush1.msra.mxu0 0.0
    %2515 = vmatprep.subr.mxu0 0.0
    %2516 = vmatpush1.msra.mxu0 0.0
    %2517 = vmatprep.subr.mxu0 0.0
    %2518 = vmatpush1.msra.mxu0 0.0
    %2519 = vmatprep.subr.mxu0 0.0
    %2520 = vmatpush1.msra.mxu0 0.0
    %2521 = vmatprep.subr.mxu0 0.0
    %2522 = vmatpush1.msra.mxu0 0.0
    %2523 = vmatprep.subr.mxu0 0.0
    %2524 = vmatpush1.msra.mxu0 0.0
    %2525 = vmatprep.subr.mxu0 0.0
    %2526 = vmatpush1.msra.mxu0 0.0
    %2527 = vmatprep.subr.mxu0 0.0
    %2528 = vmatpush1.msra.mxu0 0.0
    %2529 = vmatprep.subr.mxu0 0.0
    %2530 = vmatpush1.msra.mxu0 0.0
    %2531 = vmatprep.subr.mxu0 0.0
    %2532 = vmatpush1.msra.mxu0 0.0
    %2533 = vmatprep.subr.mxu0 0.0
    %2534 = vmatpush1.msra.mxu0 0.0
    %2535 = vmatprep.subr.mxu0 0.0
    %2536 = vmatpush1.msra.mxu0 0.0
    %2537 = vmatprep.subr.mxu0 0.0
    %2538 = vmatpush1.msra.mxu0 0.0
    %2539 = vmatprep.subr.mxu0 0.0
    %2540 = vmatpush1.msra.mxu0 0.0
    %2541 = vmatprep.subr.mxu0 0.0
    %2542 = vmatpush1.msra.mxu0 0.0
    %2543 = vmatprep.subr.mxu0 0.0
    %2544 = vmatpush1.msra.mxu0 0.0
    %2545 = vmatprep.subr.mxu0 0.0
    %2546 = vmatpush1.msra.mxu0 0.0
    %2547 = vmatprep.subr.mxu0 0.0
    %2548 = vmatpush1.msra.mxu0 0.0
    %2549 = vmatprep.subr.mxu0 0.0
    %2550 = vmatpush1.msra.mxu0 0.0
    %2551 = vmatprep.subr.mxu0 0.0
    %2552 = vmatpush1.msra.mxu0 0.0
    %2553 = vmatprep.subr.mxu0 0.0
    %2554 = vmatpush1.msra.mxu0 0.0
    %2555 = vmatprep.subr.mxu0 0.0
    %2556 = vmatpush1.msra.mxu0 0.0
    %2557 = vmatprep.subr.mxu0 0.0
    %2558 = vmatpush1.msra.mxu0 0.0
    %2559 = vmatprep.subr.mxu0 0.0
    %2560 = vmatpush1.msra.mxu0 0.0
    %2561 = vmatprep.subr.mxu0 0.0
    %2562 = vmatpush1.msra.mxu0 0.0
    %2563 = vmatprep.mubr.f32.mxu0 0.0
    %2564 = vmatmul.mubr.f32.gmra.mrb[0].mxu0 %v2495
    %v2565 = vpop.f32.mrb[0].mxu0
    %v2566 = vadd.f32 0.0, %v2565
    %v2567 = vpop.f32.mrb[0].mxu0
    %2568 = vdwg.mxu0
    %vm2569 = vcmask 64512
    %2570 = vst.msk [vmem:[#allocation6] sm:$0xff] %vm2569, %v2566
    // Predicated region
    $region50: #{generalized_rcnn_forward.3} parent=1 // pred_check
      _
    $region51: #{generalized_rcnn_forward.3} parent=1 // pred_check_branch
      %2572 = sbr.rel (0) target = $region53
    $region52: #{generalized_rcnn_forward.3} parent=1 // pred_region
      %s2574 = ssub.s32 2048, 2048
      %2575 = vsyncadd [#allocation3], %s2574
      %s2576 = sshll.u32 [#allocation2], 4
      %s2577 = int_to_ptr.vmem [resolvable:$true] %s2576
      %2582 = dma.vmem_to_hbm [thread:$0]  %s2577, 2048, %s12, [#allocation3], 128, 128, 8
    $region53: #{generalized_rcnn_forward.3} parent=1 // pred_fallthru
      _
    // Predicated region
    $region54: #{generalized_rcnn_forward.3} parent=1 // pred_check
      _
    $region55: #{generalized_rcnn_forward.3} parent=1 // pred_check_branch
      %2584 = sbr.rel (0) target = $region57
    $region56: #{generalized_rcnn_forward.3} parent=1 // pred_region
      %s2586 = ssub.s32 512, 512
      %2587 = vsyncadd [#allocation5], %s2586
      %s2588 = sshll.u32 [#allocation4], 4
      %s2589 = int_to_ptr.vmem [resolvable:$true] %s2588
      %2594 = dma.vmem_to_hbm [thread:$0]  %s2589, 512, %s13, [#allocation5], 128, 128, 8
    $region57: #{generalized_rcnn_forward.3} parent=1 // pred_fallthru
      _
    // Predicated region
    $region58: #{generalized_rcnn_forward.3} parent=1 // pred_check
      _
    $region59: #{generalized_rcnn_forward.3} parent=1 // pred_check_branch
      %2596 = sbr.rel (0) target = $region61
    $region60: #{generalized_rcnn_forward.3} parent=1 // pred_region
      _
    $region61: #{generalized_rcnn_forward.3} parent=1 // pred_fallthru
      _
    // Predicated region
    $region62: #{generalized_rcnn_forward.3} parent=1 // pred_check
      _
    $region63: #{generalized_rcnn_forward.3} parent=1 // pred_check_branch
      %2598 = sbr.rel (0) target = $region65
    $region64: #{generalized_rcnn_forward.3} parent=1 // pred_region
      %s2600 = ssub.s32 128, 128
      %2601 = vsyncadd [#allocation5], %s2600
      %s2603 = sshll.u32 [#allocation6], 4
      %s2604 = int_to_ptr.vmem [resolvable:$true] %s2603
      %2606 = dma.vmem_to_hbm [thread:$0]  %s2604, 128, %s15, [#allocation5]
    $region65: #{generalized_rcnn_forward.3} parent=1 // pred_fallthru
      _
    // Predicated region
    $region66: #{generalized_rcnn_forward.3} parent=1 // pred_check
      _
    $region67: #{generalized_rcnn_forward.3} parent=1 // pred_check_branch
      %2608 = sbr.rel (0) target = $region69
    $region68: #{generalized_rcnn_forward.3} parent=1 // pred_region
      %2609 = dma.done [#allocation3], 2048
    $region69: #{generalized_rcnn_forward.3} parent=1 // pred_fallthru
      _
    // Predicated region
    $region70: #{generalized_rcnn_forward.3} parent=1 // pred_check
      _
    $region71: #{generalized_rcnn_forward.3} parent=1 // pred_check_branch
      %2611 = sbr.rel (0) target = $region73
    $region72: #{generalized_rcnn_forward.3} parent=1 // pred_region
      %2612 = dma.done [#allocation5], 512
    $region73: #{generalized_rcnn_forward.3} parent=1 // pred_fallthru
      _
    // Predicated region
    $region74: #{generalized_rcnn_forward.3} parent=1 // pred_check
      _
    $region75: #{generalized_rcnn_forward.3} parent=1 // pred_check_branch
      %2614 = sbr.rel (0) target = $region77
    $region76: #{generalized_rcnn_forward.3} parent=1 // pred_region
      _
    $region77: #{generalized_rcnn_forward.3} parent=1 // pred_fallthru
      _
    // Predicated region
    $region78: #{generalized_rcnn_forward.3} parent=1 // pred_check
      _
    $region79: #{generalized_rcnn_forward.3} parent=1 // pred_check_branch
      %2616 = sbr.rel (0) target = $region81
    $region80: #{generalized_rcnn_forward.3} parent=1 // pred_region
      %2617 = dma.done [#allocation5], 128
    $region81: #{generalized_rcnn_forward.3} parent=1 // pred_fallthru
      _
    %2618 = vsyncpa [#allocation3], 1
    %2619 = vsyncpa [#allocation5], 1

</llo_original>
